<compile_context>
chip_gen: v7x
topology: tpu7x:2x2x1
jax: 0.10.0
libtpu: 0.0.40
codegen_flags: <defaults>
</compile_context>

<pallas_src>
import functools

import jax
import jax.numpy as jnp
from jax.experimental import pallas as pl
from jax.experimental.pallas import tpu as pltpu


# --------------------------------------------------------------------------
# Fused kernel: composed 3x3 low-res conv, kx taps pre-packed into channels.
#   x_ref : (TH, W8, 3*C)   main row block (rows i*TH .. i*TH+TH of padded input)
#   h_ref : (2,  W8, 3*C)   2-row halo (rows i*TH+TH .. i*TH+TH+2)
#   w_ref : (3, 3*C, 4*Cout)  composed weights, one (K, N) slab per ky tap
#   b_ref : (1, 4*Cout)       conv bias (broadcast over the 2x2 sub-positions)
#   o_ref : (TH, W8, 4*Cout)
#   acc_ref: (TH*W8, 4*Cout) f32 VMEM scratch accumulator
# --------------------------------------------------------------------------
def _finalup_kernel(x_ref, h_ref, w_ref, b_ref, o_ref, acc_ref, *, precision):
    TH, W8, C4 = o_ref.shape
    K3 = x_ref.shape[-1]
    M = TH * W8

    def mm(lhs, ky):
        return jnp.dot(lhs, w_ref[ky], preferred_element_type=jnp.float32,
                       precision=precision)

    # ky = 0 initializes the accumulator directly (saves a zero-fill + add pass).
    acc_ref[...] = mm(x_ref[...].reshape(M, K3), 0)

    # ky = 1, 2: row-shifted main block (pure addressing), tail rows come from the halo.
    for ky in (1, 2):
        split = (TH - ky) * W8                          # multiple of 8 (W8 % 8 == 0)
        acc_ref[0:split, :] = acc_ref[0:split, :] + mm(
            x_ref[ky:TH].reshape(split, K3), ky)
        acc_ref[split:M, :] = acc_ref[split:M, :] + mm(
            h_ref[0:ky].reshape(ky * W8, K3), ky)

    o_ref[...] = (acc_ref[...] + b_ref[...]).reshape(TH, W8, C4).astype(o_ref.dtype)


def _round_up(x, m):
    return -(-x // m) * m


def _vmem_capacity_bytes():
    # Chip-aware VMEM capacity (128 MiB v5e/v6e, 64 MiB per-TC v7x); safe fallback.
    try:
        return int(pltpu.get_tpu_info().vmem_capacity_bytes)
    except Exception:
        return 64 * 1024 * 1024


def _pick_block_h(H, W8, K3, C4, n_batch, in_bytes, budget):
    """Pick the row-block TH and block count NB.

    Counts double-buffered input/halo/weight blocks, the (f32) output blocks and the f32
    accumulator scratch against `budget`; caps TH near H (no pointless zero-row padding)
    and guarantees >= 2 grid steps when N == 1 so both v7x TensorCores get work.
    """
    def est(th):
        inp = 2 * th * W8 * _round_up(K3, 128) * in_bytes
        halo = 2 * 2 * W8 * _round_up(K3, 128) * in_bytes
        wgt = 2 * 3 * _round_up(K3, 8) * _round_up(C4, 128) * in_bytes
        out = 2 * th * W8 * _round_up(C4, 128) * 4
        acc = th * W8 * _round_up(C4, 128) * 4
        return inp + halo + wgt + out + acc

    th_cap = max(4, _round_up(H, 4))
    th = 4
    for cand in (512, 256, 128, 64, 32, 16, 8, 4):
        if cand <= th_cap and est(cand) <= budget:
            th = cand
            break
    if n_batch == 1:
        while th > 4 and pl.cdiv(H, th) < 2:   # keep both TensorCores fed
            th //= 2
    nb = pl.cdiv(H, th)
    th = max(4, _round_up(pl.cdiv(H, nb), 4))  # trim zero-row padding; stays even
    return th, nb


# --------------------------------------------------------------------------
# Full FinalUp forward.  Inputs / outputs in NCHW (PyTorch layout).
# --------------------------------------------------------------------------
def final_up_forward(x_nchw, w_up, b_up, w_conv, b_conv,
                     stream_dtype=jnp.bfloat16):
    """
    x_nchw : (N, Cin, H, W)
    w_up   : (Cin, Cout, 2, 2)   ConvTranspose2d weight (PyTorch layout)
    b_up   : (Cout,)
    w_conv : (Cout, Cout, 3, 3)  Conv2d weight (PyTorch layout)
    b_conv : (Cout,)
    stream_dtype : dtype used for the HBM-streamed operands (bf16 recommended; f32 for
                   bit-tight validation).  Accumulation is always f32.
    returns: (N, Cout, 2H, 2W) float32
    """
    N, Cin, H, W = x_nchw.shape
    Cout = w_up.shape[1]
    f32 = jnp.float32
    C = Cin + 1                   # +1 ones channel carries the ConvTranspose bias
    C4 = 4 * Cout                 # (a, b, cout): the 2x2 sub-pixel positions
    K3 = 3 * C                    # kx taps packed into channels

    # ---- 1. compose ConvTranspose(k=2,s=2) + Conv3x3 into one low-res 3x3 conv (1 einsum)
    U = jnp.concatenate(
        [jnp.transpose(w_up.astype(f32), (0, 2, 3, 1)),
         jnp.broadcast_to(b_up.astype(f32), (1, 2, 2, Cout))], axis=0)   # (C,2,2,Cout)
    g = jnp.arange(2)[:, None] + jnp.arange(3)[None, :] - 1              # (2,3) in [-1,3]
    r = g % 2                                                            # sub-pixel parity
    d = g // 2 + 1                                                       # low-res tap 0..2
    S = (d[:, :, None] == jnp.arange(3)[None, None, :]).astype(f32)      # (2,3,3) one-hot
    U_sel = U[:, r[:, :, None, None], r[None, None, :, :], :]            # (C,2,3,2,3,Cout)
    Wc = jnp.einsum('caibjm,omij,aid,bje->decabo',
                    U_sel, w_conv.astype(f32), S, S,
                    precision=jax.lax.Precision.HIGHEST)                 # (3,3,C,2,2,Cout)
    w_flat = Wc.reshape(3, 3 * C, C4).astype(stream_dtype)   # [ky, kx*C+c, (a*2+b)*Cout+o]
    b_flat = jnp.tile(b_conv.astype(f32), 4).reshape(1, C4)

    # ---- 2. input prep (low-res only): NHWC, ones channel, pad, kx-pack ----
    x = jnp.transpose(x_nchw.astype(f32), (0, 2, 3, 1))                  # (N,H,W,Cin)
    x = jnp.concatenate([x, jnp.ones((N, H, W, 1), f32)], axis=-1)       # (N,H,W,C)
    xp = jnp.pad(x, ((0, 0), (1, 1), (1, 1), (0, 0)))                    # (N,H+2,W+2,C)
    xk = jnp.concatenate([xp[:, :, kx:kx + W, :] for kx in range(3)],
                         axis=-1)                                        # (N,H+2,W,3C)
    W8 = _round_up(W, 8)                     # keep in-kernel reshapes layout-free
    if W8 != W:
        xk = jnp.pad(xk, ((0, 0), (0, 0), (0, W8 - W), (0, 0)))
    xk = xk.astype(stream_dtype)

    # ---- 3. tiling / VMEM policy ----
    in_bytes = jnp.dtype(stream_dtype).itemsize
    vmem_limit = min((_vmem_capacity_bytes() * 3) // 4, 96 * 1024 * 1024)
    budget = (vmem_limit * 2) // 3
    TH, NB = _pick_block_h(H, W8, K3, C4, N, in_bytes, budget)
    Hp = TH * NB
    if Hp != H:                              # H need not divide TH: pad rows, crop later
        xk = jnp.pad(xk, ((0, 0), (0, Hp - H), (0, 0), (0, 0)))          # (N,Hp+2,W8,3C)
    TH_half = TH // 2                        # TH is even; halo block offset (i+1)*TH

    kernel = functools.partial(
        _finalup_kernel,
        precision=(jax.lax.Precision.HIGHEST if stream_dtype == jnp.float32
                   else jax.lax.Precision.DEFAULT))

    # ---- 4. fused Pallas kernel (xk passed twice: main block + 2-row halo view) ----
    out4 = pl.pallas_call(
        kernel,
        out_shape=jax.ShapeDtypeStruct((N, Hp, W8, C4), f32),
        grid=(N, NB),
        in_specs=[
            pl.BlockSpec((None, TH, W8, K3), lambda n, i: (n, i, 0, 0)),
            pl.BlockSpec((None, 2, W8, K3),
                         lambda n, i: (n, (i + 1) * TH_half, 0, 0)),
            pl.BlockSpec((3, K3, C4), lambda n, i: (0, 0, 0)),
            pl.BlockSpec((1, C4), lambda n, i: (0, 0)),
        ],
        out_specs=pl.BlockSpec((None, TH, W8, C4), lambda n, i: (n, i, 0, 0)),
        scratch_shapes=[pltpu.VMEM((TH * W8, C4), jnp.float32)],
        compiler_params=pltpu.CompilerParams(
            dimension_semantics=("parallel", "parallel"),
            vmem_limit_bytes=int(vmem_limit)),
    )(xk, xk, w_flat, b_flat)

    # ---- 5. pixel-shuffle + NHWC -> NCHW (single XLA layout pass) ----
    out4 = out4[:, :H, :W, :]
    out = out4.reshape(N, H, W, 2, 2, Cout)
    out = jnp.transpose(out, (0, 5, 1, 3, 2, 4)).reshape(N, Cout, 2 * H, 2 * W)
    return out


# --------------------------------------------------------------------------
# Pure-JAX reference (correctness check only).
# --------------------------------------------------------------------------
def _reference(x_nchw, w_up, b_up, w_conv, b_conv):
    N, Cin, H, W = x_nchw.shape
    Cout = w_up.shape[1]
    x = jnp.transpose(x_nchw, (0, 2, 3, 1))                              # NHWC
    t = jnp.einsum('nhwi,ioab->nhawbo', x, w_up,
                   precision=jax.lax.Precision.HIGHEST)                  # (N,H,2,W,2,Cout)
    up = t.reshape(N, 2 * H, 2 * W, Cout) + b_up[None, None, None, :]
    w_hwio = jnp.transpose(w_conv, (2, 3, 1, 0))
    out = jax.lax.conv_general_dilated(
        up, w_hwio, window_strides=(1, 1), padding='SAME',
        dimension_numbers=('NHWC', 'HWIO', 'NHWC'),
        precision=jax.lax.Precision.HIGHEST)
    out = out + b_conv[None, None, None, :]
    return jnp.transpose(out, (0, 3, 1, 2))


if __name__ == "__main__":
    key = jax.random.PRNGKey(0)
    k0, k1, k2, k3, k4 = jax.random.split(key, 5)

    # Small shapes: N=2, Cin=8, Cout=4, H=W=8  ->  output (2, 4, 16, 16)
    N, Cin, Cout, H, W = 2, 8, 4, 8, 8

    x = jax.random.normal(k0, (N, Cin, H, W), dtype=jnp.float32)
    w_up = jax.random.uniform(k1, (Cin, Cout, 2, 2), jnp.float32,
                              minval=-0.5, maxval=0.5) / (Cin ** 0.5)
    b_up = jax.random.uniform(k2, (Cout,), jnp.float32, minval=-0.1, maxval=0.1)
    w_conv = jax.random.uniform(k3, (Cout, Cout, 3, 3), jnp.float32,
                                minval=-0.5, maxval=0.5) / ((Cout * 9) ** 0.5)
    b_conv = jax.random.uniform(k4, (Cout,), jnp.float32, minval=-0.1, maxval=0.1)

    ref = jax.block_until_ready(_reference(x, w_up, b_up, w_conv, b_conv))

    # 1) f32 streaming path: tight tolerance vs. the f32 reference.
    fwd_f32 = jax.jit(functools.partial(final_up_forward, stream_dtype=jnp.float32))
    out32 = jax.block_until_ready(fwd_f32(x, w_up, b_up, w_conv, b_conv))
    assert out32.shape == (N, Cout, 2 * H, 2 * W), out32.shape
    err32 = float(jnp.max(jnp.abs(out32 - ref)))
    assert jnp.allclose(out32, ref, atol=2e-4, rtol=2e-4), err32

    # 2) bf16 streaming path (recommended perf config): f32 accumulation, looser tolerance.
    fwd_bf16 = jax.jit(functools.partial(final_up_forward, stream_dtype=jnp.bfloat16))
    out16 = jax.block_until_ready(fwd_bf16(x, w_up, b_up, w_conv, b_conv))
    assert out16.shape == (N, Cout, 2 * H, 2 * W), out16.shape
    err16 = float(jnp.max(jnp.abs(out16 - ref)))
    assert jnp.allclose(out16, ref, atol=2e-2, rtol=2e-2), err16

    print("KERNEL_OK")
</pallas_src>

<mosaic_0001>
module attributes {stable_mosaic.version = 11 : i64} {
  func.func @_finalup_kernel(%arg0: i32, %arg1: i32, %arg2: memref<1x8x8x27xf32, #tpu.memory_space<vmem>>, %arg3: memref<1x2x8x27xf32, #tpu.memory_space<vmem>>, %arg4: memref<3x27x16xf32, #tpu.memory_space<vmem>>, %arg5: memref<1x16xf32, #tpu.memory_space<vmem>>, %arg6: memref<1x8x8x16xf32, #tpu.memory_space<vmem>>, %arg7: memref<64x16xf32, #tpu.memory_space<vmem>>) attributes {dimension_semantics = [#tpu.dimension_semantics<parallel>, #tpu.dimension_semantics<parallel>], iteration_bounds = array<i64: 2, 1>, scalar_prefetch = 0 : i64, scratch_operands = 1 : i64, tpu.core_type = #tpu.core_type<tc>, window_params = [{transform_indices = @transform_0, window_bounds = array<i64: 1, 8, 8, 27>}, {transform_indices = @transform_1, window_bounds = array<i64: 1, 2, 8, 27>}, {pipeline_mode = #tpu.pipeline_mode<synchronous>, transform_indices = @transform_2, window_bounds = array<i64: 3, 27, 16>}, {pipeline_mode = #tpu.pipeline_mode<synchronous>, transform_indices = @transform_3, window_bounds = array<i64: 1, 16>}, {transform_indices = @transform_4, window_bounds = array<i64: 1, 8, 8, 16>}]} {
    %c0 = arith.constant 0 : index
    %c0_0 = arith.constant 0 : index
    %c0_1 = arith.constant 0 : index
    %c0_2 = arith.constant 0 : index
    %0 = vector.load %arg2[%c0, %c0_0, %c0_1, %c0_2] : memref<1x8x8x27xf32, #tpu.memory_space<vmem>>, vector<1x8x8x27xf32>
    %1 = vector.shape_cast %0 : vector<1x8x8x27xf32> to vector<8x8x27xf32>
    %2 = vector.shape_cast %1 : vector<8x8x27xf32> to vector<64x27xf32>
    %c0_3 = arith.constant 0 : index
    %c0_4 = arith.constant 0 : index
    %c0_5 = arith.constant 0 : index
    %3 = vector.load %arg4[%c0_3, %c0_4, %c0_5] : memref<3x27x16xf32, #tpu.memory_space<vmem>>, vector<1x27x16xf32>
    %4 = vector.shape_cast %3 : vector<1x27x16xf32> to vector<27x16xf32>
    %cst = arith.constant dense<0.000000e+00> : vector<64x16xf32>
    %5 = tpu.matmul %2, %4, %cst {dimension_numbers = #tpu.dot_dimension_numbers<[1], [0], [0], [1], [0, 0, 1, 1], [], []>, precision = #tpu.contract_precision<fp32>} : vector<64x27xf32>, vector<27x16xf32>, vector<64x16xf32> -> vector<64x16xf32>
    %c0_6 = arith.constant 0 : index
    %c0_7 = arith.constant 0 : index
    %6 = vector.load %arg7[%c0_6, %c0_7] : memref<64x16xf32, #tpu.memory_space<vmem>>, vector<64x16xf32>
    tpu.vector_store %arg7[%c0_6, %c0_7], %5 {strides = array<i32>} : memref<64x16xf32, #tpu.memory_space<vmem>>, vector<64x16xf32>,
    %c0_8 = arith.constant 0 : index
    %c0_9 = arith.constant 0 : index
    %7 = vector.load %arg7[%c0_8, %c0_9] : memref<64x16xf32, #tpu.memory_space<vmem>>, vector<56x16xf32>
    %c0_10 = arith.constant 0 : index
    %c1 = arith.constant 1 : index
    %c0_11 = arith.constant 0 : index
    %c0_12 = arith.constant 0 : index
    %8 = vector.load %arg2[%c0_10, %c1, %c0_11, %c0_12] : memref<1x8x8x27xf32, #tpu.memory_space<vmem>>, vector<1x7x8x27xf32>
    %9 = vector.shape_cast %8 : vector<1x7x8x27xf32> to vector<7x8x27xf32>
    %10 = vector.shape_cast %9 : vector<7x8x27xf32> to vector<56x27xf32>
    %c1_13 = arith.constant 1 : index
    %c0_14 = arith.constant 0 : index
    %c0_15 = arith.constant 0 : index
    %11 = vector.load %arg4[%c1_13, %c0_14, %c0_15] : memref<3x27x16xf32, #tpu.memory_space<vmem>>, vector<1x27x16xf32>
    %12 = vector.shape_cast %11 : vector<1x27x16xf32> to vector<27x16xf32>
    %cst_16 = arith.constant dense<0.000000e+00> : vector<56x16xf32>
    %13 = tpu.matmul %10, %12, %cst_16 {dimension_numbers = #tpu.dot_dimension_numbers<[1], [0], [0], [1], [0, 0, 1, 1], [], []>, precision = #tpu.contract_precision<fp32>} : vector<56x27xf32>, vector<27x16xf32>, vector<56x16xf32> -> vector<56x16xf32>
    %14 = arith.addf %7, %13 : vector<56x16xf32>
    %c0_17 = arith.constant 0 : index
    %c0_18 = arith.constant 0 : index
    %15 = vector.load %arg7[%c0_17, %c0_18] : memref<64x16xf32, #tpu.memory_space<vmem>>, vector<56x16xf32>
    tpu.vector_store %arg7[%c0_17, %c0_18], %14 {strides = array<i32>} : memref<64x16xf32, #tpu.memory_space<vmem>>, vector<56x16xf32>,
    %c56 = arith.constant 56 : index
    %c0_19 = arith.constant 0 : index
    %16 = vector.load %arg7[%c56, %c0_19] : memref<64x16xf32, #tpu.memory_space<vmem>>, vector<8x16xf32>
    %c0_20 = arith.constant 0 : index
    %c0_21 = arith.constant 0 : index
    %c0_22 = arith.constant 0 : index
    %c0_23 = arith.constant 0 : index
    %17 = vector.load %arg3[%c0_20, %c0_21, %c0_22, %c0_23] : memref<1x2x8x27xf32, #tpu.memory_space<vmem>>, vector<1x1x8x27xf32>
    %18 = vector.shape_cast %17 : vector<1x1x8x27xf32> to vector<1x8x27xf32>
    %19 = vector.shape_cast %18 : vector<1x8x27xf32> to vector<8x27xf32>
    %c1_24 = arith.constant 1 : index
    %c0_25 = arith.constant 0 : index
    %c0_26 = arith.constant 0 : index
    %20 = vector.load %arg4[%c1_24, %c0_25, %c0_26] : memref<3x27x16xf32, #tpu.memory_space<vmem>>, vector<1x27x16xf32>
    %21 = vector.shape_cast %20 : vector<1x27x16xf32> to vector<27x16xf32>
    %cst_27 = arith.constant dense<0.000000e+00> : vector<8x16xf32>
    %22 = tpu.matmul %19, %21, %cst_27 {dimension_numbers = #tpu.dot_dimension_numbers<[1], [0], [0], [1], [0, 0, 1, 1], [], []>, precision = #tpu.contract_precision<fp32>} : vector<8x27xf32>, vector<27x16xf32>, vector<8x16xf32> -> vector<8x16xf32>
    %23 = arith.addf %16, %22 : vector<8x16xf32>
    %c56_28 = arith.constant 56 : index
    %c0_29 = arith.constant 0 : index
    %24 = vector.load %arg7[%c56_28, %c0_29] : memref<64x16xf32, #tpu.memory_space<vmem>>, vector<8x16xf32>
    tpu.vector_store %arg7[%c56_28, %c0_29], %23 {strides = array<i32>} : memref<64x16xf32, #tpu.memory_space<vmem>>, vector<8x16xf32>,
    %c0_30 = arith.constant 0 : index
    %c0_31 = arith.constant 0 : index
    %25 = vector.load %arg7[%c0_30, %c0_31] : memref<64x16xf32, #tpu.memory_space<vmem>>, vector<48x16xf32>
    %c0_32 = arith.constant 0 : index
    %c2 = arith.constant 2 : index
    %c0_33 = arith.constant 0 : index
    %c0_34 = arith.constant 0 : index
    %26 = vector.load %arg2[%c0_32, %c2, %c0_33, %c0_34] : memref<1x8x8x27xf32, #tpu.memory_space<vmem>>, vector<1x6x8x27xf32>
    %27 = vector.shape_cast %26 : vector<1x6x8x27xf32> to vector<6x8x27xf32>
    %28 = vector.shape_cast %27 : vector<6x8x27xf32> to vector<48x27xf32>
    %c2_35 = arith.constant 2 : index
    %c0_36 = arith.constant 0 : index
    %c0_37 = arith.constant 0 : index
    %29 = vector.load %arg4[%c2_35, %c0_36, %c0_37] : memref<3x27x16xf32, #tpu.memory_space<vmem>>, vector<1x27x16xf32>
    %30 = vector.shape_cast %29 : vector<1x27x16xf32> to vector<27x16xf32>
    %cst_38 = arith.constant dense<0.000000e+00> : vector<48x16xf32>
    %31 = tpu.matmul %28, %30, %cst_38 {dimension_numbers = #tpu.dot_dimension_numbers<[1], [0], [0], [1], [0, 0, 1, 1], [], []>, precision = #tpu.contract_precision<fp32>} : vector<48x27xf32>, vector<27x16xf32>, vector<48x16xf32> -> vector<48x16xf32>
    %32 = arith.addf %25, %31 : vector<48x16xf32>
    %c0_39 = arith.constant 0 : index
    %c0_40 = arith.constant 0 : index
    %33 = vector.load %arg7[%c0_39, %c0_40] : memref<64x16xf32, #tpu.memory_space<vmem>>, vector<48x16xf32>
    tpu.vector_store %arg7[%c0_39, %c0_40], %32 {strides = array<i32>} : memref<64x16xf32, #tpu.memory_space<vmem>>, vector<48x16xf32>,
    %c48 = arith.constant 48 : index
    %c0_41 = arith.constant 0 : index
    %34 = vector.load %arg7[%c48, %c0_41] : memref<64x16xf32, #tpu.memory_space<vmem>>, vector<16x16xf32>
    %c0_42 = arith.constant 0 : index
    %c0_43 = arith.constant 0 : index
    %c0_44 = arith.constant 0 : index
    %c0_45 = arith.constant 0 : index
    %35 = vector.load %arg3[%c0_42, %c0_43, %c0_44, %c0_45] : memref<1x2x8x27xf32, #tpu.memory_space<vmem>>, vector<1x2x8x27xf32>
    %36 = vector.shape_cast %35 : vector<1x2x8x27xf32> to vector<2x8x27xf32>
    %37 = vector.shape_cast %36 : vector<2x8x27xf32> to vector<16x27xf32>
    %c2_46 = arith.constant 2 : index
    %c0_47 = arith.constant 0 : index
    %c0_48 = arith.constant 0 : index
    %38 = vector.load %arg4[%c2_46, %c0_47, %c0_48] : memref<3x27x16xf32, #tpu.memory_space<vmem>>, vector<1x27x16xf32>
    %39 = vector.shape_cast %38 : vector<1x27x16xf32> to vector<27x16xf32>
    %cst_49 = arith.constant dense<0.000000e+00> : vector<16x16xf32>
    %40 = tpu.matmul %37, %39, %cst_49 {dimension_numbers = #tpu.dot_dimension_numbers<[1], [0], [0], [1], [0, 0, 1, 1], [], []>, precision = #tpu.contract_precision<fp32>} : vector<16x27xf32>, vector<27x16xf32>, vector<16x16xf32> -> vector<16x16xf32>
    %41 = arith.addf %34, %40 : vector<16x16xf32>
    %c48_50 = arith.constant 48 : index
    %c0_51 = arith.constant 0 : index
    %42 = vector.load %arg7[%c48_50, %c0_51] : memref<64x16xf32, #tpu.memory_space<vmem>>, vector<16x16xf32>
    tpu.vector_store %arg7[%c48_50, %c0_51], %41 {strides = array<i32>} : memref<64x16xf32, #tpu.memory_space<vmem>>, vector<16x16xf32>,
    %c0_52 = arith.constant 0 : index
    %c0_53 = arith.constant 0 : index
    %43 = vector.load %arg7[%c0_52, %c0_53] : memref<64x16xf32, #tpu.memory_space<vmem>>, vector<64x16xf32>
    %c0_54 = arith.constant 0 : index
    %c0_55 = arith.constant 0 : index
    %44 = vector.load %arg5[%c0_54, %c0_55] : memref<1x16xf32, #tpu.memory_space<vmem>>, vector<1x16xf32>
    %45 = vector.broadcast %44 : vector<1x16xf32> to vector<64x16xf32>
    %46 = arith.addf %43, %45 : vector<64x16xf32>
    %47 = vector.shape_cast %46 : vector<64x16xf32> to vector<8x8x16xf32>
    %c0_56 = arith.constant 0 : index
    %c0_57 = arith.constant 0 : index
    %c0_58 = arith.constant 0 : index
    %c0_59 = arith.constant 0 : index
    %48 = vector.load %arg6[%c0_56, %c0_57, %c0_58, %c0_59] : memref<1x8x8x16xf32, #tpu.memory_space<vmem>>, vector<1x8x8x16xf32>
    %49 = vector.shape_cast %48 : vector<1x8x8x16xf32> to vector<8x8x16xf32>
    %50 = vector.shape_cast %47 : vector<8x8x16xf32> to vector<1x8x8x16xf32>
    tpu.vector_store %arg6[%c0_56, %c0_57, %c0_58, %c0_59], %50 {strides = array<i32>} : memref<1x8x8x16xf32, #tpu.memory_space<vmem>>, vector<1x8x8x16xf32>,
    return
  }
  func.func @transform_0(%arg0: i32, %arg1: i32) -> (i32, i32, i32, i32) {
    %c0_i32 = arith.constant 0 : i32
    %c0_i32_0 = arith.constant 0 : i32
    %c0_i32_1 = arith.constant 0 : i32
    return %arg0, %arg1, %c0_i32, %c0_i32_0 : i32, i32, i32, i32
  }
  func.func @transform_1(%arg0: i32, %arg1: i32) -> (i32, i32, i32, i32) {
    %c1_i32 = arith.constant 1 : i32
    %0 = arith.addi %arg1, %c1_i32 : i32
    %c4_i32 = arith.constant 4 : i32
    %1 = arith.muli %0, %c4_i32 : i32
    %c0_i32 = arith.constant 0 : i32
    %c0_i32_0 = arith.constant 0 : i32
    %c0_i32_1 = arith.constant 0 : i32
    return %arg0, %1, %c0_i32, %c0_i32_0 : i32, i32, i32, i32
  }
  func.func @transform_2(%arg0: i32, %arg1: i32) -> (i32, i32, i32) {
    %c0_i32 = arith.constant 0 : i32
    %c0_i32_0 = arith.constant 0 : i32
    %c0_i32_1 = arith.constant 0 : i32
    %c0_i32_2 = arith.constant 0 : i32
    return %c0_i32, %c0_i32_0, %c0_i32_1 : i32, i32, i32
  }
  func.func @transform_3(%arg0: i32, %arg1: i32) -> (i32, i32) {
    %c0_i32 = arith.constant 0 : i32
    %c0_i32_0 = arith.constant 0 : i32
    %c0_i32_1 = arith.constant 0 : i32
    return %c0_i32, %c0_i32_0 : i32, i32
  }
  func.func @transform_4(%arg0: i32, %arg1: i32) -> (i32, i32, i32, i32) {
    %c0_i32 = arith.constant 0 : i32
    %c0_i32_0 = arith.constant 0 : i32
    %c0_i32_1 = arith.constant 0 : i32
    return %arg0, %arg1, %c0_i32, %c0_i32_0 : i32, i32, i32, i32
  }
}

</mosaic_0001>

<llo_original>
// kernel: tile.8
$region0: #{tile.8}
  #allocation0 [shape = 's32[1]{0}', space=sflag, size = 0x4, scoped, tag = 'scoped memory for tile.8']
  %s0 = inlined_call_operand.vmem [shape: f32[4], index: 0, kind: input, shape index: {}]
  %s1 = inlined_call_operand.vmem [shape: f32[4,4], index: 1, kind: output, shape index: {}]
  // Predicated region
  $region2: #{tile.8} parent=0 // pred_check
    _
  $region3: #{tile.8} parent=0 // pred_check_branch
    %3 = sbr.rel (0) target = $region5
  $region4: #{tile.8} parent=0 // pred_region
    _
  $region5: #{tile.8} parent=0 // pred_fallthru
    _
  %v4 = vld [vmem:[%s0] ss:$0 sm:$0xff]
  %5 = vst [vmem:[%s1] sm:$0xf] %v4

// kernel: tile.9
$region0: #{tile.9}
  %s0 = inlined_call_operand.vmem [shape: f32[4,4], index: 0, kind: input, shape index: {}]
  %s1 = inlined_call_operand.vmem [shape: f32[1,16], index: 1, kind: output, shape index: {}]
  $region1: #{tile.9} parent=0
    #allocation0 [shape = 'u8[4096]{0}', space=vmem, size = 0x1000, scoped, tag = 'scoped mem for output reshape']
    #allocation1 [shape = 'u8[4096]{0}', space=vmem, size = 0x1000, scoped, tag = 'scoped mem for input reshape']
    %s3 = sshllo.u32 0, 4
    %v4 = vld [vmem:[%s0] sm:%s3]
    %5 = vst [vmem:[#allocation1] sm:%s3] %v4
    %v6 = vld [vmem:[#allocation1] sm:$0x1]
    %vm7 = vcmask 31744
    %8 = vst.msk [vmem:[#allocation0] sm:$0x1] %vm7, %v6
    %s9 = scalar_lea.vmem [#allocation1], 3
    %v10 = vld [vmem:[%s9] sm:$0x1]
    %11 = vrot.lane.b32.xlu0 %v10, 12
    %v12 = vpop.permute.xlu0 %11
    %vm13 = vcmask 130144
    %14 = vst.msk [vmem:[#allocation0] sm:$0x1] %vm13, %v12
    %s15 = scalar_lea.vmem [#allocation1], 2
    %v16 = vld [vmem:[%s15] sm:$0x1]
    %17 = vrot.lane.b32.xlu0 %v16, 8
    %v18 = vpop.permute.xlu0 %17
    %vm19 = vcmask 97344
    %20 = vst.msk [vmem:[#allocation0] sm:$0x1] %vm19, %v18
    %s21 = scalar_lea.vmem [#allocation1], 1
    %v22 = vld [vmem:[%s21] sm:$0x1]
    %23 = vrot.lane.b32.xlu0 %v22, 4
    %v24 = vpop.permute.xlu0 %23
    %vm25 = vcmask 64544
    %26 = vst.msk [vmem:[#allocation0] sm:$0x1] %vm25, %v24
    %s28 = sshllo.u32 0, 1
    %v30 = vld [vmem:[#allocation0] sm:%s28]
    %s31 = sshllo.u32 0, 1
    %32 = vst [vmem:[%s1] sm:%s31] %v30

// kernel: final_up_forward.1
$region0: #{final_up_forward.1}
  #allocation0 [shape = 'u32[]', space=smem, size = 0x4, offset = 0x4, fixed_abs, tag = 'smem constant byte address 0x4 - core index']
  #allocation1 [shape = 'u32[144,128]{1,0:T(1,128)}', space=vmem, size = 0x12000, scoped, tag = 'internal scratch']
  #allocation2 [shape = 'f32[64,16]{1,0:T(8,128)}', space=vmem, size = 0x8000, scoped, tag = 'scratch operand']
  %s0 = inlined_call_operand.vmem [shape: f32[2,10,8,27], index: 0, kind: input, shape index: {}, may-alias: {0,1}]
  %s1 = inlined_call_operand.vmem [shape: f32[2,10,8,27], index: 1, kind: input, shape index: {}, may-alias: {0,1}]
  %s2 = inlined_call_operand.vmem [shape: f32[3,27,16], index: 2, kind: input, shape index: {}]
  %s3 = inlined_call_operand.vmem [shape: f32[1,16], index: 3, kind: input, shape index: {}]
  %s4 = inlined_call_operand.vmem [shape: f32[2,8,8,16], index: 4, kind: output, shape index: {}]
  %s5 = sld [smem:[#allocation0]]
  $region49: #{final_up_forward.1} parent=0
    _
  %s7 = ssub.s32 1, %s5
  %s8 = scalar_select 0, %s7, %s5
  loop: start=0, step=1, limit=4
  $region2: #{final_up_forward.1} parent=0 // loop_pre_header
    _
  $region3: #{final_up_forward.1} parent=0 // loop_header
    %s10 = sphi 0, %s14
    %p11 = scmp.ge.s32.totalorder %s10, 4
    %s17 = sphi 0, %s29
    %s18 = sphi 0, %s25
    %s19 = sphi 0, %s17
    %s20 = sphi 0, %s18
    %s21 = sphi 0, %s19
    %s22 = sphi 0, %s20
    %s34 = sphi 0, %s36
    %s37 = sphi 0, %s34
    %s38 = sphi 0, %s37
    %s54 = sphi 0, %s38
    %s66 = sphi 0, %s68
    %s69 = sphi 0, %s66
    %s70 = sphi 0, %s69
    %s86 = sphi 0, %s70
    %s90 = sphi 0, %s90
    %s92 = sphi 0, %s90
    %s93 = sphi 0, %s92
    %s107 = sphi 0, %s93
    %s111 = sphi 0, %s111
    %s113 = sphi 0, %s111
    %s114 = sphi 0, %s113
    %s128 = sphi 0, %s114
    %s136 = sphi 0, %s138
    %s139 = sphi 0, %s136
    %s140 = sphi 0, %s139
    %s156 = sphi 0, %s140
  $region4: #{final_up_forward.1} parent=0 // loop_header_branch
    %13 = sbr.rel (%p11) target = $region8
  $region5: #{final_up_forward.1} parent=0 // loop_body
    %s15 = ssub.s32 %s10, 1
    %s16 = ssub.s32 %s10, 2
    %s23 = sadd.s32 1, %s18
    %p24 = scmp.ge.s32.totalorder %s23, 1
    %s25 = scalar_select %p24, 0, %s23
    %s26 = sadd.s32 1, %s17
    %s27 = scalar_select %p24, %s26, %s17
    %p28 = scmp.ge.s32.totalorder %s27, 2
    %s29 = scalar_select %p28, 0, %s27
    %s30 = ssub.s32 %s17, %s29
    %s31 = ssub.s32 %s18, %s25
    %s32 = sor.u32 %s30, %s31
    %p33 = scmp.eq.s32.totalorder %s32, 0
    %s35 = sadd.s32 %s34, 1
    %s36 = scalar_select %p33, %s34, %s35
    %p39 = pneg %p33
    %p40 = scmp.eq.s32.totalorder %s10, 1
    %p41 = por %p39, %p40
    %p42 = scmp.ne.s32.totalorder %s34, %s37
    %p43 = scmp.eq.s32.totalorder %s10, 0
    %p44 = por %p42, %p43
    %p45 = scmp.ne.s32.totalorder %s34, %s37
    %p46 = scmp.eq.s32.totalorder %s15, 1
    %p47 = por %p45, %p46
    %p48 = scmp.ne.s32.totalorder %s37, %s38
    %p49 = scmp.eq.s32.totalorder %s15, 0
    %p50 = por %p48, %p49
    %p51 = scmp.ne.s32.totalorder %s37, %s38
    %p52 = scmp.eq.s32.totalorder %s16, 1
    %p53 = por %p51, %p52
    %p55 = scmp.ne.s32.totalorder %s38, %s54
    %p56 = scmp.eq.s32.totalorder %s16, 0
    %p57 = por %p55, %p56
    %s58 = sadd.s32 %s18, 1
    %s59 = smul.u32 %s58, 4
    %s60 = sadd.s32 %s25, 1
    %s61 = smul.u32 %s60, 4
    %s62 = ssub.s32 %s17, %s29
    %s63 = ssub.s32 %s59, %s61
    %s64 = sor.u32 %s62, %s63
    %p65 = scmp.eq.s32.totalorder %s64, 0
    %s67 = sadd.s32 %s66, 1
    %s68 = scalar_select %p65, %s66, %s67
    %p71 = pneg %p65
    %p72 = scmp.eq.s32.totalorder %s10, 1
    %p73 = por %p71, %p72
    %p74 = scmp.ne.s32.totalorder %s66, %s69
    %p75 = scmp.eq.s32.totalorder %s10, 0
    %p76 = por %p74, %p75
    %p77 = scmp.ne.s32.totalorder %s66, %s69
    %p78 = scmp.eq.s32.totalorder %s15, 1
    %p79 = por %p77, %p78
    %p80 = scmp.ne.s32.totalorder %s69, %s70
    %p81 = scmp.eq.s32.totalorder %s15, 0
    %p82 = por %p80, %p81
    %p83 = scmp.ne.s32.totalorder %s69, %s70
    %p84 = scmp.eq.s32.totalorder %s16, 1
    %p85 = por %p83, %p84
    %p87 = scmp.ne.s32.totalorder %s70, %s86
    %p88 = scmp.eq.s32.totalorder %s16, 0
    %p89 = por %p87, %p88
    %s91 = sadd.s32 %s90, 1
    %p94 = scmp.eq.s32.totalorder %s10, 1
    %p95 = scmp.ne.s32.totalorder %s90, %s92
    %p96 = scmp.eq.s32.totalorder %s10, 0
    %p97 = por %p95, %p96
    %p98 = scmp.ne.s32.totalorder %s90, %s92
    %p99 = scmp.eq.s32.totalorder %s15, 1
    %p100 = por %p98, %p99
    %p101 = scmp.ne.s32.totalorder %s92, %s93
    %p102 = scmp.eq.s32.totalorder %s15, 0
    %p103 = por %p101, %p102
    %p104 = scmp.ne.s32.totalorder %s92, %s93
    %p105 = scmp.eq.s32.totalorder %s16, 1
    %p106 = por %p104, %p105
    %p108 = scmp.ne.s32.totalorder %s93, %s107
    %p109 = scmp.eq.s32.totalorder %s16, 0
    %p110 = por %p108, %p109
    %s112 = sadd.s32 %s111, 1
    %p115 = scmp.eq.s32.totalorder %s10, 1
    %p116 = scmp.ne.s32.totalorder %s111, %s113
    %p117 = scmp.eq.s32.totalorder %s10, 0
    %p118 = por %p116, %p117
    %p119 = scmp.ne.s32.totalorder %s111, %s113
    %p120 = scmp.eq.s32.totalorder %s15, 1
    %p121 = por %p119, %p120
    %p122 = scmp.ne.s32.totalorder %s113, %s114
    %p123 = scmp.eq.s32.totalorder %s15, 0
    %p124 = por %p122, %p123
    %p125 = scmp.ne.s32.totalorder %s113, %s114
    %p126 = scmp.eq.s32.totalorder %s16, 1
    %p127 = por %p125, %p126
    %p129 = scmp.ne.s32.totalorder %s114, %s128
    %p130 = scmp.eq.s32.totalorder %s16, 0
    %p131 = por %p129, %p130
    %s132 = ssub.s32 %s17, %s29
    %s133 = ssub.s32 %s18, %s25
    %s134 = sor.u32 %s132, %s133
    %p135 = scmp.eq.s32.totalorder %s134, 0
    %s137 = sadd.s32 %s136, 1
    %s138 = scalar_select %p135, %s136, %s137
    %p141 = pneg %p135
    %p142 = scmp.eq.s32.totalorder %s10, 1
    %p143 = por %p141, %p142
    %p144 = scmp.ne.s32.totalorder %s136, %s139
    %p145 = scmp.eq.s32.totalorder %s10, 0
    %p146 = por %p144, %p145
    %p147 = scmp.ne.s32.totalorder %s136, %s139
    %p148 = scmp.eq.s32.totalorder %s15, 1
    %p149 = por %p147, %p148
    %p150 = scmp.ne.s32.totalorder %s139, %s140
    %p151 = scmp.eq.s32.totalorder %s15, 0
    %p152 = por %p150, %p151
    %p153 = scmp.ne.s32.totalorder %s139, %s140
    %p154 = scmp.eq.s32.totalorder %s16, 1
    %p155 = por %p153, %p154
    %p157 = scmp.ne.s32.totalorder %s140, %s156
    %p158 = scmp.eq.s32.totalorder %s16, 0
    %p159 = por %p157, %p158
    %p160 = scmp.le.s32.totalorder 1, %s10
    %p161 = scmp.lt.s32.totalorder %s10, 3
    %p162 = pnand %p160, %p161
    %p163 = pneg %p162
    // Predicated region
    $region9: #{final_up_forward.1} parent=5 // pred_check
      _
    $region10: #{final_up_forward.1} parent=5 // pred_check_branch
      %165 = sbr.rel (%p162) target = $region12
    $region11: #{final_up_forward.1} parent=5 // pred_region
      %s166 = ssub.s32 %s10, 1
      // Predicated region
      $region13: #{final_up_forward.1} parent=11 // pred_check
        %p167 = pneg %p103
      $region14: #{final_up_forward.1} parent=11 // pred_check_branch
        %169 = sbr.rel (%p167) target = $region16
      $region15: #{final_up_forward.1} parent=11 // pred_region
        _
      $region16: #{final_up_forward.1} parent=11 // pred_fallthru
        _
      // Predicated region
      $region17: #{final_up_forward.1} parent=11 // pred_check
        %p170 = pneg %p124
      $region18: #{final_up_forward.1} parent=11 // pred_check_branch
        %172 = sbr.rel (%p170) target = $region20
      $region19: #{final_up_forward.1} parent=11 // pred_region
        _
      $region20: #{final_up_forward.1} parent=11 // pred_fallthru
        _
    $region12: #{final_up_forward.1} parent=5 // pred_fallthru
      _
    %p173 = scmp.lt.s32.totalorder %s10, 2
    // Predicated region
    $region21: #{final_up_forward.1} parent=5 // pred_check
      %p174 = pneg %p173
    $region22: #{final_up_forward.1} parent=5 // pred_check_branch
      %176 = sbr.rel (%p174) target = $region24
    $region23: #{final_up_forward.1} parent=5 // pred_region
      // Predicated region
      $region25: #{final_up_forward.1} parent=23 // pred_check
        %p177 = pneg %p44
      $region26: #{final_up_forward.1} parent=23 // pred_check_branch
        %179 = sbr.rel (%p177) target = $region28
      $region27: #{final_up_forward.1} parent=23 // pred_region
        %s180 = smul.u32 8, %s18
        %s181 = ssub.s32 10, %s180
        %p182 = scmp.lt.s32.totalorder %s181, 8
        %s183 = scalar_select %p182, %s181, 8
        %s184 = smul.u32 128, %s183
        %p185 = scmp.lt.s32.totalorder %s17, 1
        %s186 = scalar_select %p185, %s17, 1
        %p187 = scmp.lt.s32.totalorder %s180, 9
        %s188 = scalar_select %p187, %s180, 9
        %s189 = smul.addr %s186, 10
        %s190 = sadd.s32 %s188, %s189
        %s191 = smul.addr %s190, 8
        %s192 = scalar_lea.vmem %s0, %s191
        %s193 = smul.u32 8, %s18
        %s194 = ssub.s32 10, %s193
        %p195 = scmp.lt.s32.totalorder %s194, 8
        %s196 = scalar_select %p195, %s194, 8
        %s197 = smul.u32 128, %s196
      $region28: #{final_up_forward.1} parent=23 // pred_fallthru
        _
      // Predicated region
      $region29: #{final_up_forward.1} parent=23 // pred_check
        %p198 = pneg %p76
      $region30: #{final_up_forward.1} parent=23 // pred_check_branch
        %200 = sbr.rel (%p198) target = $region32
      $region31: #{final_up_forward.1} parent=23 // pred_region
        %s201 = sadd.s32 %s18, 1
        %s202 = smul.u32 %s201, 4
        %s203 = smul.u32 2, %s202
        %p204 = scmp.lt.s32.totalorder %s17, 1
        %s205 = scalar_select %p204, %s17, 1
        %p206 = scmp.lt.s32.totalorder %s203, 9
        %s207 = scalar_select %p206, %s203, 9
        %s208 = smul.addr %s205, 10
        %s209 = sadd.s32 %s207, %s208
        %s210 = smul.addr %s209, 8
        %s211 = scalar_lea.vmem %s1, %s210
        %s212 = sadd.s32 %s18, 1
        %s213 = smul.u32 %s212, 4
        %s214 = smul.u32 2, %s213
      $region32: #{final_up_forward.1} parent=23 // pred_fallthru
        _
    $region24: #{final_up_forward.1} parent=5 // pred_fallthru
      _
    %p215 = scmp.le.s32.totalorder 1, %s10
    %p216 = scmp.lt.s32.totalorder %s10, 3
    %p217 = pnand %p215, %p216
    %p218 = pneg %p217
    // Predicated region
    $region33: #{final_up_forward.1} parent=5 // pred_check
      _
    $region34: #{final_up_forward.1} parent=5 // pred_check_branch
      %220 = sbr.rel (%p217) target = $region36
    $region35: #{final_up_forward.1} parent=5 // pred_region
      %s221 = ssub.s32 %s10, 1
      %s222 = smul.u32 8, %s20
      %s223 = ssub.s32 10, %s222
      %p224 = scmp.lt.s32.totalorder %s223, 8
      %s225 = scalar_select %p224, %s223, 8
      %s226 = smul.u32 128, %s225
      %p227 = scmp.lt.s32.totalorder %s19, 1
      %s228 = scalar_select %p227, %s19, 1
      %p229 = scmp.lt.s32.totalorder %s222, 9
      %s230 = scalar_select %p229, %s222, 9
      %s231 = smul.addr %s228, 10
      %s232 = sadd.s32 %s230, %s231
      %s233 = smul.addr %s232, 8
      %s234 = scalar_lea.vmem %s0, %s233
      %p235 = pneg %p50
      %p236 = pneg %p47
      %s237 = sadd.s32 %s20, 1
      %s238 = smul.u32 %s237, 4
      %s239 = smul.u32 2, %s238
      %p240 = scmp.lt.s32.totalorder %s19, 1
      %s241 = scalar_select %p240, %s19, 1
      %p242 = scmp.lt.s32.totalorder %s239, 9
      %s243 = scalar_select %p242, %s239, 9
      %s244 = smul.addr %s241, 10
      %s245 = sadd.s32 %s243, %s244
      %s246 = smul.addr %s245, 8
      %s247 = scalar_lea.vmem %s1, %s246
      %p248 = pneg %p82
      %p249 = pneg %p79
      %p250 = pneg %p103
      %p251 = pneg %p100
      %p252 = pneg %p124
      %p253 = pneg %p121
      %p254 = pneg %p152
      %p255 = pneg %p149
      %s256 = smul.u32 8, %s20
      %p257 = scmp.lt.s32.totalorder %s19, 1
      %s258 = scalar_select %p257, %s19, 1
      %p259 = scmp.lt.s32.totalorder %s256, 7
      %s260 = scalar_select %p259, %s256, 7
      %s261 = smul.addr %s258, 8
      %s262 = sadd.s32 %s260, %s261
      %s263 = smul.addr %s262, 8
      %s264 = scalar_lea.vmem %s4, %s263
      %s265 = smul.u32 8, %s20
      %s266 = ssub.s32 10, %s265
      %p267 = scmp.lt.s32.totalorder %s266, 8
      %s268 = scalar_select %p267, %s266, 8
      %s269 = smul.u32 128, %s268
      %p270 = scmp.lt.s32.totalorder %s19, 1
      %s271 = scalar_select %p270, %s19, 1
      %p272 = scmp.lt.s32.totalorder %s265, 9
      %s273 = scalar_select %p272, %s265, 9
      %s274 = smul.addr %s271, 10
      %s275 = sadd.s32 %s273, %s274
      %s276 = smul.addr %s275, 8
      %s277 = scalar_lea.vmem %s0, %s276
      %s278 = smul.u32 8, %s20
      %s279 = ssub.s32 10, %s278
      %p280 = scmp.lt.s32.totalorder %s279, 8
      %s281 = scalar_select %p280, %s279, 8
      %s282 = smul.u32 128, %s281
      %s283 = sadd.s32 %s20, 1
      %s284 = smul.u32 %s283, 4
      %s285 = smul.u32 2, %s284
      %p286 = scmp.lt.s32.totalorder %s19, 1
      %s287 = scalar_select %p286, %s19, 1
      %p288 = scmp.lt.s32.totalorder %s285, 9
      %s289 = scalar_select %p288, %s285, 9
      %s290 = smul.addr %s287, 10
      %s291 = sadd.s32 %s289, %s290
      %s292 = smul.addr %s291, 8
      %s293 = scalar_lea.vmem %s1, %s292
      %s294 = sadd.s32 %s20, 1
      %s295 = smul.u32 %s294, 4
      %s296 = smul.u32 2, %s295
      %s297 = smul.u32 8, %s20
      %p298 = scmp.lt.s32.totalorder %s19, 1
      %s299 = scalar_select %p298, %s19, 1
      %p300 = scmp.lt.s32.totalorder %s297, 7
      %s301 = scalar_select %p300, %s297, 7
      %s302 = smul.addr %s299, 8
      %s303 = sadd.s32 %s301, %s302
      %s304 = smul.addr %s303, 8
      %s305 = scalar_lea.vmem %s4, %s304
      %s306 = smul.u32 8, %s20
      %v307 = vld [vmem:[%s277] sm:$0xff]
      %v308 = vld [vmem:[%s277 + $0x8] sm:$0xff]
      %v309 = vld [vmem:[%s277 + $0x10] sm:$0xff]
      %v310 = vld [vmem:[%s277 + $0x18] sm:$0xff]
      %v311 = vld [vmem:[%s277 + $0x20] sm:$0xff]
      %v312 = vld [vmem:[%s277 + $0x28] sm:$0xff]
      %v313 = vld [vmem:[%s277 + $0x30] sm:$0xff]
      %v314 = vld [vmem:[%s277 + $0x38] sm:$0xff]
      %v315 = vld [vmem:[%s2] sm:$0xff]
      %v316 = vld [vmem:[%s2 + $0x8] sm:$0xff]
      %v317 = vld [vmem:[%s2 + $0x10] sm:$0xff]
      %v318 = vld [vmem:[%s2 + $0x18] sm:$0x7]
      %vm319 = vcmask 220160
      %v321 = vsel %vm319, %v307, 0
      %v324 = vsel %vm319, %v308, 0
      %v327 = vsel %vm319, %v309, 0
      %v330 = vsel %vm319, %v310, 0
      %v333 = vsel %vm319, %v311, 0
      %v336 = vsel %vm319, %v312, 0
      %v339 = vsel %vm319, %v313, 0
      %v342 = vsel %vm319, %v314, 0
      %vm344 = vcmask 1042432
      %v346 = vsel %vm344, %v318, 0
      %348 = vmatprep.subr.mxu0 0.0
      %v349 = vand.u32 %v315, 4294901760
      %350 = vmatpush1.msra.mxu0 %v349
      %351 = vmatprep.subr.mxu0 0.0
      %v352 = vand.u32 %v316, 4294901760
      %353 = vmatpush1.msra.mxu0 %v352
      %354 = vmatprep.subr.mxu0 0.0
      %v355 = vand.u32 %v317, 4294901760
      %356 = vmatpush1.msra.mxu0 %v355
      %357 = vmatprep.subr.mxu0 0.0
      %v358 = vand.u32 %v346, 4294901760
      %359 = vmatpush1.msra.mxu0 %v358
      %360 = vmatprep.subr.mxu0 0.0
      %361 = vmatpush1.msra.mxu0 0.0
      %362 = vmatprep.subr.mxu0 0.0
      %363 = vmatpush1.msra.mxu0 0.0
      %364 = vmatprep.subr.mxu0 0.0
      %365 = vmatpush1.msra.mxu0 0.0
      %366 = vmatprep.subr.mxu0 0.0
      %367 = vmatpush1.msra.mxu0 0.0
      %368 = vmatprep.subr.mxu0 0.0
      %369 = vmatpush1.msra.mxu0 0.0
      %370 = vmatprep.subr.mxu0 0.0
      %371 = vmatpush1.msra.mxu0 0.0
      %372 = vmatprep.subr.mxu0 0.0
      %373 = vmatpush1.msra.mxu0 0.0
      %374 = vmatprep.subr.mxu0 0.0
      %375 = vmatpush1.msra.mxu0 0.0
      %376 = vmatprep.subr.mxu0 0.0
      %377 = vmatpush1.msra.mxu0 0.0
      %378 = vmatprep.subr.mxu0 0.0
      %379 = vmatpush1.msra.mxu0 0.0
      %380 = vmatprep.subr.mxu0 0.0
      %381 = vmatpush1.msra.mxu0 0.0
      %382 = vmatprep.subr.mxu0 0.0
      %383 = vmatpush1.msra.mxu0 0.0
      %384 = vmatprep.subr.mxu0 0.0
      %385 = vmatpush1.msra.mxu0 0.0
      %386 = vmatprep.subr.mxu0 0.0
      %387 = vmatpush1.msra.mxu0 0.0
      %388 = vmatprep.subr.mxu0 0.0
      %389 = vmatpush1.msra.mxu0 0.0
      %390 = vmatprep.subr.mxu0 0.0
      %391 = vmatpush1.msra.mxu0 0.0
      %392 = vmatprep.subr.mxu0 0.0
      %393 = vmatpush1.msra.mxu0 0.0
      %394 = vmatprep.subr.mxu0 0.0
      %395 = vmatpush1.msra.mxu0 0.0
      %396 = vmatprep.subr.mxu0 0.0
      %397 = vmatpush1.msra.mxu0 0.0
      %398 = vmatprep.subr.mxu0 0.0
      %399 = vmatpush1.msra.mxu0 0.0
      %400 = vmatprep.subr.mxu0 0.0
      %401 = vmatpush1.msra.mxu0 0.0
      %402 = vmatprep.subr.mxu0 0.0
      %403 = vmatpush1.msra.mxu0 0.0
      %404 = vmatprep.subr.mxu0 0.0
      %405 = vmatpush1.msra.mxu0 0.0
      %406 = vmatprep.subr.mxu0 0.0
      %407 = vmatpush1.msra.mxu0 0.0
      %408 = vmatprep.subr.mxu0 0.0
      %409 = vmatpush1.msra.mxu0 0.0
      %410 = vmatprep.subr.mxu0 0.0
      %411 = vmatpush1.msra.mxu0 0.0
      %412 = vmatprep.subr.mxu0 0.0
      %413 = vmatpush1.msra.mxu0 0.0
      %414 = vmatprep.subr.mxu0 0.0
      %415 = vmatpush1.msra.mxu0 0.0
      %416 = vmatprep.mubr.f32.mxu0 0.0
      %v417 = vand.u32 %v321, 4294901760
      %v418 = vsub.f32 %v321, %v417
      %v419 = vand.u32 %v418, 4294901760
      %v420 = vsub.f32 %v418, %v419
      %v421 = vand.u32 %v420, 4294901760
      %422 = vmatmul.mubr.f32.gmra.mrb[0].mxu0 %v421
      %v423 = vpop.f32.mrb[0].mxu0
      %v424 = vadd.f32 0.0, %v423
      %v425 = vpop.f32.mrb[0].mxu0
      %426 = vmatprep.mubr.f32.mxu0 0.0
      %v427 = vand.u32 %v324, 4294901760
      %v428 = vsub.f32 %v324, %v427
      %v429 = vand.u32 %v428, 4294901760
      %v430 = vsub.f32 %v428, %v429
      %v431 = vand.u32 %v430, 4294901760
      %432 = vmatmul.mubr.f32.gmra.mrb[0].mxu0 %v431
      %v433 = vpop.f32.mrb[0].mxu0
      %v434 = vadd.f32 0.0, %v433
      %v435 = vpop.f32.mrb[0].mxu0
      %436 = vmatprep.mubr.f32.mxu0 0.0
      %v437 = vand.u32 %v327, 4294901760
      %v438 = vsub.f32 %v327, %v437
      %v439 = vand.u32 %v438, 4294901760
      %v440 = vsub.f32 %v438, %v439
      %v441 = vand.u32 %v440, 4294901760
      %442 = vmatmul.mubr.f32.gmra.mrb[0].mxu0 %v441
      %v443 = vpop.f32.mrb[0].mxu0
      %v444 = vadd.f32 0.0, %v443
      %v445 = vpop.f32.mrb[0].mxu0
      %446 = vmatprep.mubr.f32.mxu0 0.0
      %v447 = vand.u32 %v330, 4294901760
      %v448 = vsub.f32 %v330, %v447
      %v449 = vand.u32 %v448, 4294901760
      %v450 = vsub.f32 %v448, %v449
      %v451 = vand.u32 %v450, 4294901760
      %452 = vmatmul.mubr.f32.gmra.mrb[0].mxu0 %v451
      %v453 = vpop.f32.mrb[0].mxu0
      %v454 = vadd.f32 0.0, %v453
      %v455 = vpop.f32.mrb[0].mxu0
      %456 = vmatprep.mubr.f32.mxu0 0.0
      %v457 = vand.u32 %v333, 4294901760
      %v458 = vsub.f32 %v333, %v457
      %v459 = vand.u32 %v458, 4294901760
      %v460 = vsub.f32 %v458, %v459
      %v461 = vand.u32 %v460, 4294901760
      %462 = vmatmul.mubr.f32.gmra.mrb[0].mxu0 %v461
      %v463 = vpop.f32.mrb[0].mxu0
      %v464 = vadd.f32 0.0, %v463
      %v465 = vpop.f32.mrb[0].mxu0
      %466 = vmatprep.mubr.f32.mxu0 0.0
      %v467 = vand.u32 %v336, 4294901760
      %v468 = vsub.f32 %v336, %v467
      %v469 = vand.u32 %v468, 4294901760
      %v470 = vsub.f32 %v468, %v469
      %v471 = vand.u32 %v470, 4294901760
      %472 = vmatmul.mubr.f32.gmra.mrb[0].mxu0 %v471
      %v473 = vpop.f32.mrb[0].mxu0
      %v474 = vadd.f32 0.0, %v473
      %v475 = vpop.f32.mrb[0].mxu0
      %476 = vmatprep.mubr.f32.mxu0 0.0
      %v477 = vand.u32 %v339, 4294901760
      %v478 = vsub.f32 %v339, %v477
      %v479 = vand.u32 %v478, 4294901760
      %v480 = vsub.f32 %v478, %v479
      %v481 = vand.u32 %v480, 4294901760
      %482 = vmatmul.mubr.f32.gmra.mrb[0].mxu0 %v481
      %v483 = vpop.f32.mrb[0].mxu0
      %v484 = vadd.f32 0.0, %v483
      %v485 = vpop.f32.mrb[0].mxu0
      %486 = vmatprep.mubr.f32.mxu0 0.0
      %v487 = vand.u32 %v342, 4294901760
      %v488 = vsub.f32 %v342, %v487
      %v489 = vand.u32 %v488, 4294901760
      %v490 = vsub.f32 %v488, %v489
      %v491 = vand.u32 %v490, 4294901760
      %492 = vmatmul.mubr.f32.gmra.mrb[0].mxu0 %v491
      %v493 = vpop.f32.mrb[0].mxu0
      %v494 = vadd.f32 0.0, %v493
      %v495 = vpop.f32.mrb[0].mxu0
      %496 = vdwg.mxu0
      %497 = vmatprep.subr.mxu0 0.0
      %v498 = vand.u32 %v315, 4294901760
      %v499 = vsub.f32 %v315, %v498
      %v500 = vand.u32 %v499, 4294901760
      %v501 = vsub.f32 %v499, %v500
      %v502 = vand.u32 %v501, 4294901760
      %503 = vmatpush1.msra.mxu0 %v502
      %504 = vmatprep.subr.mxu0 0.0
      %v505 = vand.u32 %v316, 4294901760
      %v506 = vsub.f32 %v316, %v505
      %v507 = vand.u32 %v506, 4294901760
      %v508 = vsub.f32 %v506, %v507
      %v509 = vand.u32 %v508, 4294901760
      %510 = vmatpush1.msra.mxu0 %v509
      %511 = vmatprep.subr.mxu0 0.0
      %v512 = vand.u32 %v317, 4294901760
      %v513 = vsub.f32 %v317, %v512
      %v514 = vand.u32 %v513, 4294901760
      %v515 = vsub.f32 %v513, %v514
      %v516 = vand.u32 %v515, 4294901760
      %517 = vmatpush1.msra.mxu0 %v516
      %518 = vmatprep.subr.mxu0 0.0
      %v519 = vand.u32 %v346, 4294901760
      %v520 = vsub.f32 %v346, %v519
      %v521 = vand.u32 %v520, 4294901760
      %v522 = vsub.f32 %v520, %v521
      %v523 = vand.u32 %v522, 4294901760
      %524 = vmatpush1.msra.mxu0 %v523
      %525 = vmatprep.subr.mxu0 0.0
      %526 = vmatpush1.msra.mxu0 0.0
      %527 = vmatprep.subr.mxu0 0.0
      %528 = vmatpush1.msra.mxu0 0.0
      %529 = vmatprep.subr.mxu0 0.0
      %530 = vmatpush1.msra.mxu0 0.0
      %531 = vmatprep.subr.mxu0 0.0
      %532 = vmatpush1.msra.mxu0 0.0
      %533 = vmatprep.subr.mxu0 0.0
      %534 = vmatpush1.msra.mxu0 0.0
      %535 = vmatprep.subr.mxu0 0.0
      %536 = vmatpush1.msra.mxu0 0.0
      %537 = vmatprep.subr.mxu0 0.0
      %538 = vmatpush1.msra.mxu0 0.0
      %539 = vmatprep.subr.mxu0 0.0
      %540 = vmatpush1.msra.mxu0 0.0
      %541 = vmatprep.subr.mxu0 0.0
      %542 = vmatpush1.msra.mxu0 0.0
      %543 = vmatprep.subr.mxu0 0.0
      %544 = vmatpush1.msra.mxu0 0.0
      %545 = vmatprep.subr.mxu0 0.0
      %546 = vmatpush1.msra.mxu0 0.0
      %547 = vmatprep.subr.mxu0 0.0
      %548 = vmatpush1.msra.mxu0 0.0
      %549 = vmatprep.subr.mxu0 0.0
      %550 = vmatpush1.msra.mxu0 0.0
      %551 = vmatprep.subr.mxu0 0.0
      %552 = vmatpush1.msra.mxu0 0.0
      %553 = vmatprep.subr.mxu0 0.0
      %554 = vmatpush1.msra.mxu0 0.0
      %555 = vmatprep.subr.mxu0 0.0
      %556 = vmatpush1.msra.mxu0 0.0
      %557 = vmatprep.subr.mxu0 0.0
      %558 = vmatpush1.msra.mxu0 0.0
      %559 = vmatprep.subr.mxu0 0.0
      %560 = vmatpush1.msra.mxu0 0.0
      %561 = vmatprep.subr.mxu0 0.0
      %562 = vmatpush1.msra.mxu0 0.0
      %563 = vmatprep.subr.mxu0 0.0
      %564 = vmatpush1.msra.mxu0 0.0
      %565 = vmatprep.subr.mxu0 0.0
      %566 = vmatpush1.msra.mxu0 0.0
      %567 = vmatprep.subr.mxu0 0.0
      %568 = vmatpush1.msra.mxu0 0.0
      %569 = vmatprep.subr.mxu0 0.0
      %570 = vmatpush1.msra.mxu0 0.0
      %571 = vmatprep.subr.mxu0 0.0
      %572 = vmatpush1.msra.mxu0 0.0
      %573 = vmatprep.subr.mxu0 0.0
      %574 = vmatpush1.msra.mxu0 0.0
      %575 = vmatprep.subr.mxu0 0.0
      %576 = vmatpush1.msra.mxu0 0.0
      %577 = vmatprep.subr.mxu0 0.0
      %578 = vmatpush1.msra.mxu0 0.0
      %579 = vmatprep.subr.mxu0 0.0
      %580 = vmatpush1.msra.mxu0 0.0
      %581 = vmatprep.mubr.f32.mxu0 0.0
      %v582 = vand.u32 %v321, 4294901760
      %583 = vmatmul.mubr.f32.gmra.mrb[0].mxu0 %v582
      %v584 = vpop.f32.mrb[0].mxu0
      %v585 = vadd.f32 %v424, %v584
      %v586 = vpop.f32.mrb[0].mxu0
      %587 = vmatprep.mubr.f32.mxu0 0.0
      %v588 = vand.u32 %v324, 4294901760
      %589 = vmatmul.mubr.f32.gmra.mrb[0].mxu0 %v588
      %v590 = vpop.f32.mrb[0].mxu0
      %v591 = vadd.f32 %v434, %v590
      %v592 = vpop.f32.mrb[0].mxu0
      %593 = vmatprep.mubr.f32.mxu0 0.0
      %v594 = vand.u32 %v327, 4294901760
      %595 = vmatmul.mubr.f32.gmra.mrb[0].mxu0 %v594
      %v596 = vpop.f32.mrb[0].mxu0
      %v597 = vadd.f32 %v444, %v596
      %v598 = vpop.f32.mrb[0].mxu0
      %599 = vmatprep.mubr.f32.mxu0 0.0
      %v600 = vand.u32 %v330, 4294901760
      %601 = vmatmul.mubr.f32.gmra.mrb[0].mxu0 %v600
      %v602 = vpop.f32.mrb[0].mxu0
      %v603 = vadd.f32 %v454, %v602
      %v604 = vpop.f32.mrb[0].mxu0
      %605 = vmatprep.mubr.f32.mxu0 0.0
      %v606 = vand.u32 %v333, 4294901760
      %607 = vmatmul.mubr.f32.gmra.mrb[0].mxu0 %v606
      %v608 = vpop.f32.mrb[0].mxu0
      %v609 = vadd.f32 %v464, %v608
      %v610 = vpop.f32.mrb[0].mxu0
      %611 = vmatprep.mubr.f32.mxu0 0.0
      %v612 = vand.u32 %v336, 4294901760
      %613 = vmatmul.mubr.f32.gmra.mrb[0].mxu0 %v612
      %v614 = vpop.f32.mrb[0].mxu0
      %v615 = vadd.f32 %v474, %v614
      %v616 = vpop.f32.mrb[0].mxu0
      %617 = vmatprep.mubr.f32.mxu0 0.0
      %v618 = vand.u32 %v339, 4294901760
      %619 = vmatmul.mubr.f32.gmra.mrb[0].mxu0 %v618
      %v620 = vpop.f32.mrb[0].mxu0
      %v621 = vadd.f32 %v484, %v620
      %v622 = vpop.f32.mrb[0].mxu0
      %623 = vmatprep.mubr.f32.mxu0 0.0
      %v624 = vand.u32 %v342, 4294901760
      %625 = vmatmul.mubr.f32.gmra.mrb[0].mxu0 %v624
      %v626 = vpop.f32.mrb[0].mxu0
      %v627 = vadd.f32 %v494, %v626
      %v628 = vpop.f32.mrb[0].mxu0
      %629 = vdwg.mxu0
      %630 = vmatprep.subr.mxu0 0.0
      %v631 = vand.u32 %v315, 4294901760
      %v632 = vsub.f32 %v315, %v631
      %633 = vmatpush1.msra.mxu0 %v632
      %634 = vmatprep.subr.mxu0 0.0
      %v635 = vand.u32 %v316, 4294901760
      %v636 = vsub.f32 %v316, %v635
      %637 = vmatpush1.msra.mxu0 %v636
      %638 = vmatprep.subr.mxu0 0.0
      %v639 = vand.u32 %v317, 4294901760
      %v640 = vsub.f32 %v317, %v639
      %641 = vmatpush1.msra.mxu0 %v640
      %642 = vmatprep.subr.mxu0 0.0
      %v643 = vand.u32 %v346, 4294901760
      %v644 = vsub.f32 %v346, %v643
      %645 = vmatpush1.msra.mxu0 %v644
      %646 = vmatprep.subr.mxu0 0.0
      %647 = vmatpush1.msra.mxu0 0.0
      %648 = vmatprep.subr.mxu0 0.0
      %649 = vmatpush1.msra.mxu0 0.0
      %650 = vmatprep.subr.mxu0 0.0
      %651 = vmatpush1.msra.mxu0 0.0
      %652 = vmatprep.subr.mxu0 0.0
      %653 = vmatpush1.msra.mxu0 0.0
      %654 = vmatprep.subr.mxu0 0.0
      %655 = vmatpush1.msra.mxu0 0.0
      %656 = vmatprep.subr.mxu0 0.0
      %657 = vmatpush1.msra.mxu0 0.0
      %658 = vmatprep.subr.mxu0 0.0
      %659 = vmatpush1.msra.mxu0 0.0
      %660 = vmatprep.subr.mxu0 0.0
      %661 = vmatpush1.msra.mxu0 0.0
      %662 = vmatprep.subr.mxu0 0.0
      %663 = vmatpush1.msra.mxu0 0.0
      %664 = vmatprep.subr.mxu0 0.0
      %665 = vmatpush1.msra.mxu0 0.0
      %666 = vmatprep.subr.mxu0 0.0
      %667 = vmatpush1.msra.mxu0 0.0
      %668 = vmatprep.subr.mxu0 0.0
      %669 = vmatpush1.msra.mxu0 0.0
      %670 = vmatprep.subr.mxu0 0.0
      %671 = vmatpush1.msra.mxu0 0.0
      %672 = vmatprep.subr.mxu0 0.0
      %673 = vmatpush1.msra.mxu0 0.0
      %674 = vmatprep.subr.mxu0 0.0
      %675 = vmatpush1.msra.mxu0 0.0
      %676 = vmatprep.subr.mxu0 0.0
      %677 = vmatpush1.msra.mxu0 0.0
      %678 = vmatprep.subr.mxu0 0.0
      %679 = vmatpush1.msra.mxu0 0.0
      %680 = vmatprep.subr.mxu0 0.0
      %681 = vmatpush1.msra.mxu0 0.0
      %682 = vmatprep.subr.mxu0 0.0
      %683 = vmatpush1.msra.mxu0 0.0
      %684 = vmatprep.subr.mxu0 0.0
      %685 = vmatpush1.msra.mxu0 0.0
      %686 = vmatprep.subr.mxu0 0.0
      %687 = vmatpush1.msra.mxu0 0.0
      %688 = vmatprep.subr.mxu0 0.0
      %689 = vmatpush1.msra.mxu0 0.0
      %690 = vmatprep.subr.mxu0 0.0
      %691 = vmatpush1.msra.mxu0 0.0
      %692 = vmatprep.subr.mxu0 0.0
      %693 = vmatpush1.msra.mxu0 0.0
      %694 = vmatprep.subr.mxu0 0.0
      %695 = vmatpush1.msra.mxu0 0.0
      %696 = vmatprep.subr.mxu0 0.0
      %697 = vmatpush1.msra.mxu0 0.0
      %698 = vmatprep.subr.mxu0 0.0
      %699 = vmatpush1.msra.mxu0 0.0
      %700 = vmatprep.subr.mxu0 0.0
      %701 = vmatpush1.msra.mxu0 0.0
      %702 = vmatprep.mubr.f32.mxu0 0.0
      %v703 = vand.u32 %v321, 4294901760
      %v704 = vsub.f32 %v321, %v703
      %705 = vmatmul.mubr.f32.gmra.mrb[0].mxu0 %v704
      %v706 = vpop.f32.mrb[0].mxu0
      %v707 = vadd.f32 %v585, %v706
      %v708 = vpop.f32.mrb[0].mxu0
      %709 = vmatprep.mubr.f32.mxu0 0.0
      %v710 = vand.u32 %v324, 4294901760
      %v711 = vsub.f32 %v324, %v710
      %712 = vmatmul.mubr.f32.gmra.mrb[0].mxu0 %v711
      %v713 = vpop.f32.mrb[0].mxu0
      %v714 = vadd.f32 %v591, %v713
      %v715 = vpop.f32.mrb[0].mxu0
      %716 = vmatprep.mubr.f32.mxu0 0.0
      %v717 = vand.u32 %v327, 4294901760
      %v718 = vsub.f32 %v327, %v717
      %719 = vmatmul.mubr.f32.gmra.mrb[0].mxu0 %v718
      %v720 = vpop.f32.mrb[0].mxu0
      %v721 = vadd.f32 %v597, %v720
      %v722 = vpop.f32.mrb[0].mxu0
      %723 = vmatprep.mubr.f32.mxu0 0.0
      %v724 = vand.u32 %v330, 4294901760
      %v725 = vsub.f32 %v330, %v724
      %726 = vmatmul.mubr.f32.gmra.mrb[0].mxu0 %v725
      %v727 = vpop.f32.mrb[0].mxu0
      %v728 = vadd.f32 %v603, %v727
      %v729 = vpop.f32.mrb[0].mxu0
      %730 = vmatprep.mubr.f32.mxu0 0.0
      %v731 = vand.u32 %v333, 4294901760
      %v732 = vsub.f32 %v333, %v731
      %733 = vmatmul.mubr.f32.gmra.mrb[0].mxu0 %v732
      %v734 = vpop.f32.mrb[0].mxu0
      %v735 = vadd.f32 %v609, %v734
      %v736 = vpop.f32.mrb[0].mxu0
      %737 = vmatprep.mubr.f32.mxu0 0.0
      %v738 = vand.u32 %v336, 4294901760
      %v739 = vsub.f32 %v336, %v738
      %740 = vmatmul.mubr.f32.gmra.mrb[0].mxu0 %v739
      %v741 = vpop.f32.mrb[0].mxu0
      %v742 = vadd.f32 %v615, %v741
      %v743 = vpop.f32.mrb[0].mxu0
      %744 = vmatprep.mubr.f32.mxu0 0.0
      %v745 = vand.u32 %v339, 4294901760
      %v746 = vsub.f32 %v339, %v745
      %747 = vmatmul.mubr.f32.gmra.mrb[0].mxu0 %v746
      %v748 = vpop.f32.mrb[0].mxu0
      %v749 = vadd.f32 %v621, %v748
      %v750 = vpop.f32.mrb[0].mxu0
      %751 = vmatprep.mubr.f32.mxu0 0.0
      %v752 = vand.u32 %v342, 4294901760
      %v753 = vsub.f32 %v342, %v752
      %754 = vmatmul.mubr.f32.gmra.mrb[0].mxu0 %v753
      %v755 = vpop.f32.mrb[0].mxu0
      %v756 = vadd.f32 %v627, %v755
      %v757 = vpop.f32.mrb[0].mxu0
      %758 = vdwg.mxu0
      %759 = vmatprep.subr.mxu0 0.0
      %v760 = vand.u32 %v315, 4294901760
      %761 = vmatpush1.msra.mxu0 %v760
      %762 = vmatprep.subr.mxu0 0.0
      %v763 = vand.u32 %v316, 4294901760
      %764 = vmatpush1.msra.mxu0 %v763
      %765 = vmatprep.subr.mxu0 0.0
      %v766 = vand.u32 %v317, 4294901760
      %767 = vmatpush1.msra.mxu0 %v766
      %768 = vmatprep.subr.mxu0 0.0
      %v769 = vand.u32 %v346, 4294901760
      %770 = vmatpush1.msra.mxu0 %v769
      %771 = vmatprep.subr.mxu0 0.0
      %772 = vmatpush1.msra.mxu0 0.0
      %773 = vmatprep.subr.mxu0 0.0
      %774 = vmatpush1.msra.mxu0 0.0
      %775 = vmatprep.subr.mxu0 0.0
      %776 = vmatpush1.msra.mxu0 0.0
      %777 = vmatprep.subr.mxu0 0.0
      %778 = vmatpush1.msra.mxu0 0.0
      %779 = vmatprep.subr.mxu0 0.0
      %780 = vmatpush1.msra.mxu0 0.0
      %781 = vmatprep.subr.mxu0 0.0
      %782 = vmatpush1.msra.mxu0 0.0
      %783 = vmatprep.subr.mxu0 0.0
      %784 = vmatpush1.msra.mxu0 0.0
      %785 = vmatprep.subr.mxu0 0.0
      %786 = vmatpush1.msra.mxu0 0.0
      %787 = vmatprep.subr.mxu0 0.0
      %788 = vmatpush1.msra.mxu0 0.0
      %789 = vmatprep.subr.mxu0 0.0
      %790 = vmatpush1.msra.mxu0 0.0
      %791 = vmatprep.subr.mxu0 0.0
      %792 = vmatpush1.msra.mxu0 0.0
      %793 = vmatprep.subr.mxu0 0.0
      %794 = vmatpush1.msra.mxu0 0.0
      %795 = vmatprep.subr.mxu0 0.0
      %796 = vmatpush1.msra.mxu0 0.0
      %797 = vmatprep.subr.mxu0 0.0
      %798 = vmatpush1.msra.mxu0 0.0
      %799 = vmatprep.subr.mxu0 0.0
      %800 = vmatpush1.msra.mxu0 0.0
      %801 = vmatprep.subr.mxu0 0.0
      %802 = vmatpush1.msra.mxu0 0.0
      %803 = vmatprep.subr.mxu0 0.0
      %804 = vmatpush1.msra.mxu0 0.0
      %805 = vmatprep.subr.mxu0 0.0
      %806 = vmatpush1.msra.mxu0 0.0
      %807 = vmatprep.subr.mxu0 0.0
      %808 = vmatpush1.msra.mxu0 0.0
      %809 = vmatprep.subr.mxu0 0.0
      %810 = vmatpush1.msra.mxu0 0.0
      %811 = vmatprep.subr.mxu0 0.0
      %812 = vmatpush1.msra.mxu0 0.0
      %813 = vmatprep.subr.mxu0 0.0
      %814 = vmatpush1.msra.mxu0 0.0
      %815 = vmatprep.subr.mxu0 0.0
      %816 = vmatpush1.msra.mxu0 0.0
      %817 = vmatprep.subr.mxu0 0.0
      %818 = vmatpush1.msra.mxu0 0.0
      %819 = vmatprep.subr.mxu0 0.0
      %820 = vmatpush1.msra.mxu0 0.0
      %821 = vmatprep.subr.mxu0 0.0
      %822 = vmatpush1.msra.mxu0 0.0
      %823 = vmatprep.subr.mxu0 0.0
      %824 = vmatpush1.msra.mxu0 0.0
      %825 = vmatprep.subr.mxu0 0.0
      %826 = vmatpush1.msra.mxu0 0.0
      %827 = vmatprep.mubr.f32.mxu0 0.0
      %v828 = vand.u32 %v321, 4294901760
      %v829 = vsub.f32 %v321, %v828
      %v830 = vand.u32 %v829, 4294901760
      %831 = vmatmul.mubr.f32.gmra.mrb[0].mxu0 %v830
      %v832 = vpop.f32.mrb[0].mxu0
      %v833 = vadd.f32 %v707, %v832
      %v834 = vpop.f32.mrb[0].mxu0
      %835 = vmatprep.mubr.f32.mxu0 0.0
      %v836 = vand.u32 %v324, 4294901760
      %v837 = vsub.f32 %v324, %v836
      %v838 = vand.u32 %v837, 4294901760
      %839 = vmatmul.mubr.f32.gmra.mrb[0].mxu0 %v838
      %v840 = vpop.f32.mrb[0].mxu0
      %v841 = vadd.f32 %v714, %v840
      %v842 = vpop.f32.mrb[0].mxu0
      %843 = vmatprep.mubr.f32.mxu0 0.0
      %v844 = vand.u32 %v327, 4294901760
      %v845 = vsub.f32 %v327, %v844
      %v846 = vand.u32 %v845, 4294901760
      %847 = vmatmul.mubr.f32.gmra.mrb[0].mxu0 %v846
      %v848 = vpop.f32.mrb[0].mxu0
      %v849 = vadd.f32 %v721, %v848
      %v850 = vpop.f32.mrb[0].mxu0
      %851 = vmatprep.mubr.f32.mxu0 0.0
      %v852 = vand.u32 %v330, 4294901760
      %v853 = vsub.f32 %v330, %v852
      %v854 = vand.u32 %v853, 4294901760
      %855 = vmatmul.mubr.f32.gmra.mrb[0].mxu0 %v854
      %v856 = vpop.f32.mrb[0].mxu0
      %v857 = vadd.f32 %v728, %v856
      %v858 = vpop.f32.mrb[0].mxu0
      %859 = vmatprep.mubr.f32.mxu0 0.0
      %v860 = vand.u32 %v333, 4294901760
      %v861 = vsub.f32 %v333, %v860
      %v862 = vand.u32 %v861, 4294901760
      %863 = vmatmul.mubr.f32.gmra.mrb[0].mxu0 %v862
      %v864 = vpop.f32.mrb[0].mxu0
      %v865 = vadd.f32 %v735, %v864
      %v866 = vpop.f32.mrb[0].mxu0
      %867 = vmatprep.mubr.f32.mxu0 0.0
      %v868 = vand.u32 %v336, 4294901760
      %v869 = vsub.f32 %v336, %v868
      %v870 = vand.u32 %v869, 4294901760
      %871 = vmatmul.mubr.f32.gmra.mrb[0].mxu0 %v870
      %v872 = vpop.f32.mrb[0].mxu0
      %v873 = vadd.f32 %v742, %v872
      %v874 = vpop.f32.mrb[0].mxu0
      %875 = vmatprep.mubr.f32.mxu0 0.0
      %v876 = vand.u32 %v339, 4294901760
      %v877 = vsub.f32 %v339, %v876
      %v878 = vand.u32 %v877, 4294901760
      %879 = vmatmul.mubr.f32.gmra.mrb[0].mxu0 %v878
      %v880 = vpop.f32.mrb[0].mxu0
      %v881 = vadd.f32 %v749, %v880
      %v882 = vpop.f32.mrb[0].mxu0
      %883 = vmatprep.mubr.f32.mxu0 0.0
      %v884 = vand.u32 %v342, 4294901760
      %v885 = vsub.f32 %v342, %v884
      %v886 = vand.u32 %v885, 4294901760
      %887 = vmatmul.mubr.f32.gmra.mrb[0].mxu0 %v886
      %v888 = vpop.f32.mrb[0].mxu0
      %v889 = vadd.f32 %v756, %v888
      %v890 = vpop.f32.mrb[0].mxu0
      %891 = vdwg.mxu0
      %892 = vmatprep.subr.mxu0 0.0
      %v893 = vand.u32 %v315, 4294901760
      %v894 = vsub.f32 %v315, %v893
      %v895 = vand.u32 %v894, 4294901760
      %896 = vmatpush1.msra.mxu0 %v895
      %897 = vmatprep.subr.mxu0 0.0
      %v898 = vand.u32 %v316, 4294901760
      %v899 = vsub.f32 %v316, %v898
      %v900 = vand.u32 %v899, 4294901760
      %901 = vmatpush1.msra.mxu0 %v900
      %902 = vmatprep.subr.mxu0 0.0
      %v903 = vand.u32 %v317, 4294901760
      %v904 = vsub.f32 %v317, %v903
      %v905 = vand.u32 %v904, 4294901760
      %906 = vmatpush1.msra.mxu0 %v905
      %907 = vmatprep.subr.mxu0 0.0
      %v908 = vand.u32 %v346, 4294901760
      %v909 = vsub.f32 %v346, %v908
      %v910 = vand.u32 %v909, 4294901760
      %911 = vmatpush1.msra.mxu0 %v910
      %912 = vmatprep.subr.mxu0 0.0
      %913 = vmatpush1.msra.mxu0 0.0
      %914 = vmatprep.subr.mxu0 0.0
      %915 = vmatpush1.msra.mxu0 0.0
      %916 = vmatprep.subr.mxu0 0.0
      %917 = vmatpush1.msra.mxu0 0.0
      %918 = vmatprep.subr.mxu0 0.0
      %919 = vmatpush1.msra.mxu0 0.0
      %920 = vmatprep.subr.mxu0 0.0
      %921 = vmatpush1.msra.mxu0 0.0
      %922 = vmatprep.subr.mxu0 0.0
      %923 = vmatpush1.msra.mxu0 0.0
      %924 = vmatprep.subr.mxu0 0.0
      %925 = vmatpush1.msra.mxu0 0.0
      %926 = vmatprep.subr.mxu0 0.0
      %927 = vmatpush1.msra.mxu0 0.0
      %928 = vmatprep.subr.mxu0 0.0
      %929 = vmatpush1.msra.mxu0 0.0
      %930 = vmatprep.subr.mxu0 0.0
      %931 = vmatpush1.msra.mxu0 0.0
      %932 = vmatprep.subr.mxu0 0.0
      %933 = vmatpush1.msra.mxu0 0.0
      %934 = vmatprep.subr.mxu0 0.0
      %935 = vmatpush1.msra.mxu0 0.0
      %936 = vmatprep.subr.mxu0 0.0
      %937 = vmatpush1.msra.mxu0 0.0
      %938 = vmatprep.subr.mxu0 0.0
      %939 = vmatpush1.msra.mxu0 0.0
      %940 = vmatprep.subr.mxu0 0.0
      %941 = vmatpush1.msra.mxu0 0.0
      %942 = vmatprep.subr.mxu0 0.0
      %943 = vmatpush1.msra.mxu0 0.0
      %944 = vmatprep.subr.mxu0 0.0
      %945 = vmatpush1.msra.mxu0 0.0
      %946 = vmatprep.subr.mxu0 0.0
      %947 = vmatpush1.msra.mxu0 0.0
      %948 = vmatprep.subr.mxu0 0.0
      %949 = vmatpush1.msra.mxu0 0.0
      %950 = vmatprep.subr.mxu0 0.0
      %951 = vmatpush1.msra.mxu0 0.0
      %952 = vmatprep.subr.mxu0 0.0
      %953 = vmatpush1.msra.mxu0 0.0
      %954 = vmatprep.subr.mxu0 0.0
      %955 = vmatpush1.msra.mxu0 0.0
      %956 = vmatprep.subr.mxu0 0.0
      %957 = vmatpush1.msra.mxu0 0.0
      %958 = vmatprep.subr.mxu0 0.0
      %959 = vmatpush1.msra.mxu0 0.0
      %960 = vmatprep.subr.mxu0 0.0
      %961 = vmatpush1.msra.mxu0 0.0
      %962 = vmatprep.subr.mxu0 0.0
      %963 = vmatpush1.msra.mxu0 0.0
      %964 = vmatprep.subr.mxu0 0.0
      %965 = vmatpush1.msra.mxu0 0.0
      %966 = vmatprep.subr.mxu0 0.0
      %967 = vmatpush1.msra.mxu0 0.0
      %968 = vmatprep.mubr.f32.mxu0 0.0
      %v969 = vand.u32 %v321, 4294901760
      %970 = vmatmul.mubr.f32.gmra.mrb[0].mxu0 %v969
      %v971 = vpop.f32.mrb[0].mxu0
      %v972 = vadd.f32 %v833, %v971
      %v973 = vpop.f32.mrb[0].mxu0
      %974 = vmatprep.mubr.f32.mxu0 0.0
      %v975 = vand.u32 %v324, 4294901760
      %976 = vmatmul.mubr.f32.gmra.mrb[0].mxu0 %v975
      %v977 = vpop.f32.mrb[0].mxu0
      %v978 = vadd.f32 %v841, %v977
      %v979 = vpop.f32.mrb[0].mxu0
      %980 = vmatprep.mubr.f32.mxu0 0.0
      %v981 = vand.u32 %v327, 4294901760
      %982 = vmatmul.mubr.f32.gmra.mrb[0].mxu0 %v981
      %v983 = vpop.f32.mrb[0].mxu0
      %v984 = vadd.f32 %v849, %v983
      %v985 = vpop.f32.mrb[0].mxu0
      %986 = vmatprep.mubr.f32.mxu0 0.0
      %v987 = vand.u32 %v330, 4294901760
      %988 = vmatmul.mubr.f32.gmra.mrb[0].mxu0 %v987
      %v989 = vpop.f32.mrb[0].mxu0
      %v990 = vadd.f32 %v857, %v989
      %v991 = vpop.f32.mrb[0].mxu0
      %992 = vmatprep.mubr.f32.mxu0 0.0
      %v993 = vand.u32 %v333, 4294901760
      %994 = vmatmul.mubr.f32.gmra.mrb[0].mxu0 %v993
      %v995 = vpop.f32.mrb[0].mxu0
      %v996 = vadd.f32 %v865, %v995
      %v997 = vpop.f32.mrb[0].mxu0
      %998 = vmatprep.mubr.f32.mxu0 0.0
      %v999 = vand.u32 %v336, 4294901760
      %1000 = vmatmul.mubr.f32.gmra.mrb[0].mxu0 %v999
      %v1001 = vpop.f32.mrb[0].mxu0
      %v1002 = vadd.f32 %v873, %v1001
      %v1003 = vpop.f32.mrb[0].mxu0
      %1004 = vmatprep.mubr.f32.mxu0 0.0
      %v1005 = vand.u32 %v339, 4294901760
      %1006 = vmatmul.mubr.f32.gmra.mrb[0].mxu0 %v1005
      %v1007 = vpop.f32.mrb[0].mxu0
      %v1008 = vadd.f32 %v881, %v1007
      %v1009 = vpop.f32.mrb[0].mxu0
      %1010 = vmatprep.mubr.f32.mxu0 0.0
      %v1011 = vand.u32 %v342, 4294901760
      %1012 = vmatmul.mubr.f32.gmra.mrb[0].mxu0 %v1011
      %v1013 = vpop.f32.mrb[0].mxu0
      %v1014 = vadd.f32 %v889, %v1013
      %v1015 = vpop.f32.mrb[0].mxu0
      %1016 = vdwg.mxu0
      %1017 = vmatprep.subr.mxu0 0.0
      %v1018 = vand.u32 %v315, 4294901760
      %1019 = vmatpush1.msra.mxu0 %v1018
      %1020 = vmatprep.subr.mxu0 0.0
      %v1021 = vand.u32 %v316, 4294901760
      %1022 = vmatpush1.msra.mxu0 %v1021
      %1023 = vmatprep.subr.mxu0 0.0
      %v1024 = vand.u32 %v317, 4294901760
      %1025 = vmatpush1.msra.mxu0 %v1024
      %1026 = vmatprep.subr.mxu0 0.0
      %v1027 = vand.u32 %v346, 4294901760
      %1028 = vmatpush1.msra.mxu0 %v1027
      %1029 = vmatprep.subr.mxu0 0.0
      %1030 = vmatpush1.msra.mxu0 0.0
      %1031 = vmatprep.subr.mxu0 0.0
      %1032 = vmatpush1.msra.mxu0 0.0
      %1033 = vmatprep.subr.mxu0 0.0
      %1034 = vmatpush1.msra.mxu0 0.0
      %1035 = vmatprep.subr.mxu0 0.0
      %1036 = vmatpush1.msra.mxu0 0.0
      %1037 = vmatprep.subr.mxu0 0.0
      %1038 = vmatpush1.msra.mxu0 0.0
      %1039 = vmatprep.subr.mxu0 0.0
      %1040 = vmatpush1.msra.mxu0 0.0
      %1041 = vmatprep.subr.mxu0 0.0
      %1042 = vmatpush1.msra.mxu0 0.0
      %1043 = vmatprep.subr.mxu0 0.0
      %1044 = vmatpush1.msra.mxu0 0.0
      %1045 = vmatprep.subr.mxu0 0.0
      %1046 = vmatpush1.msra.mxu0 0.0
      %1047 = vmatprep.subr.mxu0 0.0
      %1048 = vmatpush1.msra.mxu0 0.0
      %1049 = vmatprep.subr.mxu0 0.0
      %1050 = vmatpush1.msra.mxu0 0.0
      %1051 = vmatprep.subr.mxu0 0.0
      %1052 = vmatpush1.msra.mxu0 0.0
      %1053 = vmatprep.subr.mxu0 0.0
      %1054 = vmatpush1.msra.mxu0 0.0
      %1055 = vmatprep.subr.mxu0 0.0
      %1056 = vmatpush1.msra.mxu0 0.0
      %1057 = vmatprep.subr.mxu0 0.0
      %1058 = vmatpush1.msra.mxu0 0.0
      %1059 = vmatprep.subr.mxu0 0.0
      %1060 = vmatpush1.msra.mxu0 0.0
      %1061 = vmatprep.subr.mxu0 0.0
      %1062 = vmatpush1.msra.mxu0 0.0
      %1063 = vmatprep.subr.mxu0 0.0
      %1064 = vmatpush1.msra.mxu0 0.0
      %1065 = vmatprep.subr.mxu0 0.0
      %1066 = vmatpush1.msra.mxu0 0.0
      %1067 = vmatprep.subr.mxu0 0.0
      %1068 = vmatpush1.msra.mxu0 0.0
      %1069 = vmatprep.subr.mxu0 0.0
      %1070 = vmatpush1.msra.mxu0 0.0
      %1071 = vmatprep.subr.mxu0 0.0
      %1072 = vmatpush1.msra.mxu0 0.0
      %1073 = vmatprep.subr.mxu0 0.0
      %1074 = vmatpush1.msra.mxu0 0.0
      %1075 = vmatprep.subr.mxu0 0.0
      %1076 = vmatpush1.msra.mxu0 0.0
      %1077 = vmatprep.subr.mxu0 0.0
      %1078 = vmatpush1.msra.mxu0 0.0
      %1079 = vmatprep.subr.mxu0 0.0
      %1080 = vmatpush1.msra.mxu0 0.0
      %1081 = vmatprep.subr.mxu0 0.0
      %1082 = vmatpush1.msra.mxu0 0.0
      %1083 = vmatprep.subr.mxu0 0.0
      %1084 = vmatpush1.msra.mxu0 0.0
      %1085 = vmatprep.mubr.f32.mxu0 0.0
      %v1086 = vand.u32 %v321, 4294901760
      %1087 = vmatmul.mubr.f32.gmra.mrb[0].mxu0 %v1086
      %v1088 = vpop.f32.mrb[0].mxu0
      %v1089 = vadd.f32 %v972, %v1088
      %v1090 = vpop.f32.mrb[0].mxu0
      %1091 = vmatprep.mubr.f32.mxu0 0.0
      %v1092 = vand.u32 %v324, 4294901760
      %1093 = vmatmul.mubr.f32.gmra.mrb[0].mxu0 %v1092
      %v1094 = vpop.f32.mrb[0].mxu0
      %v1095 = vadd.f32 %v978, %v1094
      %v1096 = vpop.f32.mrb[0].mxu0
      %1097 = vmatprep.mubr.f32.mxu0 0.0
      %v1098 = vand.u32 %v327, 4294901760
      %1099 = vmatmul.mubr.f32.gmra.mrb[0].mxu0 %v1098
      %v1100 = vpop.f32.mrb[0].mxu0
      %v1101 = vadd.f32 %v984, %v1100
      %v1102 = vpop.f32.mrb[0].mxu0
      %1103 = vmatprep.mubr.f32.mxu0 0.0
      %v1104 = vand.u32 %v330, 4294901760
      %1105 = vmatmul.mubr.f32.gmra.mrb[0].mxu0 %v1104
      %v1106 = vpop.f32.mrb[0].mxu0
      %v1107 = vadd.f32 %v990, %v1106
      %v1108 = vpop.f32.mrb[0].mxu0
      %1109 = vmatprep.mubr.f32.mxu0 0.0
      %v1110 = vand.u32 %v333, 4294901760
      %1111 = vmatmul.mubr.f32.gmra.mrb[0].mxu0 %v1110
      %v1112 = vpop.f32.mrb[0].mxu0
      %v1113 = vadd.f32 %v996, %v1112
      %v1114 = vpop.f32.mrb[0].mxu0
      %1115 = vmatprep.mubr.f32.mxu0 0.0
      %v1116 = vand.u32 %v336, 4294901760
      %1117 = vmatmul.mubr.f32.gmra.mrb[0].mxu0 %v1116
      %v1118 = vpop.f32.mrb[0].mxu0
      %v1119 = vadd.f32 %v1002, %v1118
      %v1120 = vpop.f32.mrb[0].mxu0
      %1121 = vmatprep.mubr.f32.mxu0 0.0
      %v1122 = vand.u32 %v339, 4294901760
      %1123 = vmatmul.mubr.f32.gmra.mrb[0].mxu0 %v1122
      %v1124 = vpop.f32.mrb[0].mxu0
      %v1125 = vadd.f32 %v1008, %v1124
      %v1126 = vpop.f32.mrb[0].mxu0
      %1127 = vmatprep.mubr.f32.mxu0 0.0
      %v1128 = vand.u32 %v342, 4294901760
      %1129 = vmatmul.mubr.f32.gmra.mrb[0].mxu0 %v1128
      %v1130 = vpop.f32.mrb[0].mxu0
      %v1131 = vadd.f32 %v1014, %v1130
      %v1132 = vpop.f32.mrb[0].mxu0
      %1133 = vdwg.mxu0
      %vm1134 = vcmask 130048
      %1135 = vst.msk [vmem:[#allocation2] sm:$0xff] %vm1134, %v1089
      %1136 = vst.msk [vmem:[#allocation2 + $0x8] sm:$0xff] %vm1134, %v1095
      %1137 = vst.msk [vmem:[#allocation2 + $0x10] sm:$0xff] %vm1134, %v1101
      %1138 = vst.msk [vmem:[#allocation2 + $0x18] sm:$0xff] %vm1134, %v1107
      %1139 = vst.msk [vmem:[#allocation2 + $0x20] sm:$0xff] %vm1134, %v1113
      %1140 = vst.msk [vmem:[#allocation2 + $0x28] sm:$0xff] %vm1134, %v1119
      %1141 = vst.msk [vmem:[#allocation2 + $0x30] sm:$0xff] %vm1134, %v1125
      %1142 = vst.msk [vmem:[#allocation2 + $0x38] sm:$0xff] %vm1134, %v1131
      %v1143 = vld [vmem:[#allocation2] sm:$0xff]
      %v1144 = vld [vmem:[#allocation2 + $0x8] sm:$0xff]
      %v1145 = vld [vmem:[#allocation2 + $0x10] sm:$0xff]
      %v1146 = vld [vmem:[#allocation2 + $0x18] sm:$0xff]
      %v1147 = vld [vmem:[#allocation2 + $0x20] sm:$0xff]
      %v1148 = vld [vmem:[#allocation2 + $0x28] sm:$0xff]
      %v1149 = vld [vmem:[#allocation2 + $0x30] sm:$0xff]
      %s1150 = scalar_lea.vmem %s277, 8
      %v1151 = vld [vmem:[%s1150] sm:$0xff]
      %v1152 = vld [vmem:[%s1150 + $0x8] sm:$0xff]
      %v1153 = vld [vmem:[%s1150 + $0x10] sm:$0xff]
      %v1154 = vld [vmem:[%s1150 + $0x18] sm:$0xff]
      %v1155 = vld [vmem:[%s1150 + $0x20] sm:$0xff]
      %v1156 = vld [vmem:[%s1150 + $0x28] sm:$0xff]
      %v1157 = vld [vmem:[%s1150 + $0x30] sm:$0xff]
      %s1158 = scalar_lea.vmem %s2, 32
      %v1159 = vld [vmem:[%s1158] sm:$0xff]
      %v1160 = vld [vmem:[%s1158 + $0x8] sm:$0xff]
      %v1161 = vld [vmem:[%s1158 + $0x10] sm:$0xff]
      %v1162 = vld [vmem:[%s1158 + $0x18] sm:$0x7]
      %v1164 = vsel %vm319, %v1151, 0
      %v1167 = vsel %vm319, %v1152, 0
      %v1170 = vsel %vm319, %v1153, 0
      %v1173 = vsel %vm319, %v1154, 0
      %v1176 = vsel %vm319, %v1155, 0
      %v1179 = vsel %vm319, %v1156, 0
      %v1182 = vsel %vm319, %v1157, 0
      %v1185 = vsel %vm344, %v1162, 0
      %1187 = vmatprep.subr.mxu0 0.0
      %v1188 = vand.u32 %v1159, 4294901760
      %1189 = vmatpush1.msra.mxu0 %v1188
      %1190 = vmatprep.subr.mxu0 0.0
      %v1191 = vand.u32 %v1160, 4294901760
      %1192 = vmatpush1.msra.mxu0 %v1191
      %1193 = vmatprep.subr.mxu0 0.0
      %v1194 = vand.u32 %v1161, 4294901760
      %1195 = vmatpush1.msra.mxu0 %v1194
      %1196 = vmatprep.subr.mxu0 0.0
      %v1197 = vand.u32 %v1185, 4294901760
      %1198 = vmatpush1.msra.mxu0 %v1197
      %1199 = vmatprep.subr.mxu0 0.0
      %1200 = vmatpush1.msra.mxu0 0.0
      %1201 = vmatprep.subr.mxu0 0.0
      %1202 = vmatpush1.msra.mxu0 0.0
      %1203 = vmatprep.subr.mxu0 0.0
      %1204 = vmatpush1.msra.mxu0 0.0
      %1205 = vmatprep.subr.mxu0 0.0
      %1206 = vmatpush1.msra.mxu0 0.0
      %1207 = vmatprep.subr.mxu0 0.0
      %1208 = vmatpush1.msra.mxu0 0.0
      %1209 = vmatprep.subr.mxu0 0.0
      %1210 = vmatpush1.msra.mxu0 0.0
      %1211 = vmatprep.subr.mxu0 0.0
      %1212 = vmatpush1.msra.mxu0 0.0
      %1213 = vmatprep.subr.mxu0 0.0
      %1214 = vmatpush1.msra.mxu0 0.0
      %1215 = vmatprep.subr.mxu0 0.0
      %1216 = vmatpush1.msra.mxu0 0.0
      %1217 = vmatprep.subr.mxu0 0.0
      %1218 = vmatpush1.msra.mxu0 0.0
      %1219 = vmatprep.subr.mxu0 0.0
      %1220 = vmatpush1.msra.mxu0 0.0
      %1221 = vmatprep.subr.mxu0 0.0
      %1222 = vmatpush1.msra.mxu0 0.0
      %1223 = vmatprep.subr.mxu0 0.0
      %1224 = vmatpush1.msra.mxu0 0.0
      %1225 = vmatprep.subr.mxu0 0.0
      %1226 = vmatpush1.msra.mxu0 0.0
      %1227 = vmatprep.subr.mxu0 0.0
      %1228 = vmatpush1.msra.mxu0 0.0
      %1229 = vmatprep.subr.mxu0 0.0
      %1230 = vmatpush1.msra.mxu0 0.0
      %1231 = vmatprep.subr.mxu0 0.0
      %1232 = vmatpush1.msra.mxu0 0.0
      %1233 = vmatprep.subr.mxu0 0.0
      %1234 = vmatpush1.msra.mxu0 0.0
      %1235 = vmatprep.subr.mxu0 0.0
      %1236 = vmatpush1.msra.mxu0 0.0
      %1237 = vmatprep.subr.mxu0 0.0
      %1238 = vmatpush1.msra.mxu0 0.0
      %1239 = vmatprep.subr.mxu0 0.0
      %1240 = vmatpush1.msra.mxu0 0.0
      %1241 = vmatprep.subr.mxu0 0.0
      %1242 = vmatpush1.msra.mxu0 0.0
      %1243 = vmatprep.subr.mxu0 0.0
      %1244 = vmatpush1.msra.mxu0 0.0
      %1245 = vmatprep.subr.mxu0 0.0
      %1246 = vmatpush1.msra.mxu0 0.0
      %1247 = vmatprep.subr.mxu0 0.0
      %1248 = vmatpush1.msra.mxu0 0.0
      %1249 = vmatprep.subr.mxu0 0.0
      %1250 = vmatpush1.msra.mxu0 0.0
      %1251 = vmatprep.subr.mxu0 0.0
      %1252 = vmatpush1.msra.mxu0 0.0
      %1253 = vmatprep.subr.mxu0 0.0
      %1254 = vmatpush1.msra.mxu0 0.0
      %1255 = vmatprep.mubr.f32.mxu0 0.0
      %v1256 = vand.u32 %v1164, 4294901760
      %v1257 = vsub.f32 %v1164, %v1256
      %v1258 = vand.u32 %v1257, 4294901760
      %v1259 = vsub.f32 %v1257, %v1258
      %v1260 = vand.u32 %v1259, 4294901760
      %1261 = vmatmul.mubr.f32.gmra.mrb[0].mxu0 %v1260
      %v1262 = vpop.f32.mrb[0].mxu0
      %v1263 = vadd.f32 0.0, %v1262
      %v1264 = vpop.f32.mrb[0].mxu0
      %1265 = vmatprep.mubr.f32.mxu0 0.0
      %v1266 = vand.u32 %v1167, 4294901760
      %v1267 = vsub.f32 %v1167, %v1266
      %v1268 = vand.u32 %v1267, 4294901760
      %v1269 = vsub.f32 %v1267, %v1268
      %v1270 = vand.u32 %v1269, 4294901760
      %1271 = vmatmul.mubr.f32.gmra.mrb[0].mxu0 %v1270
      %v1272 = vpop.f32.mrb[0].mxu0
      %v1273 = vadd.f32 0.0, %v1272
      %v1274 = vpop.f32.mrb[0].mxu0
      %1275 = vmatprep.mubr.f32.mxu0 0.0
      %v1276 = vand.u32 %v1170, 4294901760
      %v1277 = vsub.f32 %v1170, %v1276
      %v1278 = vand.u32 %v1277, 4294901760
      %v1279 = vsub.f32 %v1277, %v1278
      %v1280 = vand.u32 %v1279, 4294901760
      %1281 = vmatmul.mubr.f32.gmra.mrb[0].mxu0 %v1280
      %v1282 = vpop.f32.mrb[0].mxu0
      %v1283 = vadd.f32 0.0, %v1282
      %v1284 = vpop.f32.mrb[0].mxu0
      %1285 = vmatprep.mubr.f32.mxu0 0.0
      %v1286 = vand.u32 %v1173, 4294901760
      %v1287 = vsub.f32 %v1173, %v1286
      %v1288 = vand.u32 %v1287, 4294901760
      %v1289 = vsub.f32 %v1287, %v1288
      %v1290 = vand.u32 %v1289, 4294901760
      %1291 = vmatmul.mubr.f32.gmra.mrb[0].mxu0 %v1290
      %v1292 = vpop.f32.mrb[0].mxu0
      %v1293 = vadd.f32 0.0, %v1292
      %v1294 = vpop.f32.mrb[0].mxu0
      %1295 = vmatprep.mubr.f32.mxu0 0.0
      %v1296 = vand.u32 %v1176, 4294901760
      %v1297 = vsub.f32 %v1176, %v1296
      %v1298 = vand.u32 %v1297, 4294901760
      %v1299 = vsub.f32 %v1297, %v1298
      %v1300 = vand.u32 %v1299, 4294901760
      %1301 = vmatmul.mubr.f32.gmra.mrb[0].mxu0 %v1300
      %v1302 = vpop.f32.mrb[0].mxu0
      %v1303 = vadd.f32 0.0, %v1302
      %v1304 = vpop.f32.mrb[0].mxu0
      %1305 = vmatprep.mubr.f32.mxu0 0.0
      %v1306 = vand.u32 %v1179, 4294901760
      %v1307 = vsub.f32 %v1179, %v1306
      %v1308 = vand.u32 %v1307, 4294901760
      %v1309 = vsub.f32 %v1307, %v1308
      %v1310 = vand.u32 %v1309, 4294901760
      %1311 = vmatmul.mubr.f32.gmra.mrb[0].mxu0 %v1310
      %v1312 = vpop.f32.mrb[0].mxu0
      %v1313 = vadd.f32 0.0, %v1312
      %v1314 = vpop.f32.mrb[0].mxu0
      %1315 = vmatprep.mubr.f32.mxu0 0.0
      %v1316 = vand.u32 %v1182, 4294901760
      %v1317 = vsub.f32 %v1182, %v1316
      %v1318 = vand.u32 %v1317, 4294901760
      %v1319 = vsub.f32 %v1317, %v1318
      %v1320 = vand.u32 %v1319, 4294901760
      %1321 = vmatmul.mubr.f32.gmra.mrb[0].mxu0 %v1320
      %v1322 = vpop.f32.mrb[0].mxu0
      %v1323 = vadd.f32 0.0, %v1322
      %v1324 = vpop.f32.mrb[0].mxu0
      %1325 = vdwg.mxu0
      %1326 = vmatprep.subr.mxu0 0.0
      %v1327 = vand.u32 %v1159, 4294901760
      %v1328 = vsub.f32 %v1159, %v1327
      %v1329 = vand.u32 %v1328, 4294901760
      %v1330 = vsub.f32 %v1328, %v1329
      %v1331 = vand.u32 %v1330, 4294901760
      %1332 = vmatpush1.msra.mxu0 %v1331
      %1333 = vmatprep.subr.mxu0 0.0
      %v1334 = vand.u32 %v1160, 4294901760
      %v1335 = vsub.f32 %v1160, %v1334
      %v1336 = vand.u32 %v1335, 4294901760
      %v1337 = vsub.f32 %v1335, %v1336
      %v1338 = vand.u32 %v1337, 4294901760
      %1339 = vmatpush1.msra.mxu0 %v1338
      %1340 = vmatprep.subr.mxu0 0.0
      %v1341 = vand.u32 %v1161, 4294901760
      %v1342 = vsub.f32 %v1161, %v1341
      %v1343 = vand.u32 %v1342, 4294901760
      %v1344 = vsub.f32 %v1342, %v1343
      %v1345 = vand.u32 %v1344, 4294901760
      %1346 = vmatpush1.msra.mxu0 %v1345
      %1347 = vmatprep.subr.mxu0 0.0
      %v1348 = vand.u32 %v1185, 4294901760
      %v1349 = vsub.f32 %v1185, %v1348
      %v1350 = vand.u32 %v1349, 4294901760
      %v1351 = vsub.f32 %v1349, %v1350
      %v1352 = vand.u32 %v1351, 4294901760
      %1353 = vmatpush1.msra.mxu0 %v1352
      %1354 = vmatprep.subr.mxu0 0.0
      %1355 = vmatpush1.msra.mxu0 0.0
      %1356 = vmatprep.subr.mxu0 0.0
      %1357 = vmatpush1.msra.mxu0 0.0
      %1358 = vmatprep.subr.mxu0 0.0
      %1359 = vmatpush1.msra.mxu0 0.0
      %1360 = vmatprep.subr.mxu0 0.0
      %1361 = vmatpush1.msra.mxu0 0.0
      %1362 = vmatprep.subr.mxu0 0.0
      %1363 = vmatpush1.msra.mxu0 0.0
      %1364 = vmatprep.subr.mxu0 0.0
      %1365 = vmatpush1.msra.mxu0 0.0
      %1366 = vmatprep.subr.mxu0 0.0
      %1367 = vmatpush1.msra.mxu0 0.0
      %1368 = vmatprep.subr.mxu0 0.0
      %1369 = vmatpush1.msra.mxu0 0.0
      %1370 = vmatprep.subr.mxu0 0.0
      %1371 = vmatpush1.msra.mxu0 0.0
      %1372 = vmatprep.subr.mxu0 0.0
      %1373 = vmatpush1.msra.mxu0 0.0
      %1374 = vmatprep.subr.mxu0 0.0
      %1375 = vmatpush1.msra.mxu0 0.0
      %1376 = vmatprep.subr.mxu0 0.0
      %1377 = vmatpush1.msra.mxu0 0.0
      %1378 = vmatprep.subr.mxu0 0.0
      %1379 = vmatpush1.msra.mxu0 0.0
      %1380 = vmatprep.subr.mxu0 0.0
      %1381 = vmatpush1.msra.mxu0 0.0
      %1382 = vmatprep.subr.mxu0 0.0
      %1383 = vmatpush1.msra.mxu0 0.0
      %1384 = vmatprep.subr.mxu0 0.0
      %1385 = vmatpush1.msra.mxu0 0.0
      %1386 = vmatprep.subr.mxu0 0.0
      %1387 = vmatpush1.msra.mxu0 0.0
      %1388 = vmatprep.subr.mxu0 0.0
      %1389 = vmatpush1.msra.mxu0 0.0
      %1390 = vmatprep.subr.mxu0 0.0
      %1391 = vmatpush1.msra.mxu0 0.0
      %1392 = vmatprep.subr.mxu0 0.0
      %1393 = vmatpush1.msra.mxu0 0.0
      %1394 = vmatprep.subr.mxu0 0.0
      %1395 = vmatpush1.msra.mxu0 0.0
      %1396 = vmatprep.subr.mxu0 0.0
      %1397 = vmatpush1.msra.mxu0 0.0
      %1398 = vmatprep.subr.mxu0 0.0
      %1399 = vmatpush1.msra.mxu0 0.0
      %1400 = vmatprep.subr.mxu0 0.0
      %1401 = vmatpush1.msra.mxu0 0.0
      %1402 = vmatprep.subr.mxu0 0.0
      %1403 = vmatpush1.msra.mxu0 0.0
      %1404 = vmatprep.subr.mxu0 0.0
      %1405 = vmatpush1.msra.mxu0 0.0
      %1406 = vmatprep.subr.mxu0 0.0
      %1407 = vmatpush1.msra.mxu0 0.0
      %1408 = vmatprep.subr.mxu0 0.0
      %1409 = vmatpush1.msra.mxu0 0.0
      %1410 = vmatprep.mubr.f32.mxu0 0.0
      %v1411 = vand.u32 %v1164, 4294901760
      %1412 = vmatmul.mubr.f32.gmra.mrb[0].mxu0 %v1411
      %v1413 = vpop.f32.mrb[0].mxu0
      %v1414 = vadd.f32 %v1263, %v1413
      %v1415 = vpop.f32.mrb[0].mxu0
      %1416 = vmatprep.mubr.f32.mxu0 0.0
      %v1417 = vand.u32 %v1167, 4294901760
      %1418 = vmatmul.mubr.f32.gmra.mrb[0].mxu0 %v1417
      %v1419 = vpop.f32.mrb[0].mxu0
      %v1420 = vadd.f32 %v1273, %v1419
      %v1421 = vpop.f32.mrb[0].mxu0
      %1422 = vmatprep.mubr.f32.mxu0 0.0
      %v1423 = vand.u32 %v1170, 4294901760
      %1424 = vmatmul.mubr.f32.gmra.mrb[0].mxu0 %v1423
      %v1425 = vpop.f32.mrb[0].mxu0
      %v1426 = vadd.f32 %v1283, %v1425
      %v1427 = vpop.f32.mrb[0].mxu0
      %1428 = vmatprep.mubr.f32.mxu0 0.0
      %v1429 = vand.u32 %v1173, 4294901760
      %1430 = vmatmul.mubr.f32.gmra.mrb[0].mxu0 %v1429
      %v1431 = vpop.f32.mrb[0].mxu0
      %v1432 = vadd.f32 %v1293, %v1431
      %v1433 = vpop.f32.mrb[0].mxu0
      %1434 = vmatprep.mubr.f32.mxu0 0.0
      %v1435 = vand.u32 %v1176, 4294901760
      %1436 = vmatmul.mubr.f32.gmra.mrb[0].mxu0 %v1435
      %v1437 = vpop.f32.mrb[0].mxu0
      %v1438 = vadd.f32 %v1303, %v1437
      %v1439 = vpop.f32.mrb[0].mxu0
      %1440 = vmatprep.mubr.f32.mxu0 0.0
      %v1441 = vand.u32 %v1179, 4294901760
      %1442 = vmatmul.mubr.f32.gmra.mrb[0].mxu0 %v1441
      %v1443 = vpop.f32.mrb[0].mxu0
      %v1444 = vadd.f32 %v1313, %v1443
      %v1445 = vpop.f32.mrb[0].mxu0
      %1446 = vmatprep.mubr.f32.mxu0 0.0
      %v1447 = vand.u32 %v1182, 4294901760
      %1448 = vmatmul.mubr.f32.gmra.mrb[0].mxu0 %v1447
      %v1449 = vpop.f32.mrb[0].mxu0
      %v1450 = vadd.f32 %v1323, %v1449
      %v1451 = vpop.f32.mrb[0].mxu0
      %1452 = vdwg.mxu0
      %1453 = vmatprep.subr.mxu0 0.0
      %v1454 = vand.u32 %v1159, 4294901760
      %v1455 = vsub.f32 %v1159, %v1454
      %1456 = vmatpush1.msra.mxu0 %v1455
      %1457 = vmatprep.subr.mxu0 0.0
      %v1458 = vand.u32 %v1160, 4294901760
      %v1459 = vsub.f32 %v1160, %v1458
      %1460 = vmatpush1.msra.mxu0 %v1459
      %1461 = vmatprep.subr.mxu0 0.0
      %v1462 = vand.u32 %v1161, 4294901760
      %v1463 = vsub.f32 %v1161, %v1462
      %1464 = vmatpush1.msra.mxu0 %v1463
      %1465 = vmatprep.subr.mxu0 0.0
      %v1466 = vand.u32 %v1185, 4294901760
      %v1467 = vsub.f32 %v1185, %v1466
      %1468 = vmatpush1.msra.mxu0 %v1467
      %1469 = vmatprep.subr.mxu0 0.0
      %1470 = vmatpush1.msra.mxu0 0.0
      %1471 = vmatprep.subr.mxu0 0.0
      %1472 = vmatpush1.msra.mxu0 0.0
      %1473 = vmatprep.subr.mxu0 0.0
      %1474 = vmatpush1.msra.mxu0 0.0
      %1475 = vmatprep.subr.mxu0 0.0
      %1476 = vmatpush1.msra.mxu0 0.0
      %1477 = vmatprep.subr.mxu0 0.0
      %1478 = vmatpush1.msra.mxu0 0.0
      %1479 = vmatprep.subr.mxu0 0.0
      %1480 = vmatpush1.msra.mxu0 0.0
      %1481 = vmatprep.subr.mxu0 0.0
      %1482 = vmatpush1.msra.mxu0 0.0
      %1483 = vmatprep.subr.mxu0 0.0
      %1484 = vmatpush1.msra.mxu0 0.0
      %1485 = vmatprep.subr.mxu0 0.0
      %1486 = vmatpush1.msra.mxu0 0.0
      %1487 = vmatprep.subr.mxu0 0.0
      %1488 = vmatpush1.msra.mxu0 0.0
      %1489 = vmatprep.subr.mxu0 0.0
      %1490 = vmatpush1.msra.mxu0 0.0
      %1491 = vmatprep.subr.mxu0 0.0
      %1492 = vmatpush1.msra.mxu0 0.0
      %1493 = vmatprep.subr.mxu0 0.0
      %1494 = vmatpush1.msra.mxu0 0.0
      %1495 = vmatprep.subr.mxu0 0.0
      %1496 = vmatpush1.msra.mxu0 0.0
      %1497 = vmatprep.subr.mxu0 0.0
      %1498 = vmatpush1.msra.mxu0 0.0
      %1499 = vmatprep.subr.mxu0 0.0
      %1500 = vmatpush1.msra.mxu0 0.0
      %1501 = vmatprep.subr.mxu0 0.0
      %1502 = vmatpush1.msra.mxu0 0.0
      %1503 = vmatprep.subr.mxu0 0.0
      %1504 = vmatpush1.msra.mxu0 0.0
      %1505 = vmatprep.subr.mxu0 0.0
      %1506 = vmatpush1.msra.mxu0 0.0
      %1507 = vmatprep.subr.mxu0 0.0
      %1508 = vmatpush1.msra.mxu0 0.0
      %1509 = vmatprep.subr.mxu0 0.0
      %1510 = vmatpush1.msra.mxu0 0.0
      %1511 = vmatprep.subr.mxu0 0.0
      %1512 = vmatpush1.msra.mxu0 0.0
      %1513 = vmatprep.subr.mxu0 0.0
      %1514 = vmatpush1.msra.mxu0 0.0
      %1515 = vmatprep.subr.mxu0 0.0
      %1516 = vmatpush1.msra.mxu0 0.0
      %1517 = vmatprep.subr.mxu0 0.0
      %1518 = vmatpush1.msra.mxu0 0.0
      %1519 = vmatprep.subr.mxu0 0.0
      %1520 = vmatpush1.msra.mxu0 0.0
      %1521 = vmatprep.subr.mxu0 0.0
      %1522 = vmatpush1.msra.mxu0 0.0
      %1523 = vmatprep.subr.mxu0 0.0
      %1524 = vmatpush1.msra.mxu0 0.0
      %1525 = vmatprep.mubr.f32.mxu0 0.0
      %v1526 = vand.u32 %v1164, 4294901760
      %v1527 = vsub.f32 %v1164, %v1526
      %1528 = vmatmul.mubr.f32.gmra.mrb[0].mxu0 %v1527
      %v1529 = vpop.f32.mrb[0].mxu0
      %v1530 = vadd.f32 %v1414, %v1529
      %v1531 = vpop.f32.mrb[0].mxu0
      %1532 = vmatprep.mubr.f32.mxu0 0.0
      %v1533 = vand.u32 %v1167, 4294901760
      %v1534 = vsub.f32 %v1167, %v1533
      %1535 = vmatmul.mubr.f32.gmra.mrb[0].mxu0 %v1534
      %v1536 = vpop.f32.mrb[0].mxu0
      %v1537 = vadd.f32 %v1420, %v1536
      %v1538 = vpop.f32.mrb[0].mxu0
      %1539 = vmatprep.mubr.f32.mxu0 0.0
      %v1540 = vand.u32 %v1170, 4294901760
      %v1541 = vsub.f32 %v1170, %v1540
      %1542 = vmatmul.mubr.f32.gmra.mrb[0].mxu0 %v1541
      %v1543 = vpop.f32.mrb[0].mxu0
      %v1544 = vadd.f32 %v1426, %v1543
      %v1545 = vpop.f32.mrb[0].mxu0
      %1546 = vmatprep.mubr.f32.mxu0 0.0
      %v1547 = vand.u32 %v1173, 4294901760
      %v1548 = vsub.f32 %v1173, %v1547
      %1549 = vmatmul.mubr.f32.gmra.mrb[0].mxu0 %v1548
      %v1550 = vpop.f32.mrb[0].mxu0
      %v1551 = vadd.f32 %v1432, %v1550
      %v1552 = vpop.f32.mrb[0].mxu0
      %1553 = vmatprep.mubr.f32.mxu0 0.0
      %v1554 = vand.u32 %v1176, 4294901760
      %v1555 = vsub.f32 %v1176, %v1554
      %1556 = vmatmul.mubr.f32.gmra.mrb[0].mxu0 %v1555
      %v1557 = vpop.f32.mrb[0].mxu0
      %v1558 = vadd.f32 %v1438, %v1557
      %v1559 = vpop.f32.mrb[0].mxu0
      %1560 = vmatprep.mubr.f32.mxu0 0.0
      %v1561 = vand.u32 %v1179, 4294901760
      %v1562 = vsub.f32 %v1179, %v1561
      %1563 = vmatmul.mubr.f32.gmra.mrb[0].mxu0 %v1562
      %v1564 = vpop.f32.mrb[0].mxu0
      %v1565 = vadd.f32 %v1444, %v1564
      %v1566 = vpop.f32.mrb[0].mxu0
      %1567 = vmatprep.mubr.f32.mxu0 0.0
      %v1568 = vand.u32 %v1182, 4294901760
      %v1569 = vsub.f32 %v1182, %v1568
      %1570 = vmatmul.mubr.f32.gmra.mrb[0].mxu0 %v1569
      %v1571 = vpop.f32.mrb[0].mxu0
      %v1572 = vadd.f32 %v1450, %v1571
      %v1573 = vpop.f32.mrb[0].mxu0
      %1574 = vdwg.mxu0
      %1575 = vmatprep.subr.mxu0 0.0
      %v1576 = vand.u32 %v1159, 4294901760
      %1577 = vmatpush1.msra.mxu0 %v1576
      %1578 = vmatprep.subr.mxu0 0.0
      %v1579 = vand.u32 %v1160, 4294901760
      %1580 = vmatpush1.msra.mxu0 %v1579
      %1581 = vmatprep.subr.mxu0 0.0
      %v1582 = vand.u32 %v1161, 4294901760
      %1583 = vmatpush1.msra.mxu0 %v1582
      %1584 = vmatprep.subr.mxu0 0.0
      %v1585 = vand.u32 %v1185, 4294901760
      %1586 = vmatpush1.msra.mxu0 %v1585
      %1587 = vmatprep.subr.mxu0 0.0
      %1588 = vmatpush1.msra.mxu0 0.0
      %1589 = vmatprep.subr.mxu0 0.0
      %1590 = vmatpush1.msra.mxu0 0.0
      %1591 = vmatprep.subr.mxu0 0.0
      %1592 = vmatpush1.msra.mxu0 0.0
      %1593 = vmatprep.subr.mxu0 0.0
      %1594 = vmatpush1.msra.mxu0 0.0
      %1595 = vmatprep.subr.mxu0 0.0
      %1596 = vmatpush1.msra.mxu0 0.0
      %1597 = vmatprep.subr.mxu0 0.0
      %1598 = vmatpush1.msra.mxu0 0.0
      %1599 = vmatprep.subr.mxu0 0.0
      %1600 = vmatpush1.msra.mxu0 0.0
      %1601 = vmatprep.subr.mxu0 0.0
      %1602 = vmatpush1.msra.mxu0 0.0
      %1603 = vmatprep.subr.mxu0 0.0
      %1604 = vmatpush1.msra.mxu0 0.0
      %1605 = vmatprep.subr.mxu0 0.0
      %1606 = vmatpush1.msra.mxu0 0.0
      %1607 = vmatprep.subr.mxu0 0.0
      %1608 = vmatpush1.msra.mxu0 0.0
      %1609 = vmatprep.subr.mxu0 0.0
      %1610 = vmatpush1.msra.mxu0 0.0
      %1611 = vmatprep.subr.mxu0 0.0
      %1612 = vmatpush1.msra.mxu0 0.0
      %1613 = vmatprep.subr.mxu0 0.0
      %1614 = vmatpush1.msra.mxu0 0.0
      %1615 = vmatprep.subr.mxu0 0.0
      %1616 = vmatpush1.msra.mxu0 0.0
      %1617 = vmatprep.subr.mxu0 0.0
      %1618 = vmatpush1.msra.mxu0 0.0
      %1619 = vmatprep.subr.mxu0 0.0
      %1620 = vmatpush1.msra.mxu0 0.0
      %1621 = vmatprep.subr.mxu0 0.0
      %1622 = vmatpush1.msra.mxu0 0.0
      %1623 = vmatprep.subr.mxu0 0.0
      %1624 = vmatpush1.msra.mxu0 0.0
      %1625 = vmatprep.subr.mxu0 0.0
      %1626 = vmatpush1.msra.mxu0 0.0
      %1627 = vmatprep.subr.mxu0 0.0
      %1628 = vmatpush1.msra.mxu0 0.0
      %1629 = vmatprep.subr.mxu0 0.0
      %1630 = vmatpush1.msra.mxu0 0.0
      %1631 = vmatprep.subr.mxu0 0.0
      %1632 = vmatpush1.msra.mxu0 0.0
      %1633 = vmatprep.subr.mxu0 0.0
      %1634 = vmatpush1.msra.mxu0 0.0
      %1635 = vmatprep.subr.mxu0 0.0
      %1636 = vmatpush1.msra.mxu0 0.0
      %1637 = vmatprep.subr.mxu0 0.0
      %1638 = vmatpush1.msra.mxu0 0.0
      %1639 = vmatprep.subr.mxu0 0.0
      %1640 = vmatpush1.msra.mxu0 0.0
      %1641 = vmatprep.subr.mxu0 0.0
      %1642 = vmatpush1.msra.mxu0 0.0
      %1643 = vmatprep.mubr.f32.mxu0 0.0
      %v1644 = vand.u32 %v1164, 4294901760
      %v1645 = vsub.f32 %v1164, %v1644
      %v1646 = vand.u32 %v1645, 4294901760
      %1647 = vmatmul.mubr.f32.gmra.mrb[0].mxu0 %v1646
      %v1648 = vpop.f32.mrb[0].mxu0
      %v1649 = vadd.f32 %v1530, %v1648
      %v1650 = vpop.f32.mrb[0].mxu0
      %1651 = vmatprep.mubr.f32.mxu0 0.0
      %v1652 = vand.u32 %v1167, 4294901760
      %v1653 = vsub.f32 %v1167, %v1652
      %v1654 = vand.u32 %v1653, 4294901760
      %1655 = vmatmul.mubr.f32.gmra.mrb[0].mxu0 %v1654
      %v1656 = vpop.f32.mrb[0].mxu0
      %v1657 = vadd.f32 %v1537, %v1656
      %v1658 = vpop.f32.mrb[0].mxu0
      %1659 = vmatprep.mubr.f32.mxu0 0.0
      %v1660 = vand.u32 %v1170, 4294901760
      %v1661 = vsub.f32 %v1170, %v1660
      %v1662 = vand.u32 %v1661, 4294901760
      %1663 = vmatmul.mubr.f32.gmra.mrb[0].mxu0 %v1662
      %v1664 = vpop.f32.mrb[0].mxu0
      %v1665 = vadd.f32 %v1544, %v1664
      %v1666 = vpop.f32.mrb[0].mxu0
      %1667 = vmatprep.mubr.f32.mxu0 0.0
      %v1668 = vand.u32 %v1173, 4294901760
      %v1669 = vsub.f32 %v1173, %v1668
      %v1670 = vand.u32 %v1669, 4294901760
      %1671 = vmatmul.mubr.f32.gmra.mrb[0].mxu0 %v1670
      %v1672 = vpop.f32.mrb[0].mxu0
      %v1673 = vadd.f32 %v1551, %v1672
      %v1674 = vpop.f32.mrb[0].mxu0
      %1675 = vmatprep.mubr.f32.mxu0 0.0
      %v1676 = vand.u32 %v1176, 4294901760
      %v1677 = vsub.f32 %v1176, %v1676
      %v1678 = vand.u32 %v1677, 4294901760
      %1679 = vmatmul.mubr.f32.gmra.mrb[0].mxu0 %v1678
      %v1680 = vpop.f32.mrb[0].mxu0
      %v1681 = vadd.f32 %v1558, %v1680
      %v1682 = vpop.f32.mrb[0].mxu0
      %1683 = vmatprep.mubr.f32.mxu0 0.0
      %v1684 = vand.u32 %v1179, 4294901760
      %v1685 = vsub.f32 %v1179, %v1684
      %v1686 = vand.u32 %v1685, 4294901760
      %1687 = vmatmul.mubr.f32.gmra.mrb[0].mxu0 %v1686
      %v1688 = vpop.f32.mrb[0].mxu0
      %v1689 = vadd.f32 %v1565, %v1688
      %v1690 = vpop.f32.mrb[0].mxu0
      %1691 = vmatprep.mubr.f32.mxu0 0.0
      %v1692 = vand.u32 %v1182, 4294901760
      %v1693 = vsub.f32 %v1182, %v1692
      %v1694 = vand.u32 %v1693, 4294901760
      %1695 = vmatmul.mubr.f32.gmra.mrb[0].mxu0 %v1694
      %v1696 = vpop.f32.mrb[0].mxu0
      %v1697 = vadd.f32 %v1572, %v1696
      %v1698 = vpop.f32.mrb[0].mxu0
      %1699 = vdwg.mxu0
      %1700 = vmatprep.subr.mxu0 0.0
      %v1701 = vand.u32 %v1159, 4294901760
      %v1702 = vsub.f32 %v1159, %v1701
      %v1703 = vand.u32 %v1702, 4294901760
      %1704 = vmatpush1.msra.mxu0 %v1703
      %1705 = vmatprep.subr.mxu0 0.0
      %v1706 = vand.u32 %v1160, 4294901760
      %v1707 = vsub.f32 %v1160, %v1706
      %v1708 = vand.u32 %v1707, 4294901760
      %1709 = vmatpush1.msra.mxu0 %v1708
      %1710 = vmatprep.subr.mxu0 0.0
      %v1711 = vand.u32 %v1161, 4294901760
      %v1712 = vsub.f32 %v1161, %v1711
      %v1713 = vand.u32 %v1712, 4294901760
      %1714 = vmatpush1.msra.mxu0 %v1713
      %1715 = vmatprep.subr.mxu0 0.0
      %v1716 = vand.u32 %v1185, 4294901760
      %v1717 = vsub.f32 %v1185, %v1716
      %v1718 = vand.u32 %v1717, 4294901760
      %1719 = vmatpush1.msra.mxu0 %v1718
      %1720 = vmatprep.subr.mxu0 0.0
      %1721 = vmatpush1.msra.mxu0 0.0
      %1722 = vmatprep.subr.mxu0 0.0
      %1723 = vmatpush1.msra.mxu0 0.0
      %1724 = vmatprep.subr.mxu0 0.0
      %1725 = vmatpush1.msra.mxu0 0.0
      %1726 = vmatprep.subr.mxu0 0.0
      %1727 = vmatpush1.msra.mxu0 0.0
      %1728 = vmatprep.subr.mxu0 0.0
      %1729 = vmatpush1.msra.mxu0 0.0
      %1730 = vmatprep.subr.mxu0 0.0
      %1731 = vmatpush1.msra.mxu0 0.0
      %1732 = vmatprep.subr.mxu0 0.0
      %1733 = vmatpush1.msra.mxu0 0.0
      %1734 = vmatprep.subr.mxu0 0.0
      %1735 = vmatpush1.msra.mxu0 0.0
      %1736 = vmatprep.subr.mxu0 0.0
      %1737 = vmatpush1.msra.mxu0 0.0
      %1738 = vmatprep.subr.mxu0 0.0
      %1739 = vmatpush1.msra.mxu0 0.0
      %1740 = vmatprep.subr.mxu0 0.0
      %1741 = vmatpush1.msra.mxu0 0.0
      %1742 = vmatprep.subr.mxu0 0.0
      %1743 = vmatpush1.msra.mxu0 0.0
      %1744 = vmatprep.subr.mxu0 0.0
      %1745 = vmatpush1.msra.mxu0 0.0
      %1746 = vmatprep.subr.mxu0 0.0
      %1747 = vmatpush1.msra.mxu0 0.0
      %1748 = vmatprep.subr.mxu0 0.0
      %1749 = vmatpush1.msra.mxu0 0.0
      %1750 = vmatprep.subr.mxu0 0.0
      %1751 = vmatpush1.msra.mxu0 0.0
      %1752 = vmatprep.subr.mxu0 0.0
      %1753 = vmatpush1.msra.mxu0 0.0
      %1754 = vmatprep.subr.mxu0 0.0
      %1755 = vmatpush1.msra.mxu0 0.0
      %1756 = vmatprep.subr.mxu0 0.0
      %1757 = vmatpush1.msra.mxu0 0.0
      %1758 = vmatprep.subr.mxu0 0.0
      %1759 = vmatpush1.msra.mxu0 0.0
      %1760 = vmatprep.subr.mxu0 0.0
      %1761 = vmatpush1.msra.mxu0 0.0
      %1762 = vmatprep.subr.mxu0 0.0
      %1763 = vmatpush1.msra.mxu0 0.0
      %1764 = vmatprep.subr.mxu0 0.0
      %1765 = vmatpush1.msra.mxu0 0.0
      %1766 = vmatprep.subr.mxu0 0.0
      %1767 = vmatpush1.msra.mxu0 0.0
      %1768 = vmatprep.subr.mxu0 0.0
      %1769 = vmatpush1.msra.mxu0 0.0
      %1770 = vmatprep.subr.mxu0 0.0
      %1771 = vmatpush1.msra.mxu0 0.0
      %1772 = vmatprep.subr.mxu0 0.0
      %1773 = vmatpush1.msra.mxu0 0.0
      %1774 = vmatprep.subr.mxu0 0.0
      %1775 = vmatpush1.msra.mxu0 0.0
      %1776 = vmatprep.mubr.f32.mxu0 0.0
      %v1777 = vand.u32 %v1164, 4294901760
      %1778 = vmatmul.mubr.f32.gmra.mrb[0].mxu0 %v1777
      %v1779 = vpop.f32.mrb[0].mxu0
      %v1780 = vadd.f32 %v1649, %v1779
      %v1781 = vpop.f32.mrb[0].mxu0
      %1782 = vmatprep.mubr.f32.mxu0 0.0
      %v1783 = vand.u32 %v1167, 4294901760
      %1784 = vmatmul.mubr.f32.gmra.mrb[0].mxu0 %v1783
      %v1785 = vpop.f32.mrb[0].mxu0
      %v1786 = vadd.f32 %v1657, %v1785
      %v1787 = vpop.f32.mrb[0].mxu0
      %1788 = vmatprep.mubr.f32.mxu0 0.0
      %v1789 = vand.u32 %v1170, 4294901760
      %1790 = vmatmul.mubr.f32.gmra.mrb[0].mxu0 %v1789
      %v1791 = vpop.f32.mrb[0].mxu0
      %v1792 = vadd.f32 %v1665, %v1791
      %v1793 = vpop.f32.mrb[0].mxu0
      %1794 = vmatprep.mubr.f32.mxu0 0.0
      %v1795 = vand.u32 %v1173, 4294901760
      %1796 = vmatmul.mubr.f32.gmra.mrb[0].mxu0 %v1795
      %v1797 = vpop.f32.mrb[0].mxu0
      %v1798 = vadd.f32 %v1673, %v1797
      %v1799 = vpop.f32.mrb[0].mxu0
      %1800 = vmatprep.mubr.f32.mxu0 0.0
      %v1801 = vand.u32 %v1176, 4294901760
      %1802 = vmatmul.mubr.f32.gmra.mrb[0].mxu0 %v1801
      %v1803 = vpop.f32.mrb[0].mxu0
      %v1804 = vadd.f32 %v1681, %v1803
      %v1805 = vpop.f32.mrb[0].mxu0
      %1806 = vmatprep.mubr.f32.mxu0 0.0
      %v1807 = vand.u32 %v1179, 4294901760
      %1808 = vmatmul.mubr.f32.gmra.mrb[0].mxu0 %v1807
      %v1809 = vpop.f32.mrb[0].mxu0
      %v1810 = vadd.f32 %v1689, %v1809
      %v1811 = vpop.f32.mrb[0].mxu0
      %1812 = vmatprep.mubr.f32.mxu0 0.0
      %v1813 = vand.u32 %v1182, 4294901760
      %1814 = vmatmul.mubr.f32.gmra.mrb[0].mxu0 %v1813
      %v1815 = vpop.f32.mrb[0].mxu0
      %v1816 = vadd.f32 %v1697, %v1815
      %v1817 = vpop.f32.mrb[0].mxu0
      %1818 = vdwg.mxu0
      %1819 = vmatprep.subr.mxu0 0.0
      %v1820 = vand.u32 %v1159, 4294901760
      %1821 = vmatpush1.msra.mxu0 %v1820
      %1822 = vmatprep.subr.mxu0 0.0
      %v1823 = vand.u32 %v1160, 4294901760
      %1824 = vmatpush1.msra.mxu0 %v1823
      %1825 = vmatprep.subr.mxu0 0.0
      %v1826 = vand.u32 %v1161, 4294901760
      %1827 = vmatpush1.msra.mxu0 %v1826
      %1828 = vmatprep.subr.mxu0 0.0
      %v1829 = vand.u32 %v1185, 4294901760
      %1830 = vmatpush1.msra.mxu0 %v1829
      %1831 = vmatprep.subr.mxu0 0.0
      %1832 = vmatpush1.msra.mxu0 0.0
      %1833 = vmatprep.subr.mxu0 0.0
      %1834 = vmatpush1.msra.mxu0 0.0
      %1835 = vmatprep.subr.mxu0 0.0
      %1836 = vmatpush1.msra.mxu0 0.0
      %1837 = vmatprep.subr.mxu0 0.0
      %1838 = vmatpush1.msra.mxu0 0.0
      %1839 = vmatprep.subr.mxu0 0.0
      %1840 = vmatpush1.msra.mxu0 0.0
      %1841 = vmatprep.subr.mxu0 0.0
      %1842 = vmatpush1.msra.mxu0 0.0
      %1843 = vmatprep.subr.mxu0 0.0
      %1844 = vmatpush1.msra.mxu0 0.0
      %1845 = vmatprep.subr.mxu0 0.0
      %1846 = vmatpush1.msra.mxu0 0.0
      %1847 = vmatprep.subr.mxu0 0.0
      %1848 = vmatpush1.msra.mxu0 0.0
      %1849 = vmatprep.subr.mxu0 0.0
      %1850 = vmatpush1.msra.mxu0 0.0
      %1851 = vmatprep.subr.mxu0 0.0
      %1852 = vmatpush1.msra.mxu0 0.0
      %1853 = vmatprep.subr.mxu0 0.0
      %1854 = vmatpush1.msra.mxu0 0.0
      %1855 = vmatprep.subr.mxu0 0.0
      %1856 = vmatpush1.msra.mxu0 0.0
      %1857 = vmatprep.subr.mxu0 0.0
      %1858 = vmatpush1.msra.mxu0 0.0
      %1859 = vmatprep.subr.mxu0 0.0
      %1860 = vmatpush1.msra.mxu0 0.0
      %1861 = vmatprep.subr.mxu0 0.0
      %1862 = vmatpush1.msra.mxu0 0.0
      %1863 = vmatprep.subr.mxu0 0.0
      %1864 = vmatpush1.msra.mxu0 0.0
      %1865 = vmatprep.subr.mxu0 0.0
      %1866 = vmatpush1.msra.mxu0 0.0
      %1867 = vmatprep.subr.mxu0 0.0
      %1868 = vmatpush1.msra.mxu0 0.0
      %1869 = vmatprep.subr.mxu0 0.0
      %1870 = vmatpush1.msra.mxu0 0.0
      %1871 = vmatprep.subr.mxu0 0.0
      %1872 = vmatpush1.msra.mxu0 0.0
      %1873 = vmatprep.subr.mxu0 0.0
      %1874 = vmatpush1.msra.mxu0 0.0
      %1875 = vmatprep.subr.mxu0 0.0
      %1876 = vmatpush1.msra.mxu0 0.0
      %1877 = vmatprep.subr.mxu0 0.0
      %1878 = vmatpush1.msra.mxu0 0.0
      %1879 = vmatprep.subr.mxu0 0.0
      %1880 = vmatpush1.msra.mxu0 0.0
      %1881 = vmatprep.subr.mxu0 0.0
      %1882 = vmatpush1.msra.mxu0 0.0
      %1883 = vmatprep.subr.mxu0 0.0
      %1884 = vmatpush1.msra.mxu0 0.0
      %1885 = vmatprep.subr.mxu0 0.0
      %1886 = vmatpush1.msra.mxu0 0.0
      %1887 = vmatprep.mubr.f32.mxu0 0.0
      %v1888 = vand.u32 %v1164, 4294901760
      %1889 = vmatmul.mubr.f32.gmra.mrb[0].mxu0 %v1888
      %v1890 = vpop.f32.mrb[0].mxu0
      %v1891 = vadd.f32 %v1780, %v1890
      %v1892 = vpop.f32.mrb[0].mxu0
      %1893 = vmatprep.mubr.f32.mxu0 0.0
      %v1894 = vand.u32 %v1167, 4294901760
      %1895 = vmatmul.mubr.f32.gmra.mrb[0].mxu0 %v1894
      %v1896 = vpop.f32.mrb[0].mxu0
      %v1897 = vadd.f32 %v1786, %v1896
      %v1898 = vpop.f32.mrb[0].mxu0
      %1899 = vmatprep.mubr.f32.mxu0 0.0
      %v1900 = vand.u32 %v1170, 4294901760
      %1901 = vmatmul.mubr.f32.gmra.mrb[0].mxu0 %v1900
      %v1902 = vpop.f32.mrb[0].mxu0
      %v1903 = vadd.f32 %v1792, %v1902
      %v1904 = vpop.f32.mrb[0].mxu0
      %1905 = vmatprep.mubr.f32.mxu0 0.0
      %v1906 = vand.u32 %v1173, 4294901760
      %1907 = vmatmul.mubr.f32.gmra.mrb[0].mxu0 %v1906
      %v1908 = vpop.f32.mrb[0].mxu0
      %v1909 = vadd.f32 %v1798, %v1908
      %v1910 = vpop.f32.mrb[0].mxu0
      %1911 = vmatprep.mubr.f32.mxu0 0.0
      %v1912 = vand.u32 %v1176, 4294901760
      %1913 = vmatmul.mubr.f32.gmra.mrb[0].mxu0 %v1912
      %v1914 = vpop.f32.mrb[0].mxu0
      %v1915 = vadd.f32 %v1804, %v1914
      %v1916 = vpop.f32.mrb[0].mxu0
      %1917 = vmatprep.mubr.f32.mxu0 0.0
      %v1918 = vand.u32 %v1179, 4294901760
      %1919 = vmatmul.mubr.f32.gmra.mrb[0].mxu0 %v1918
      %v1920 = vpop.f32.mrb[0].mxu0
      %v1921 = vadd.f32 %v1810, %v1920
      %v1922 = vpop.f32.mrb[0].mxu0
      %1923 = vmatprep.mubr.f32.mxu0 0.0
      %v1924 = vand.u32 %v1182, 4294901760
      %1925 = vmatmul.mubr.f32.gmra.mrb[0].mxu0 %v1924
      %v1926 = vpop.f32.mrb[0].mxu0
      %v1927 = vadd.f32 %v1816, %v1926
      %v1928 = vpop.f32.mrb[0].mxu0
      %1929 = vdwg.mxu0
      %v1930 = vadd.f32 %v1143, %v1891
      %v1931 = vadd.f32 %v1144, %v1897
      %v1932 = vadd.f32 %v1145, %v1903
      %v1933 = vadd.f32 %v1146, %v1909
      %v1934 = vadd.f32 %v1147, %v1915
      %v1935 = vadd.f32 %v1148, %v1921
      %v1936 = vadd.f32 %v1149, %v1927
      %1937 = vst.msk [vmem:[#allocation2] sm:$0xff] %vm1134, %v1930
      %1938 = vst.msk [vmem:[#allocation2 + $0x8] sm:$0xff] %vm1134, %v1931
      %1939 = vst.msk [vmem:[#allocation2 + $0x10] sm:$0xff] %vm1134, %v1932
      %1940 = vst.msk [vmem:[#allocation2 + $0x18] sm:$0xff] %vm1134, %v1933
      %1941 = vst.msk [vmem:[#allocation2 + $0x20] sm:$0xff] %vm1134, %v1934
      %1942 = vst.msk [vmem:[#allocation2 + $0x28] sm:$0xff] %vm1134, %v1935
      %1943 = vst.msk [vmem:[#allocation2 + $0x30] sm:$0xff] %vm1134, %v1936
      %v1944 = vld [vmem:[#allocation2 + $0x38] sm:$0xff]
      %v1945 = vld [vmem:[%s293] sm:$0xff]
      %v1946 = vld [vmem:[%s1158] sm:$0xff]
      %v1947 = vld [vmem:[%s1158 + $0x8] sm:$0xff]
      %v1948 = vld [vmem:[%s1158 + $0x10] sm:$0xff]
      %v1949 = vld [vmem:[%s1158 + $0x18] sm:$0x7]
      %v1951 = vsel %vm319, %v1945, 0
      %v1954 = vsel %vm344, %v1949, 0
      %1956 = vmatprep.subr.mxu0 0.0
      %v1957 = vand.u32 %v1946, 4294901760
      %1958 = vmatpush1.msra.mxu0 %v1957
      %1959 = vmatprep.subr.mxu0 0.0
      %v1960 = vand.u32 %v1947, 4294901760
      %1961 = vmatpush1.msra.mxu0 %v1960
      %1962 = vmatprep.subr.mxu0 0.0
      %v1963 = vand.u32 %v1948, 4294901760
      %1964 = vmatpush1.msra.mxu0 %v1963
      %1965 = vmatprep.subr.mxu0 0.0
      %v1966 = vand.u32 %v1954, 4294901760
      %1967 = vmatpush1.msra.mxu0 %v1966
      %1968 = vmatprep.subr.mxu0 0.0
      %1969 = vmatpush1.msra.mxu0 0.0
      %1970 = vmatprep.subr.mxu0 0.0
      %1971 = vmatpush1.msra.mxu0 0.0
      %1972 = vmatprep.subr.mxu0 0.0
      %1973 = vmatpush1.msra.mxu0 0.0
      %1974 = vmatprep.subr.mxu0 0.0
      %1975 = vmatpush1.msra.mxu0 0.0
      %1976 = vmatprep.subr.mxu0 0.0
      %1977 = vmatpush1.msra.mxu0 0.0
      %1978 = vmatprep.subr.mxu0 0.0
      %1979 = vmatpush1.msra.mxu0 0.0
      %1980 = vmatprep.subr.mxu0 0.0
      %1981 = vmatpush1.msra.mxu0 0.0
      %1982 = vmatprep.subr.mxu0 0.0
      %1983 = vmatpush1.msra.mxu0 0.0
      %1984 = vmatprep.subr.mxu0 0.0
      %1985 = vmatpush1.msra.mxu0 0.0
      %1986 = vmatprep.subr.mxu0 0.0
      %1987 = vmatpush1.msra.mxu0 0.0
      %1988 = vmatprep.subr.mxu0 0.0
      %1989 = vmatpush1.msra.mxu0 0.0
      %1990 = vmatprep.subr.mxu0 0.0
      %1991 = vmatpush1.msra.mxu0 0.0
      %1992 = vmatprep.subr.mxu0 0.0
      %1993 = vmatpush1.msra.mxu0 0.0
      %1994 = vmatprep.subr.mxu0 0.0
      %1995 = vmatpush1.msra.mxu0 0.0
      %1996 = vmatprep.subr.mxu0 0.0
      %1997 = vmatpush1.msra.mxu0 0.0
      %1998 = vmatprep.subr.mxu0 0.0
      %1999 = vmatpush1.msra.mxu0 0.0
      %2000 = vmatprep.subr.mxu0 0.0
      %2001 = vmatpush1.msra.mxu0 0.0
      %2002 = vmatprep.subr.mxu0 0.0
      %2003 = vmatpush1.msra.mxu0 0.0
      %2004 = vmatprep.subr.mxu0 0.0
      %2005 = vmatpush1.msra.mxu0 0.0
      %2006 = vmatprep.subr.mxu0 0.0
      %2007 = vmatpush1.msra.mxu0 0.0
      %2008 = vmatprep.subr.mxu0 0.0
      %2009 = vmatpush1.msra.mxu0 0.0
      %2010 = vmatprep.subr.mxu0 0.0
      %2011 = vmatpush1.msra.mxu0 0.0
      %2012 = vmatprep.subr.mxu0 0.0
      %2013 = vmatpush1.msra.mxu0 0.0
      %2014 = vmatprep.subr.mxu0 0.0
      %2015 = vmatpush1.msra.mxu0 0.0
      %2016 = vmatprep.subr.mxu0 0.0
      %2017 = vmatpush1.msra.mxu0 0.0
      %2018 = vmatprep.subr.mxu0 0.0
      %2019 = vmatpush1.msra.mxu0 0.0
      %2020 = vmatprep.subr.mxu0 0.0
      %2021 = vmatpush1.msra.mxu0 0.0
      %2022 = vmatprep.subr.mxu0 0.0
      %2023 = vmatpush1.msra.mxu0 0.0
      %2024 = vmatprep.mubr.f32.mxu0 0.0
      %v2025 = vand.u32 %v1951, 4294901760
      %v2026 = vsub.f32 %v1951, %v2025
      %v2027 = vand.u32 %v2026, 4294901760
      %v2028 = vsub.f32 %v2026, %v2027
      %v2029 = vand.u32 %v2028, 4294901760
      %2030 = vmatmul.mubr.f32.gmra.mrb[0].mxu0 %v2029
      %v2031 = vpop.f32.mrb[0].mxu0
      %v2032 = vadd.f32 0.0, %v2031
      %v2033 = vpop.f32.mrb[0].mxu0
      %2034 = vdwg.mxu0
      %2035 = vmatprep.subr.mxu0 0.0
      %v2036 = vand.u32 %v1946, 4294901760
      %v2037 = vsub.f32 %v1946, %v2036
      %v2038 = vand.u32 %v2037, 4294901760
      %v2039 = vsub.f32 %v2037, %v2038
      %v2040 = vand.u32 %v2039, 4294901760
      %2041 = vmatpush1.msra.mxu0 %v2040
      %2042 = vmatprep.subr.mxu0 0.0
      %v2043 = vand.u32 %v1947, 4294901760
      %v2044 = vsub.f32 %v1947, %v2043
      %v2045 = vand.u32 %v2044, 4294901760
      %v2046 = vsub.f32 %v2044, %v2045
      %v2047 = vand.u32 %v2046, 4294901760
      %2048 = vmatpush1.msra.mxu0 %v2047
      %2049 = vmatprep.subr.mxu0 0.0
      %v2050 = vand.u32 %v1948, 4294901760
      %v2051 = vsub.f32 %v1948, %v2050
      %v2052 = vand.u32 %v2051, 4294901760
      %v2053 = vsub.f32 %v2051, %v2052
      %v2054 = vand.u32 %v2053, 4294901760
      %2055 = vmatpush1.msra.mxu0 %v2054
      %2056 = vmatprep.subr.mxu0 0.0
      %v2057 = vand.u32 %v1954, 4294901760
      %v2058 = vsub.f32 %v1954, %v2057
      %v2059 = vand.u32 %v2058, 4294901760
      %v2060 = vsub.f32 %v2058, %v2059
      %v2061 = vand.u32 %v2060, 4294901760
      %2062 = vmatpush1.msra.mxu0 %v2061
      %2063 = vmatprep.subr.mxu0 0.0
      %2064 = vmatpush1.msra.mxu0 0.0
      %2065 = vmatprep.subr.mxu0 0.0
      %2066 = vmatpush1.msra.mxu0 0.0
      %2067 = vmatprep.subr.mxu0 0.0
      %2068 = vmatpush1.msra.mxu0 0.0
      %2069 = vmatprep.subr.mxu0 0.0
      %2070 = vmatpush1.msra.mxu0 0.0
      %2071 = vmatprep.subr.mxu0 0.0
      %2072 = vmatpush1.msra.mxu0 0.0
      %2073 = vmatprep.subr.mxu0 0.0
      %2074 = vmatpush1.msra.mxu0 0.0
      %2075 = vmatprep.subr.mxu0 0.0
      %2076 = vmatpush1.msra.mxu0 0.0
      %2077 = vmatprep.subr.mxu0 0.0
      %2078 = vmatpush1.msra.mxu0 0.0
      %2079 = vmatprep.subr.mxu0 0.0
      %2080 = vmatpush1.msra.mxu0 0.0
      %2081 = vmatprep.subr.mxu0 0.0
      %2082 = vmatpush1.msra.mxu0 0.0
      %2083 = vmatprep.subr.mxu0 0.0
      %2084 = vmatpush1.msra.mxu0 0.0
      %2085 = vmatprep.subr.mxu0 0.0
      %2086 = vmatpush1.msra.mxu0 0.0
      %2087 = vmatprep.subr.mxu0 0.0
      %2088 = vmatpush1.msra.mxu0 0.0
      %2089 = vmatprep.subr.mxu0 0.0
      %2090 = vmatpush1.msra.mxu0 0.0
      %2091 = vmatprep.subr.mxu0 0.0
      %2092 = vmatpush1.msra.mxu0 0.0
      %2093 = vmatprep.subr.mxu0 0.0
      %2094 = vmatpush1.msra.mxu0 0.0
      %2095 = vmatprep.subr.mxu0 0.0
      %2096 = vmatpush1.msra.mxu0 0.0
      %2097 = vmatprep.subr.mxu0 0.0
      %2098 = vmatpush1.msra.mxu0 0.0
      %2099 = vmatprep.subr.mxu0 0.0
      %2100 = vmatpush1.msra.mxu0 0.0
      %2101 = vmatprep.subr.mxu0 0.0
      %2102 = vmatpush1.msra.mxu0 0.0
      %2103 = vmatprep.subr.mxu0 0.0
      %2104 = vmatpush1.msra.mxu0 0.0
      %2105 = vmatprep.subr.mxu0 0.0
      %2106 = vmatpush1.msra.mxu0 0.0
      %2107 = vmatprep.subr.mxu0 0.0
      %2108 = vmatpush1.msra.mxu0 0.0
      %2109 = vmatprep.subr.mxu0 0.0
      %2110 = vmatpush1.msra.mxu0 0.0
      %2111 = vmatprep.subr.mxu0 0.0
      %2112 = vmatpush1.msra.mxu0 0.0
      %2113 = vmatprep.subr.mxu0 0.0
      %2114 = vmatpush1.msra.mxu0 0.0
      %2115 = vmatprep.subr.mxu0 0.0
      %2116 = vmatpush1.msra.mxu0 0.0
      %2117 = vmatprep.subr.mxu0 0.0
      %2118 = vmatpush1.msra.mxu0 0.0
      %2119 = vmatprep.mubr.f32.mxu0 0.0
      %v2120 = vand.u32 %v1951, 4294901760
      %2121 = vmatmul.mubr.f32.gmra.mrb[0].mxu0 %v2120
      %v2122 = vpop.f32.mrb[0].mxu0
      %v2123 = vadd.f32 %v2032, %v2122
      %v2124 = vpop.f32.mrb[0].mxu0
      %2125 = vdwg.mxu0
      %2126 = vmatprep.subr.mxu0 0.0
      %v2127 = vand.u32 %v1946, 4294901760
      %v2128 = vsub.f32 %v1946, %v2127
      %2129 = vmatpush1.msra.mxu0 %v2128
      %2130 = vmatprep.subr.mxu0 0.0
      %v2131 = vand.u32 %v1947, 4294901760
      %v2132 = vsub.f32 %v1947, %v2131
      %2133 = vmatpush1.msra.mxu0 %v2132
      %2134 = vmatprep.subr.mxu0 0.0
      %v2135 = vand.u32 %v1948, 4294901760
      %v2136 = vsub.f32 %v1948, %v2135
      %2137 = vmatpush1.msra.mxu0 %v2136
      %2138 = vmatprep.subr.mxu0 0.0
      %v2139 = vand.u32 %v1954, 4294901760
      %v2140 = vsub.f32 %v1954, %v2139
      %2141 = vmatpush1.msra.mxu0 %v2140
      %2142 = vmatprep.subr.mxu0 0.0
      %2143 = vmatpush1.msra.mxu0 0.0
      %2144 = vmatprep.subr.mxu0 0.0
      %2145 = vmatpush1.msra.mxu0 0.0
      %2146 = vmatprep.subr.mxu0 0.0
      %2147 = vmatpush1.msra.mxu0 0.0
      %2148 = vmatprep.subr.mxu0 0.0
      %2149 = vmatpush1.msra.mxu0 0.0
      %2150 = vmatprep.subr.mxu0 0.0
      %2151 = vmatpush1.msra.mxu0 0.0
      %2152 = vmatprep.subr.mxu0 0.0
      %2153 = vmatpush1.msra.mxu0 0.0
      %2154 = vmatprep.subr.mxu0 0.0
      %2155 = vmatpush1.msra.mxu0 0.0
      %2156 = vmatprep.subr.mxu0 0.0
      %2157 = vmatpush1.msra.mxu0 0.0
      %2158 = vmatprep.subr.mxu0 0.0
      %2159 = vmatpush1.msra.mxu0 0.0
      %2160 = vmatprep.subr.mxu0 0.0
      %2161 = vmatpush1.msra.mxu0 0.0
      %2162 = vmatprep.subr.mxu0 0.0
      %2163 = vmatpush1.msra.mxu0 0.0
      %2164 = vmatprep.subr.mxu0 0.0
      %2165 = vmatpush1.msra.mxu0 0.0
      %2166 = vmatprep.subr.mxu0 0.0
      %2167 = vmatpush1.msra.mxu0 0.0
      %2168 = vmatprep.subr.mxu0 0.0
      %2169 = vmatpush1.msra.mxu0 0.0
      %2170 = vmatprep.subr.mxu0 0.0
      %2171 = vmatpush1.msra.mxu0 0.0
      %2172 = vmatprep.subr.mxu0 0.0
      %2173 = vmatpush1.msra.mxu0 0.0
      %2174 = vmatprep.subr.mxu0 0.0
      %2175 = vmatpush1.msra.mxu0 0.0
      %2176 = vmatprep.subr.mxu0 0.0
      %2177 = vmatpush1.msra.mxu0 0.0
      %2178 = vmatprep.subr.mxu0 0.0
      %2179 = vmatpush1.msra.mxu0 0.0
      %2180 = vmatprep.subr.mxu0 0.0
      %2181 = vmatpush1.msra.mxu0 0.0
      %2182 = vmatprep.subr.mxu0 0.0
      %2183 = vmatpush1.msra.mxu0 0.0
      %2184 = vmatprep.subr.mxu0 0.0
      %2185 = vmatpush1.msra.mxu0 0.0
      %2186 = vmatprep.subr.mxu0 0.0
      %2187 = vmatpush1.msra.mxu0 0.0
      %2188 = vmatprep.subr.mxu0 0.0
      %2189 = vmatpush1.msra.mxu0 0.0
      %2190 = vmatprep.subr.mxu0 0.0
      %2191 = vmatpush1.msra.mxu0 0.0
      %2192 = vmatprep.subr.mxu0 0.0
      %2193 = vmatpush1.msra.mxu0 0.0
      %2194 = vmatprep.subr.mxu0 0.0
      %2195 = vmatpush1.msra.mxu0 0.0
      %2196 = vmatprep.subr.mxu0 0.0
      %2197 = vmatpush1.msra.mxu0 0.0
      %2198 = vmatprep.mubr.f32.mxu0 0.0
      %v2199 = vand.u32 %v1951, 4294901760
      %v2200 = vsub.f32 %v1951, %v2199
      %2201 = vmatmul.mubr.f32.gmra.mrb[0].mxu0 %v2200
      %v2202 = vpop.f32.mrb[0].mxu0
      %v2203 = vadd.f32 %v2123, %v2202
      %v2204 = vpop.f32.mrb[0].mxu0
      %2205 = vdwg.mxu0
      %2206 = vmatprep.subr.mxu0 0.0
      %v2207 = vand.u32 %v1946, 4294901760
      %2208 = vmatpush1.msra.mxu0 %v2207
      %2209 = vmatprep.subr.mxu0 0.0
      %v2210 = vand.u32 %v1947, 4294901760
      %2211 = vmatpush1.msra.mxu0 %v2210
      %2212 = vmatprep.subr.mxu0 0.0
      %v2213 = vand.u32 %v1948, 4294901760
      %2214 = vmatpush1.msra.mxu0 %v2213
      %2215 = vmatprep.subr.mxu0 0.0
      %v2216 = vand.u32 %v1954, 4294901760
      %2217 = vmatpush1.msra.mxu0 %v2216
      %2218 = vmatprep.subr.mxu0 0.0
      %2219 = vmatpush1.msra.mxu0 0.0
      %2220 = vmatprep.subr.mxu0 0.0
      %2221 = vmatpush1.msra.mxu0 0.0
      %2222 = vmatprep.subr.mxu0 0.0
      %2223 = vmatpush1.msra.mxu0 0.0
      %2224 = vmatprep.subr.mxu0 0.0
      %2225 = vmatpush1.msra.mxu0 0.0
      %2226 = vmatprep.subr.mxu0 0.0
      %2227 = vmatpush1.msra.mxu0 0.0
      %2228 = vmatprep.subr.mxu0 0.0
      %2229 = vmatpush1.msra.mxu0 0.0
      %2230 = vmatprep.subr.mxu0 0.0
      %2231 = vmatpush1.msra.mxu0 0.0
      %2232 = vmatprep.subr.mxu0 0.0
      %2233 = vmatpush1.msra.mxu0 0.0
      %2234 = vmatprep.subr.mxu0 0.0
      %2235 = vmatpush1.msra.mxu0 0.0
      %2236 = vmatprep.subr.mxu0 0.0
      %2237 = vmatpush1.msra.mxu0 0.0
      %2238 = vmatprep.subr.mxu0 0.0
      %2239 = vmatpush1.msra.mxu0 0.0
      %2240 = vmatprep.subr.mxu0 0.0
      %2241 = vmatpush1.msra.mxu0 0.0
      %2242 = vmatprep.subr.mxu0 0.0
      %2243 = vmatpush1.msra.mxu0 0.0
      %2244 = vmatprep.subr.mxu0 0.0
      %2245 = vmatpush1.msra.mxu0 0.0
      %2246 = vmatprep.subr.mxu0 0.0
      %2247 = vmatpush1.msra.mxu0 0.0
      %2248 = vmatprep.subr.mxu0 0.0
      %2249 = vmatpush1.msra.mxu0 0.0
      %2250 = vmatprep.subr.mxu0 0.0
      %2251 = vmatpush1.msra.mxu0 0.0
      %2252 = vmatprep.subr.mxu0 0.0
      %2253 = vmatpush1.msra.mxu0 0.0
      %2254 = vmatprep.subr.mxu0 0.0
      %2255 = vmatpush1.msra.mxu0 0.0
      %2256 = vmatprep.subr.mxu0 0.0
      %2257 = vmatpush1.msra.mxu0 0.0
      %2258 = vmatprep.subr.mxu0 0.0
      %2259 = vmatpush1.msra.mxu0 0.0
      %2260 = vmatprep.subr.mxu0 0.0
      %2261 = vmatpush1.msra.mxu0 0.0
      %2262 = vmatprep.subr.mxu0 0.0
      %2263 = vmatpush1.msra.mxu0 0.0
      %2264 = vmatprep.subr.mxu0 0.0
      %2265 = vmatpush1.msra.mxu0 0.0
      %2266 = vmatprep.subr.mxu0 0.0
      %2267 = vmatpush1.msra.mxu0 0.0
      %2268 = vmatprep.subr.mxu0 0.0
      %2269 = vmatpush1.msra.mxu0 0.0
      %2270 = vmatprep.subr.mxu0 0.0
      %2271 = vmatpush1.msra.mxu0 0.0
      %2272 = vmatprep.subr.mxu0 0.0
      %2273 = vmatpush1.msra.mxu0 0.0
      %2274 = vmatprep.mubr.f32.mxu0 0.0
      %v2275 = vand.u32 %v1951, 4294901760
      %v2276 = vsub.f32 %v1951, %v2275
      %v2277 = vand.u32 %v2276, 4294901760
      %2278 = vmatmul.mubr.f32.gmra.mrb[0].mxu0 %v2277
      %v2279 = vpop.f32.mrb[0].mxu0
      %v2280 = vadd.f32 %v2203, %v2279
      %v2281 = vpop.f32.mrb[0].mxu0
      %2282 = vdwg.mxu0
      %2283 = vmatprep.subr.mxu0 0.0
      %v2284 = vand.u32 %v1946, 4294901760
      %v2285 = vsub.f32 %v1946, %v2284
      %v2286 = vand.u32 %v2285, 4294901760
      %2287 = vmatpush1.msra.mxu0 %v2286
      %2288 = vmatprep.subr.mxu0 0.0
      %v2289 = vand.u32 %v1947, 4294901760
      %v2290 = vsub.f32 %v1947, %v2289
      %v2291 = vand.u32 %v2290, 4294901760
      %2292 = vmatpush1.msra.mxu0 %v2291
      %2293 = vmatprep.subr.mxu0 0.0
      %v2294 = vand.u32 %v1948, 4294901760
      %v2295 = vsub.f32 %v1948, %v2294
      %v2296 = vand.u32 %v2295, 4294901760
      %2297 = vmatpush1.msra.mxu0 %v2296
      %2298 = vmatprep.subr.mxu0 0.0
      %v2299 = vand.u32 %v1954, 4294901760
      %v2300 = vsub.f32 %v1954, %v2299
      %v2301 = vand.u32 %v2300, 4294901760
      %2302 = vmatpush1.msra.mxu0 %v2301
      %2303 = vmatprep.subr.mxu0 0.0
      %2304 = vmatpush1.msra.mxu0 0.0
      %2305 = vmatprep.subr.mxu0 0.0
      %2306 = vmatpush1.msra.mxu0 0.0
      %2307 = vmatprep.subr.mxu0 0.0
      %2308 = vmatpush1.msra.mxu0 0.0
      %2309 = vmatprep.subr.mxu0 0.0
      %2310 = vmatpush1.msra.mxu0 0.0
      %2311 = vmatprep.subr.mxu0 0.0
      %2312 = vmatpush1.msra.mxu0 0.0
      %2313 = vmatprep.subr.mxu0 0.0
      %2314 = vmatpush1.msra.mxu0 0.0
      %2315 = vmatprep.subr.mxu0 0.0
      %2316 = vmatpush1.msra.mxu0 0.0
      %2317 = vmatprep.subr.mxu0 0.0
      %2318 = vmatpush1.msra.mxu0 0.0
      %2319 = vmatprep.subr.mxu0 0.0
      %2320 = vmatpush1.msra.mxu0 0.0
      %2321 = vmatprep.subr.mxu0 0.0
      %2322 = vmatpush1.msra.mxu0 0.0
      %2323 = vmatprep.subr.mxu0 0.0
      %2324 = vmatpush1.msra.mxu0 0.0
      %2325 = vmatprep.subr.mxu0 0.0
      %2326 = vmatpush1.msra.mxu0 0.0
      %2327 = vmatprep.subr.mxu0 0.0
      %2328 = vmatpush1.msra.mxu0 0.0
      %2329 = vmatprep.subr.mxu0 0.0
      %2330 = vmatpush1.msra.mxu0 0.0
      %2331 = vmatprep.subr.mxu0 0.0
      %2332 = vmatpush1.msra.mxu0 0.0
      %2333 = vmatprep.subr.mxu0 0.0
      %2334 = vmatpush1.msra.mxu0 0.0
      %2335 = vmatprep.subr.mxu0 0.0
      %2336 = vmatpush1.msra.mxu0 0.0
      %2337 = vmatprep.subr.mxu0 0.0
      %2338 = vmatpush1.msra.mxu0 0.0
      %2339 = vmatprep.subr.mxu0 0.0
      %2340 = vmatpush1.msra.mxu0 0.0
      %2341 = vmatprep.subr.mxu0 0.0
      %2342 = vmatpush1.msra.mxu0 0.0
      %2343 = vmatprep.subr.mxu0 0.0
      %2344 = vmatpush1.msra.mxu0 0.0
      %2345 = vmatprep.subr.mxu0 0.0
      %2346 = vmatpush1.msra.mxu0 0.0
      %2347 = vmatprep.subr.mxu0 0.0
      %2348 = vmatpush1.msra.mxu0 0.0
      %2349 = vmatprep.subr.mxu0 0.0
      %2350 = vmatpush1.msra.mxu0 0.0
      %2351 = vmatprep.subr.mxu0 0.0
      %2352 = vmatpush1.msra.mxu0 0.0
      %2353 = vmatprep.subr.mxu0 0.0
      %2354 = vmatpush1.msra.mxu0 0.0
      %2355 = vmatprep.subr.mxu0 0.0
      %2356 = vmatpush1.msra.mxu0 0.0
      %2357 = vmatprep.subr.mxu0 0.0
      %2358 = vmatpush1.msra.mxu0 0.0
      %2359 = vmatprep.mubr.f32.mxu0 0.0
      %v2360 = vand.u32 %v1951, 4294901760
      %2361 = vmatmul.mubr.f32.gmra.mrb[0].mxu0 %v2360
      %v2362 = vpop.f32.mrb[0].mxu0
      %v2363 = vadd.f32 %v2280, %v2362
      %v2364 = vpop.f32.mrb[0].mxu0
      %2365 = vdwg.mxu0
      %2366 = vmatprep.subr.mxu0 0.0
      %v2367 = vand.u32 %v1946, 4294901760
      %2368 = vmatpush1.msra.mxu0 %v2367
      %2369 = vmatprep.subr.mxu0 0.0
      %v2370 = vand.u32 %v1947, 4294901760
      %2371 = vmatpush1.msra.mxu0 %v2370
      %2372 = vmatprep.subr.mxu0 0.0
      %v2373 = vand.u32 %v1948, 4294901760
      %2374 = vmatpush1.msra.mxu0 %v2373
      %2375 = vmatprep.subr.mxu0 0.0
      %v2376 = vand.u32 %v1954, 4294901760
      %2377 = vmatpush1.msra.mxu0 %v2376
      %2378 = vmatprep.subr.mxu0 0.0
      %2379 = vmatpush1.msra.mxu0 0.0
      %2380 = vmatprep.subr.mxu0 0.0
      %2381 = vmatpush1.msra.mxu0 0.0
      %2382 = vmatprep.subr.mxu0 0.0
      %2383 = vmatpush1.msra.mxu0 0.0
      %2384 = vmatprep.subr.mxu0 0.0
      %2385 = vmatpush1.msra.mxu0 0.0
      %2386 = vmatprep.subr.mxu0 0.0
      %2387 = vmatpush1.msra.mxu0 0.0
      %2388 = vmatprep.subr.mxu0 0.0
      %2389 = vmatpush1.msra.mxu0 0.0
      %2390 = vmatprep.subr.mxu0 0.0
      %2391 = vmatpush1.msra.mxu0 0.0
      %2392 = vmatprep.subr.mxu0 0.0
      %2393 = vmatpush1.msra.mxu0 0.0
      %2394 = vmatprep.subr.mxu0 0.0
      %2395 = vmatpush1.msra.mxu0 0.0
      %2396 = vmatprep.subr.mxu0 0.0
      %2397 = vmatpush1.msra.mxu0 0.0
      %2398 = vmatprep.subr.mxu0 0.0
      %2399 = vmatpush1.msra.mxu0 0.0
      %2400 = vmatprep.subr.mxu0 0.0
      %2401 = vmatpush1.msra.mxu0 0.0
      %2402 = vmatprep.subr.mxu0 0.0
      %2403 = vmatpush1.msra.mxu0 0.0
      %2404 = vmatprep.subr.mxu0 0.0
      %2405 = vmatpush1.msra.mxu0 0.0
      %2406 = vmatprep.subr.mxu0 0.0
      %2407 = vmatpush1.msra.mxu0 0.0
      %2408 = vmatprep.subr.mxu0 0.0
      %2409 = vmatpush1.msra.mxu0 0.0
      %2410 = vmatprep.subr.mxu0 0.0
      %2411 = vmatpush1.msra.mxu0 0.0
      %2412 = vmatprep.subr.mxu0 0.0
      %2413 = vmatpush1.msra.mxu0 0.0
      %2414 = vmatprep.subr.mxu0 0.0
      %2415 = vmatpush1.msra.mxu0 0.0
      %2416 = vmatprep.subr.mxu0 0.0
      %2417 = vmatpush1.msra.mxu0 0.0
      %2418 = vmatprep.subr.mxu0 0.0
      %2419 = vmatpush1.msra.mxu0 0.0
      %2420 = vmatprep.subr.mxu0 0.0
      %2421 = vmatpush1.msra.mxu0 0.0
      %2422 = vmatprep.subr.mxu0 0.0
      %2423 = vmatpush1.msra.mxu0 0.0
      %2424 = vmatprep.subr.mxu0 0.0
      %2425 = vmatpush1.msra.mxu0 0.0
      %2426 = vmatprep.subr.mxu0 0.0
      %2427 = vmatpush1.msra.mxu0 0.0
      %2428 = vmatprep.subr.mxu0 0.0
      %2429 = vmatpush1.msra.mxu0 0.0
      %2430 = vmatprep.subr.mxu0 0.0
      %2431 = vmatpush1.msra.mxu0 0.0
      %2432 = vmatprep.subr.mxu0 0.0
      %2433 = vmatpush1.msra.mxu0 0.0
      %2434 = vmatprep.mubr.f32.mxu0 0.0
      %v2435 = vand.u32 %v1951, 4294901760
      %2436 = vmatmul.mubr.f32.gmra.mrb[0].mxu0 %v2435
      %v2437 = vpop.f32.mrb[0].mxu0
      %v2438 = vadd.f32 %v2363, %v2437
      %v2439 = vpop.f32.mrb[0].mxu0
      %2440 = vdwg.mxu0
      %v2441 = vadd.f32 %v1944, %v2438
      %2442 = vst.msk [vmem:[#allocation2 + $0x38] sm:$0xff] %vm1134, %v2441
      %v2443 = vld [vmem:[#allocation2] sm:$0xff]
      %v2444 = vld [vmem:[#allocation2 + $0x8] sm:$0xff]
      %v2445 = vld [vmem:[#allocation2 + $0x10] sm:$0xff]
      %v2446 = vld [vmem:[#allocation2 + $0x18] sm:$0xff]
      %v2447 = vld [vmem:[#allocation2 + $0x20] sm:$0xff]
      %v2448 = vld [vmem:[#allocation2 + $0x28] sm:$0xff]
      %s2449 = scalar_lea.vmem %s277, 16
      %v2450 = vld [vmem:[%s2449] sm:$0xff]
      %v2451 = vld [vmem:[%s2449 + $0x8] sm:$0xff]
      %v2452 = vld [vmem:[%s2449 + $0x10] sm:$0xff]
      %v2453 = vld [vmem:[%s2449 + $0x18] sm:$0xff]
      %v2454 = vld [vmem:[%s2449 + $0x20] sm:$0xff]
      %v2455 = vld [vmem:[%s2449 + $0x28] sm:$0xff]
      %s2456 = scalar_lea.vmem %s2, 64
      %v2457 = vld [vmem:[%s2456] sm:$0xff]
      %v2458 = vld [vmem:[%s2456 + $0x8] sm:$0xff]
      %v2459 = vld [vmem:[%s2456 + $0x10] sm:$0xff]
      %v2460 = vld [vmem:[%s2456 + $0x18] sm:$0x7]
      %v2462 = vsel %vm319, %v2450, 0
      %v2465 = vsel %vm319, %v2451, 0
      %v2468 = vsel %vm319, %v2452, 0
      %v2471 = vsel %vm319, %v2453, 0
      %v2474 = vsel %vm319, %v2454, 0
      %v2477 = vsel %vm319, %v2455, 0
      %v2480 = vsel %vm344, %v2460, 0
      %2482 = vmatprep.subr.mxu0 0.0
      %v2483 = vand.u32 %v2457, 4294901760
      %2484 = vmatpush1.msra.mxu0 %v2483
      %2485 = vmatprep.subr.mxu0 0.0
      %v2486 = vand.u32 %v2458, 4294901760
      %2487 = vmatpush1.msra.mxu0 %v2486
      %2488 = vmatprep.subr.mxu0 0.0
      %v2489 = vand.u32 %v2459, 4294901760
      %2490 = vmatpush1.msra.mxu0 %v2489
      %2491 = vmatprep.subr.mxu0 0.0
      %v2492 = vand.u32 %v2480, 4294901760
      %2493 = vmatpush1.msra.mxu0 %v2492
      %2494 = vmatprep.subr.mxu0 0.0
      %2495 = vmatpush1.msra.mxu0 0.0
      %2496 = vmatprep.subr.mxu0 0.0
      %2497 = vmatpush1.msra.mxu0 0.0
      %2498 = vmatprep.subr.mxu0 0.0
      %2499 = vmatpush1.msra.mxu0 0.0
      %2500 = vmatprep.subr.mxu0 0.0
      %2501 = vmatpush1.msra.mxu0 0.0
      %2502 = vmatprep.subr.mxu0 0.0
      %2503 = vmatpush1.msra.mxu0 0.0
      %2504 = vmatprep.subr.mxu0 0.0
      %2505 = vmatpush1.msra.mxu0 0.0
      %2506 = vmatprep.subr.mxu0 0.0
      %2507 = vmatpush1.msra.mxu0 0.0
      %2508 = vmatprep.subr.mxu0 0.0
      %2509 = vmatpush1.msra.mxu0 0.0
      %2510 = vmatprep.subr.mxu0 0.0
      %2511 = vmatpush1.msra.mxu0 0.0
      %2512 = vmatprep.subr.mxu0 0.0
      %2513 = vmatpush1.msra.mxu0 0.0
      %2514 = vmatprep.subr.mxu0 0.0
      %2515 = vmatpush1.msra.mxu0 0.0
      %2516 = vmatprep.subr.mxu0 0.0
      %2517 = vmatpush1.msra.mxu0 0.0
      %2518 = vmatprep.subr.mxu0 0.0
      %2519 = vmatpush1.msra.mxu0 0.0
      %2520 = vmatprep.subr.mxu0 0.0
      %2521 = vmatpush1.msra.mxu0 0.0
      %2522 = vmatprep.subr.mxu0 0.0
      %2523 = vmatpush1.msra.mxu0 0.0
      %2524 = vmatprep.subr.mxu0 0.0
      %2525 = vmatpush1.msra.mxu0 0.0
      %2526 = vmatprep.subr.mxu0 0.0
      %2527 = vmatpush1.msra.mxu0 0.0
      %2528 = vmatprep.subr.mxu0 0.0
      %2529 = vmatpush1.msra.mxu0 0.0
      %2530 = vmatprep.subr.mxu0 0.0
      %2531 = vmatpush1.msra.mxu0 0.0
      %2532 = vmatprep.subr.mxu0 0.0
      %2533 = vmatpush1.msra.mxu0 0.0
      %2534 = vmatprep.subr.mxu0 0.0
      %2535 = vmatpush1.msra.mxu0 0.0
      %2536 = vmatprep.subr.mxu0 0.0
      %2537 = vmatpush1.msra.mxu0 0.0
      %2538 = vmatprep.subr.mxu0 0.0
      %2539 = vmatpush1.msra.mxu0 0.0
      %2540 = vmatprep.subr.mxu0 0.0
      %2541 = vmatpush1.msra.mxu0 0.0
      %2542 = vmatprep.subr.mxu0 0.0
      %2543 = vmatpush1.msra.mxu0 0.0
      %2544 = vmatprep.subr.mxu0 0.0
      %2545 = vmatpush1.msra.mxu0 0.0
      %2546 = vmatprep.subr.mxu0 0.0
      %2547 = vmatpush1.msra.mxu0 0.0
      %2548 = vmatprep.subr.mxu0 0.0
      %2549 = vmatpush1.msra.mxu0 0.0
      %2550 = vmatprep.mubr.f32.mxu0 0.0
      %v2551 = vand.u32 %v2462, 4294901760
      %v2552 = vsub.f32 %v2462, %v2551
      %v2553 = vand.u32 %v2552, 4294901760
      %v2554 = vsub.f32 %v2552, %v2553
      %v2555 = vand.u32 %v2554, 4294901760
      %2556 = vmatmul.mubr.f32.gmra.mrb[0].mxu0 %v2555
      %v2557 = vpop.f32.mrb[0].mxu0
      %v2558 = vadd.f32 0.0, %v2557
      %v2559 = vpop.f32.mrb[0].mxu0
      %2560 = vmatprep.mubr.f32.mxu0 0.0
      %v2561 = vand.u32 %v2465, 4294901760
      %v2562 = vsub.f32 %v2465, %v2561
      %v2563 = vand.u32 %v2562, 4294901760
      %v2564 = vsub.f32 %v2562, %v2563
      %v2565 = vand.u32 %v2564, 4294901760
      %2566 = vmatmul.mubr.f32.gmra.mrb[0].mxu0 %v2565
      %v2567 = vpop.f32.mrb[0].mxu0
      %v2568 = vadd.f32 0.0, %v2567
      %v2569 = vpop.f32.mrb[0].mxu0
      %2570 = vmatprep.mubr.f32.mxu0 0.0
      %v2571 = vand.u32 %v2468, 4294901760
      %v2572 = vsub.f32 %v2468, %v2571
      %v2573 = vand.u32 %v2572, 4294901760
      %v2574 = vsub.f32 %v2572, %v2573
      %v2575 = vand.u32 %v2574, 4294901760
      %2576 = vmatmul.mubr.f32.gmra.mrb[0].mxu0 %v2575
      %v2577 = vpop.f32.mrb[0].mxu0
      %v2578 = vadd.f32 0.0, %v2577
      %v2579 = vpop.f32.mrb[0].mxu0
      %2580 = vmatprep.mubr.f32.mxu0 0.0
      %v2581 = vand.u32 %v2471, 4294901760
      %v2582 = vsub.f32 %v2471, %v2581
      %v2583 = vand.u32 %v2582, 4294901760
      %v2584 = vsub.f32 %v2582, %v2583
      %v2585 = vand.u32 %v2584, 4294901760
      %2586 = vmatmul.mubr.f32.gmra.mrb[0].mxu0 %v2585
      %v2587 = vpop.f32.mrb[0].mxu0
      %v2588 = vadd.f32 0.0, %v2587
      %v2589 = vpop.f32.mrb[0].mxu0
      %2590 = vmatprep.mubr.f32.mxu0 0.0
      %v2591 = vand.u32 %v2474, 4294901760
      %v2592 = vsub.f32 %v2474, %v2591
      %v2593 = vand.u32 %v2592, 4294901760
      %v2594 = vsub.f32 %v2592, %v2593
      %v2595 = vand.u32 %v2594, 4294901760
      %2596 = vmatmul.mubr.f32.gmra.mrb[0].mxu0 %v2595
      %v2597 = vpop.f32.mrb[0].mxu0
      %v2598 = vadd.f32 0.0, %v2597
      %v2599 = vpop.f32.mrb[0].mxu0
      %2600 = vmatprep.mubr.f32.mxu0 0.0
      %v2601 = vand.u32 %v2477, 4294901760
      %v2602 = vsub.f32 %v2477, %v2601
      %v2603 = vand.u32 %v2602, 4294901760
      %v2604 = vsub.f32 %v2602, %v2603
      %v2605 = vand.u32 %v2604, 4294901760
      %2606 = vmatmul.mubr.f32.gmra.mrb[0].mxu0 %v2605
      %v2607 = vpop.f32.mrb[0].mxu0
      %v2608 = vadd.f32 0.0, %v2607
      %v2609 = vpop.f32.mrb[0].mxu0
      %2610 = vdwg.mxu0
      %2611 = vmatprep.subr.mxu0 0.0
      %v2612 = vand.u32 %v2457, 4294901760
      %v2613 = vsub.f32 %v2457, %v2612
      %v2614 = vand.u32 %v2613, 4294901760
      %v2615 = vsub.f32 %v2613, %v2614
      %v2616 = vand.u32 %v2615, 4294901760
      %2617 = vmatpush1.msra.mxu0 %v2616
      %2618 = vmatprep.subr.mxu0 0.0
      %v2619 = vand.u32 %v2458, 4294901760
      %v2620 = vsub.f32 %v2458, %v2619
      %v2621 = vand.u32 %v2620, 4294901760
      %v2622 = vsub.f32 %v2620, %v2621
      %v2623 = vand.u32 %v2622, 4294901760
      %2624 = vmatpush1.msra.mxu0 %v2623
      %2625 = vmatprep.subr.mxu0 0.0
      %v2626 = vand.u32 %v2459, 4294901760
      %v2627 = vsub.f32 %v2459, %v2626
      %v2628 = vand.u32 %v2627, 4294901760
      %v2629 = vsub.f32 %v2627, %v2628
      %v2630 = vand.u32 %v2629, 4294901760
      %2631 = vmatpush1.msra.mxu0 %v2630
      %2632 = vmatprep.subr.mxu0 0.0
      %v2633 = vand.u32 %v2480, 4294901760
      %v2634 = vsub.f32 %v2480, %v2633
      %v2635 = vand.u32 %v2634, 4294901760
      %v2636 = vsub.f32 %v2634, %v2635
      %v2637 = vand.u32 %v2636, 4294901760
      %2638 = vmatpush1.msra.mxu0 %v2637
      %2639 = vmatprep.subr.mxu0 0.0
      %2640 = vmatpush1.msra.mxu0 0.0
      %2641 = vmatprep.subr.mxu0 0.0
      %2642 = vmatpush1.msra.mxu0 0.0
      %2643 = vmatprep.subr.mxu0 0.0
      %2644 = vmatpush1.msra.mxu0 0.0
      %2645 = vmatprep.subr.mxu0 0.0
      %2646 = vmatpush1.msra.mxu0 0.0
      %2647 = vmatprep.subr.mxu0 0.0
      %2648 = vmatpush1.msra.mxu0 0.0
      %2649 = vmatprep.subr.mxu0 0.0
      %2650 = vmatpush1.msra.mxu0 0.0
      %2651 = vmatprep.subr.mxu0 0.0
      %2652 = vmatpush1.msra.mxu0 0.0
      %2653 = vmatprep.subr.mxu0 0.0
      %2654 = vmatpush1.msra.mxu0 0.0
      %2655 = vmatprep.subr.mxu0 0.0
      %2656 = vmatpush1.msra.mxu0 0.0
      %2657 = vmatprep.subr.mxu0 0.0
      %2658 = vmatpush1.msra.mxu0 0.0
      %2659 = vmatprep.subr.mxu0 0.0
      %2660 = vmatpush1.msra.mxu0 0.0
      %2661 = vmatprep.subr.mxu0 0.0
      %2662 = vmatpush1.msra.mxu0 0.0
      %2663 = vmatprep.subr.mxu0 0.0
      %2664 = vmatpush1.msra.mxu0 0.0
      %2665 = vmatprep.subr.mxu0 0.0
      %2666 = vmatpush1.msra.mxu0 0.0
      %2667 = vmatprep.subr.mxu0 0.0
      %2668 = vmatpush1.msra.mxu0 0.0
      %2669 = vmatprep.subr.mxu0 0.0
      %2670 = vmatpush1.msra.mxu0 0.0
      %2671 = vmatprep.subr.mxu0 0.0
      %2672 = vmatpush1.msra.mxu0 0.0
      %2673 = vmatprep.subr.mxu0 0.0
      %2674 = vmatpush1.msra.mxu0 0.0
      %2675 = vmatprep.subr.mxu0 0.0
      %2676 = vmatpush1.msra.mxu0 0.0
      %2677 = vmatprep.subr.mxu0 0.0
      %2678 = vmatpush1.msra.mxu0 0.0
      %2679 = vmatprep.subr.mxu0 0.0
      %2680 = vmatpush1.msra.mxu0 0.0
      %2681 = vmatprep.subr.mxu0 0.0
      %2682 = vmatpush1.msra.mxu0 0.0
      %2683 = vmatprep.subr.mxu0 0.0
      %2684 = vmatpush1.msra.mxu0 0.0
      %2685 = vmatprep.subr.mxu0 0.0
      %2686 = vmatpush1.msra.mxu0 0.0
      %2687 = vmatprep.subr.mxu0 0.0
      %2688 = vmatpush1.msra.mxu0 0.0
      %2689 = vmatprep.subr.mxu0 0.0
      %2690 = vmatpush1.msra.mxu0 0.0
      %2691 = vmatprep.subr.mxu0 0.0
      %2692 = vmatpush1.msra.mxu0 0.0
      %2693 = vmatprep.subr.mxu0 0.0
      %2694 = vmatpush1.msra.mxu0 0.0
      %2695 = vmatprep.mubr.f32.mxu0 0.0
      %v2696 = vand.u32 %v2462, 4294901760
      %2697 = vmatmul.mubr.f32.gmra.mrb[0].mxu0 %v2696
      %v2698 = vpop.f32.mrb[0].mxu0
      %v2699 = vadd.f32 %v2558, %v2698
      %v2700 = vpop.f32.mrb[0].mxu0
      %2701 = vmatprep.mubr.f32.mxu0 0.0
      %v2702 = vand.u32 %v2465, 4294901760
      %2703 = vmatmul.mubr.f32.gmra.mrb[0].mxu0 %v2702
      %v2704 = vpop.f32.mrb[0].mxu0
      %v2705 = vadd.f32 %v2568, %v2704
      %v2706 = vpop.f32.mrb[0].mxu0
      %2707 = vmatprep.mubr.f32.mxu0 0.0
      %v2708 = vand.u32 %v2468, 4294901760
      %2709 = vmatmul.mubr.f32.gmra.mrb[0].mxu0 %v2708
      %v2710 = vpop.f32.mrb[0].mxu0
      %v2711 = vadd.f32 %v2578, %v2710
      %v2712 = vpop.f32.mrb[0].mxu0
      %2713 = vmatprep.mubr.f32.mxu0 0.0
      %v2714 = vand.u32 %v2471, 4294901760
      %2715 = vmatmul.mubr.f32.gmra.mrb[0].mxu0 %v2714
      %v2716 = vpop.f32.mrb[0].mxu0
      %v2717 = vadd.f32 %v2588, %v2716
      %v2718 = vpop.f32.mrb[0].mxu0
      %2719 = vmatprep.mubr.f32.mxu0 0.0
      %v2720 = vand.u32 %v2474, 4294901760
      %2721 = vmatmul.mubr.f32.gmra.mrb[0].mxu0 %v2720
      %v2722 = vpop.f32.mrb[0].mxu0
      %v2723 = vadd.f32 %v2598, %v2722
      %v2724 = vpop.f32.mrb[0].mxu0
      %2725 = vmatprep.mubr.f32.mxu0 0.0
      %v2726 = vand.u32 %v2477, 4294901760
      %2727 = vmatmul.mubr.f32.gmra.mrb[0].mxu0 %v2726
      %v2728 = vpop.f32.mrb[0].mxu0
      %v2729 = vadd.f32 %v2608, %v2728
      %v2730 = vpop.f32.mrb[0].mxu0
      %2731 = vdwg.mxu0
      %2732 = vmatprep.subr.mxu0 0.0
      %v2733 = vand.u32 %v2457, 4294901760
      %v2734 = vsub.f32 %v2457, %v2733
      %2735 = vmatpush1.msra.mxu0 %v2734
      %2736 = vmatprep.subr.mxu0 0.0
      %v2737 = vand.u32 %v2458, 4294901760
      %v2738 = vsub.f32 %v2458, %v2737
      %2739 = vmatpush1.msra.mxu0 %v2738
      %2740 = vmatprep.subr.mxu0 0.0
      %v2741 = vand.u32 %v2459, 4294901760
      %v2742 = vsub.f32 %v2459, %v2741
      %2743 = vmatpush1.msra.mxu0 %v2742
      %2744 = vmatprep.subr.mxu0 0.0
      %v2745 = vand.u32 %v2480, 4294901760
      %v2746 = vsub.f32 %v2480, %v2745
      %2747 = vmatpush1.msra.mxu0 %v2746
      %2748 = vmatprep.subr.mxu0 0.0
      %2749 = vmatpush1.msra.mxu0 0.0
      %2750 = vmatprep.subr.mxu0 0.0
      %2751 = vmatpush1.msra.mxu0 0.0
      %2752 = vmatprep.subr.mxu0 0.0
      %2753 = vmatpush1.msra.mxu0 0.0
      %2754 = vmatprep.subr.mxu0 0.0
      %2755 = vmatpush1.msra.mxu0 0.0
      %2756 = vmatprep.subr.mxu0 0.0
      %2757 = vmatpush1.msra.mxu0 0.0
      %2758 = vmatprep.subr.mxu0 0.0
      %2759 = vmatpush1.msra.mxu0 0.0
      %2760 = vmatprep.subr.mxu0 0.0
      %2761 = vmatpush1.msra.mxu0 0.0
      %2762 = vmatprep.subr.mxu0 0.0
      %2763 = vmatpush1.msra.mxu0 0.0
      %2764 = vmatprep.subr.mxu0 0.0
      %2765 = vmatpush1.msra.mxu0 0.0
      %2766 = vmatprep.subr.mxu0 0.0
      %2767 = vmatpush1.msra.mxu0 0.0
      %2768 = vmatprep.subr.mxu0 0.0
      %2769 = vmatpush1.msra.mxu0 0.0
      %2770 = vmatprep.subr.mxu0 0.0
      %2771 = vmatpush1.msra.mxu0 0.0
      %2772 = vmatprep.subr.mxu0 0.0
      %2773 = vmatpush1.msra.mxu0 0.0
      %2774 = vmatprep.subr.mxu0 0.0
      %2775 = vmatpush1.msra.mxu0 0.0
      %2776 = vmatprep.subr.mxu0 0.0
      %2777 = vmatpush1.msra.mxu0 0.0
      %2778 = vmatprep.subr.mxu0 0.0
      %2779 = vmatpush1.msra.mxu0 0.0
      %2780 = vmatprep.subr.mxu0 0.0
      %2781 = vmatpush1.msra.mxu0 0.0
      %2782 = vmatprep.subr.mxu0 0.0
      %2783 = vmatpush1.msra.mxu0 0.0
      %2784 = vmatprep.subr.mxu0 0.0
      %2785 = vmatpush1.msra.mxu0 0.0
      %2786 = vmatprep.subr.mxu0 0.0
      %2787 = vmatpush1.msra.mxu0 0.0
      %2788 = vmatprep.subr.mxu0 0.0
      %2789 = vmatpush1.msra.mxu0 0.0
      %2790 = vmatprep.subr.mxu0 0.0
      %2791 = vmatpush1.msra.mxu0 0.0
      %2792 = vmatprep.subr.mxu0 0.0
      %2793 = vmatpush1.msra.mxu0 0.0
      %2794 = vmatprep.subr.mxu0 0.0
      %2795 = vmatpush1.msra.mxu0 0.0
      %2796 = vmatprep.subr.mxu0 0.0
      %2797 = vmatpush1.msra.mxu0 0.0
      %2798 = vmatprep.subr.mxu0 0.0
      %2799 = vmatpush1.msra.mxu0 0.0
      %2800 = vmatprep.subr.mxu0 0.0
      %2801 = vmatpush1.msra.mxu0 0.0
      %2802 = vmatprep.subr.mxu0 0.0
      %2803 = vmatpush1.msra.mxu0 0.0
      %2804 = vmatprep.mubr.f32.mxu0 0.0
      %v2805 = vand.u32 %v2462, 4294901760
      %v2806 = vsub.f32 %v2462, %v2805
      %2807 = vmatmul.mubr.f32.gmra.mrb[0].mxu0 %v2806
      %v2808 = vpop.f32.mrb[0].mxu0
      %v2809 = vadd.f32 %v2699, %v2808
      %v2810 = vpop.f32.mrb[0].mxu0
      %2811 = vmatprep.mubr.f32.mxu0 0.0
      %v2812 = vand.u32 %v2465, 4294901760
      %v2813 = vsub.f32 %v2465, %v2812
      %2814 = vmatmul.mubr.f32.gmra.mrb[0].mxu0 %v2813
      %v2815 = vpop.f32.mrb[0].mxu0
      %v2816 = vadd.f32 %v2705, %v2815
      %v2817 = vpop.f32.mrb[0].mxu0
      %2818 = vmatprep.mubr.f32.mxu0 0.0
      %v2819 = vand.u32 %v2468, 4294901760
      %v2820 = vsub.f32 %v2468, %v2819
      %2821 = vmatmul.mubr.f32.gmra.mrb[0].mxu0 %v2820
      %v2822 = vpop.f32.mrb[0].mxu0
      %v2823 = vadd.f32 %v2711, %v2822
      %v2824 = vpop.f32.mrb[0].mxu0
      %2825 = vmatprep.mubr.f32.mxu0 0.0
      %v2826 = vand.u32 %v2471, 4294901760
      %v2827 = vsub.f32 %v2471, %v2826
      %2828 = vmatmul.mubr.f32.gmra.mrb[0].mxu0 %v2827
      %v2829 = vpop.f32.mrb[0].mxu0
      %v2830 = vadd.f32 %v2717, %v2829
      %v2831 = vpop.f32.mrb[0].mxu0
      %2832 = vmatprep.mubr.f32.mxu0 0.0
      %v2833 = vand.u32 %v2474, 4294901760
      %v2834 = vsub.f32 %v2474, %v2833
      %2835 = vmatmul.mubr.f32.gmra.mrb[0].mxu0 %v2834
      %v2836 = vpop.f32.mrb[0].mxu0
      %v2837 = vadd.f32 %v2723, %v2836
      %v2838 = vpop.f32.mrb[0].mxu0
      %2839 = vmatprep.mubr.f32.mxu0 0.0
      %v2840 = vand.u32 %v2477, 4294901760
      %v2841 = vsub.f32 %v2477, %v2840
      %2842 = vmatmul.mubr.f32.gmra.mrb[0].mxu0 %v2841
      %v2843 = vpop.f32.mrb[0].mxu0
      %v2844 = vadd.f32 %v2729, %v2843
      %v2845 = vpop.f32.mrb[0].mxu0
      %2846 = vdwg.mxu0
      %2847 = vmatprep.subr.mxu0 0.0
      %v2848 = vand.u32 %v2457, 4294901760
      %2849 = vmatpush1.msra.mxu0 %v2848
      %2850 = vmatprep.subr.mxu0 0.0
      %v2851 = vand.u32 %v2458, 4294901760
      %2852 = vmatpush1.msra.mxu0 %v2851
      %2853 = vmatprep.subr.mxu0 0.0
      %v2854 = vand.u32 %v2459, 4294901760
      %2855 = vmatpush1.msra.mxu0 %v2854
      %2856 = vmatprep.subr.mxu0 0.0
      %v2857 = vand.u32 %v2480, 4294901760
      %2858 = vmatpush1.msra.mxu0 %v2857
      %2859 = vmatprep.subr.mxu0 0.0
      %2860 = vmatpush1.msra.mxu0 0.0
      %2861 = vmatprep.subr.mxu0 0.0
      %2862 = vmatpush1.msra.mxu0 0.0
      %2863 = vmatprep.subr.mxu0 0.0
      %2864 = vmatpush1.msra.mxu0 0.0
      %2865 = vmatprep.subr.mxu0 0.0
      %2866 = vmatpush1.msra.mxu0 0.0
      %2867 = vmatprep.subr.mxu0 0.0
      %2868 = vmatpush1.msra.mxu0 0.0
      %2869 = vmatprep.subr.mxu0 0.0
      %2870 = vmatpush1.msra.mxu0 0.0
      %2871 = vmatprep.subr.mxu0 0.0
      %2872 = vmatpush1.msra.mxu0 0.0
      %2873 = vmatprep.subr.mxu0 0.0
      %2874 = vmatpush1.msra.mxu0 0.0
      %2875 = vmatprep.subr.mxu0 0.0
      %2876 = vmatpush1.msra.mxu0 0.0
      %2877 = vmatprep.subr.mxu0 0.0
      %2878 = vmatpush1.msra.mxu0 0.0
      %2879 = vmatprep.subr.mxu0 0.0
      %2880 = vmatpush1.msra.mxu0 0.0
      %2881 = vmatprep.subr.mxu0 0.0
      %2882 = vmatpush1.msra.mxu0 0.0
      %2883 = vmatprep.subr.mxu0 0.0
      %2884 = vmatpush1.msra.mxu0 0.0
      %2885 = vmatprep.subr.mxu0 0.0
      %2886 = vmatpush1.msra.mxu0 0.0
      %2887 = vmatprep.subr.mxu0 0.0
      %2888 = vmatpush1.msra.mxu0 0.0
      %2889 = vmatprep.subr.mxu0 0.0
      %2890 = vmatpush1.msra.mxu0 0.0
      %2891 = vmatprep.subr.mxu0 0.0
      %2892 = vmatpush1.msra.mxu0 0.0
      %2893 = vmatprep.subr.mxu0 0.0
      %2894 = vmatpush1.msra.mxu0 0.0
      %2895 = vmatprep.subr.mxu0 0.0
      %2896 = vmatpush1.msra.mxu0 0.0
      %2897 = vmatprep.subr.mxu0 0.0
      %2898 = vmatpush1.msra.mxu0 0.0
      %2899 = vmatprep.subr.mxu0 0.0
      %2900 = vmatpush1.msra.mxu0 0.0
      %2901 = vmatprep.subr.mxu0 0.0
      %2902 = vmatpush1.msra.mxu0 0.0
      %2903 = vmatprep.subr.mxu0 0.0
      %2904 = vmatpush1.msra.mxu0 0.0
      %2905 = vmatprep.subr.mxu0 0.0
      %2906 = vmatpush1.msra.mxu0 0.0
      %2907 = vmatprep.subr.mxu0 0.0
      %2908 = vmatpush1.msra.mxu0 0.0
      %2909 = vmatprep.subr.mxu0 0.0
      %2910 = vmatpush1.msra.mxu0 0.0
      %2911 = vmatprep.subr.mxu0 0.0
      %2912 = vmatpush1.msra.mxu0 0.0
      %2913 = vmatprep.subr.mxu0 0.0
      %2914 = vmatpush1.msra.mxu0 0.0
      %2915 = vmatprep.mubr.f32.mxu0 0.0
      %v2916 = vand.u32 %v2462, 4294901760
      %v2917 = vsub.f32 %v2462, %v2916
      %v2918 = vand.u32 %v2917, 4294901760
      %2919 = vmatmul.mubr.f32.gmra.mrb[0].mxu0 %v2918
      %v2920 = vpop.f32.mrb[0].mxu0
      %v2921 = vadd.f32 %v2809, %v2920
      %v2922 = vpop.f32.mrb[0].mxu0
      %2923 = vmatprep.mubr.f32.mxu0 0.0
      %v2924 = vand.u32 %v2465, 4294901760
      %v2925 = vsub.f32 %v2465, %v2924
      %v2926 = vand.u32 %v2925, 4294901760
      %2927 = vmatmul.mubr.f32.gmra.mrb[0].mxu0 %v2926
      %v2928 = vpop.f32.mrb[0].mxu0
      %v2929 = vadd.f32 %v2816, %v2928
      %v2930 = vpop.f32.mrb[0].mxu0
      %2931 = vmatprep.mubr.f32.mxu0 0.0
      %v2932 = vand.u32 %v2468, 4294901760
      %v2933 = vsub.f32 %v2468, %v2932
      %v2934 = vand.u32 %v2933, 4294901760
      %2935 = vmatmul.mubr.f32.gmra.mrb[0].mxu0 %v2934
      %v2936 = vpop.f32.mrb[0].mxu0
      %v2937 = vadd.f32 %v2823, %v2936
      %v2938 = vpop.f32.mrb[0].mxu0
      %2939 = vmatprep.mubr.f32.mxu0 0.0
      %v2940 = vand.u32 %v2471, 4294901760
      %v2941 = vsub.f32 %v2471, %v2940
      %v2942 = vand.u32 %v2941, 4294901760
      %2943 = vmatmul.mubr.f32.gmra.mrb[0].mxu0 %v2942
      %v2944 = vpop.f32.mrb[0].mxu0
      %v2945 = vadd.f32 %v2830, %v2944
      %v2946 = vpop.f32.mrb[0].mxu0
      %2947 = vmatprep.mubr.f32.mxu0 0.0
      %v2948 = vand.u32 %v2474, 4294901760
      %v2949 = vsub.f32 %v2474, %v2948
      %v2950 = vand.u32 %v2949, 4294901760
      %2951 = vmatmul.mubr.f32.gmra.mrb[0].mxu0 %v2950
      %v2952 = vpop.f32.mrb[0].mxu0
      %v2953 = vadd.f32 %v2837, %v2952
      %v2954 = vpop.f32.mrb[0].mxu0
      %2955 = vmatprep.mubr.f32.mxu0 0.0
      %v2956 = vand.u32 %v2477, 4294901760
      %v2957 = vsub.f32 %v2477, %v2956
      %v2958 = vand.u32 %v2957, 4294901760
      %2959 = vmatmul.mubr.f32.gmra.mrb[0].mxu0 %v2958
      %v2960 = vpop.f32.mrb[0].mxu0
      %v2961 = vadd.f32 %v2844, %v2960
      %v2962 = vpop.f32.mrb[0].mxu0
      %2963 = vdwg.mxu0
      %2964 = vmatprep.subr.mxu0 0.0
      %v2965 = vand.u32 %v2457, 4294901760
      %v2966 = vsub.f32 %v2457, %v2965
      %v2967 = vand.u32 %v2966, 4294901760
      %2968 = vmatpush1.msra.mxu0 %v2967
      %2969 = vmatprep.subr.mxu0 0.0
      %v2970 = vand.u32 %v2458, 4294901760
      %v2971 = vsub.f32 %v2458, %v2970
      %v2972 = vand.u32 %v2971, 4294901760
      %2973 = vmatpush1.msra.mxu0 %v2972
      %2974 = vmatprep.subr.mxu0 0.0
      %v2975 = vand.u32 %v2459, 4294901760
      %v2976 = vsub.f32 %v2459, %v2975
      %v2977 = vand.u32 %v2976, 4294901760
      %2978 = vmatpush1.msra.mxu0 %v2977
      %2979 = vmatprep.subr.mxu0 0.0
      %v2980 = vand.u32 %v2480, 4294901760
      %v2981 = vsub.f32 %v2480, %v2980
      %v2982 = vand.u32 %v2981, 4294901760
      %2983 = vmatpush1.msra.mxu0 %v2982
      %2984 = vmatprep.subr.mxu0 0.0
      %2985 = vmatpush1.msra.mxu0 0.0
      %2986 = vmatprep.subr.mxu0 0.0
      %2987 = vmatpush1.msra.mxu0 0.0
      %2988 = vmatprep.subr.mxu0 0.0
      %2989 = vmatpush1.msra.mxu0 0.0
      %2990 = vmatprep.subr.mxu0 0.0
      %2991 = vmatpush1.msra.mxu0 0.0
      %2992 = vmatprep.subr.mxu0 0.0
      %2993 = vmatpush1.msra.mxu0 0.0
      %2994 = vmatprep.subr.mxu0 0.0
      %2995 = vmatpush1.msra.mxu0 0.0
      %2996 = vmatprep.subr.mxu0 0.0
      %2997 = vmatpush1.msra.mxu0 0.0
      %2998 = vmatprep.subr.mxu0 0.0
      %2999 = vmatpush1.msra.mxu0 0.0
      %3000 = vmatprep.subr.mxu0 0.0
      %3001 = vmatpush1.msra.mxu0 0.0
      %3002 = vmatprep.subr.mxu0 0.0
      %3003 = vmatpush1.msra.mxu0 0.0
      %3004 = vmatprep.subr.mxu0 0.0
      %3005 = vmatpush1.msra.mxu0 0.0
      %3006 = vmatprep.subr.mxu0 0.0
      %3007 = vmatpush1.msra.mxu0 0.0
      %3008 = vmatprep.subr.mxu0 0.0
      %3009 = vmatpush1.msra.mxu0 0.0
      %3010 = vmatprep.subr.mxu0 0.0
      %3011 = vmatpush1.msra.mxu0 0.0
      %3012 = vmatprep.subr.mxu0 0.0
      %3013 = vmatpush1.msra.mxu0 0.0
      %3014 = vmatprep.subr.mxu0 0.0
      %3015 = vmatpush1.msra.mxu0 0.0
      %3016 = vmatprep.subr.mxu0 0.0
      %3017 = vmatpush1.msra.mxu0 0.0
      %3018 = vmatprep.subr.mxu0 0.0
      %3019 = vmatpush1.msra.mxu0 0.0
      %3020 = vmatprep.subr.mxu0 0.0
      %3021 = vmatpush1.msra.mxu0 0.0
      %3022 = vmatprep.subr.mxu0 0.0
      %3023 = vmatpush1.msra.mxu0 0.0
      %3024 = vmatprep.subr.mxu0 0.0
      %3025 = vmatpush1.msra.mxu0 0.0
      %3026 = vmatprep.subr.mxu0 0.0
      %3027 = vmatpush1.msra.mxu0 0.0
      %3028 = vmatprep.subr.mxu0 0.0
      %3029 = vmatpush1.msra.mxu0 0.0
      %3030 = vmatprep.subr.mxu0 0.0
      %3031 = vmatpush1.msra.mxu0 0.0
      %3032 = vmatprep.subr.mxu0 0.0
      %3033 = vmatpush1.msra.mxu0 0.0
      %3034 = vmatprep.subr.mxu0 0.0
      %3035 = vmatpush1.msra.mxu0 0.0
      %3036 = vmatprep.subr.mxu0 0.0
      %3037 = vmatpush1.msra.mxu0 0.0
      %3038 = vmatprep.subr.mxu0 0.0
      %3039 = vmatpush1.msra.mxu0 0.0
      %3040 = vmatprep.mubr.f32.mxu0 0.0
      %v3041 = vand.u32 %v2462, 4294901760
      %3042 = vmatmul.mubr.f32.gmra.mrb[0].mxu0 %v3041
      %v3043 = vpop.f32.mrb[0].mxu0
      %v3044 = vadd.f32 %v2921, %v3043
      %v3045 = vpop.f32.mrb[0].mxu0
      %3046 = vmatprep.mubr.f32.mxu0 0.0
      %v3047 = vand.u32 %v2465, 4294901760
      %3048 = vmatmul.mubr.f32.gmra.mrb[0].mxu0 %v3047
      %v3049 = vpop.f32.mrb[0].mxu0
      %v3050 = vadd.f32 %v2929, %v3049
      %v3051 = vpop.f32.mrb[0].mxu0
      %3052 = vmatprep.mubr.f32.mxu0 0.0
      %v3053 = vand.u32 %v2468, 4294901760
      %3054 = vmatmul.mubr.f32.gmra.mrb[0].mxu0 %v3053
      %v3055 = vpop.f32.mrb[0].mxu0
      %v3056 = vadd.f32 %v2937, %v3055
      %v3057 = vpop.f32.mrb[0].mxu0
      %3058 = vmatprep.mubr.f32.mxu0 0.0
      %v3059 = vand.u32 %v2471, 4294901760
      %3060 = vmatmul.mubr.f32.gmra.mrb[0].mxu0 %v3059
      %v3061 = vpop.f32.mrb[0].mxu0
      %v3062 = vadd.f32 %v2945, %v3061
      %v3063 = vpop.f32.mrb[0].mxu0
      %3064 = vmatprep.mubr.f32.mxu0 0.0
      %v3065 = vand.u32 %v2474, 4294901760
      %3066 = vmatmul.mubr.f32.gmra.mrb[0].mxu0 %v3065
      %v3067 = vpop.f32.mrb[0].mxu0
      %v3068 = vadd.f32 %v2953, %v3067
      %v3069 = vpop.f32.mrb[0].mxu0
      %3070 = vmatprep.mubr.f32.mxu0 0.0
      %v3071 = vand.u32 %v2477, 4294901760
      %3072 = vmatmul.mubr.f32.gmra.mrb[0].mxu0 %v3071
      %v3073 = vpop.f32.mrb[0].mxu0
      %v3074 = vadd.f32 %v2961, %v3073
      %v3075 = vpop.f32.mrb[0].mxu0
      %3076 = vdwg.mxu0
      %3077 = vmatprep.subr.mxu0 0.0
      %v3078 = vand.u32 %v2457, 4294901760
      %3079 = vmatpush1.msra.mxu0 %v3078
      %3080 = vmatprep.subr.mxu0 0.0
      %v3081 = vand.u32 %v2458, 4294901760
      %3082 = vmatpush1.msra.mxu0 %v3081
      %3083 = vmatprep.subr.mxu0 0.0
      %v3084 = vand.u32 %v2459, 4294901760
      %3085 = vmatpush1.msra.mxu0 %v3084
      %3086 = vmatprep.subr.mxu0 0.0
      %v3087 = vand.u32 %v2480, 4294901760
      %3088 = vmatpush1.msra.mxu0 %v3087
      %3089 = vmatprep.subr.mxu0 0.0
      %3090 = vmatpush1.msra.mxu0 0.0
      %3091 = vmatprep.subr.mxu0 0.0
      %3092 = vmatpush1.msra.mxu0 0.0
      %3093 = vmatprep.subr.mxu0 0.0
      %3094 = vmatpush1.msra.mxu0 0.0
      %3095 = vmatprep.subr.mxu0 0.0
      %3096 = vmatpush1.msra.mxu0 0.0
      %3097 = vmatprep.subr.mxu0 0.0
      %3098 = vmatpush1.msra.mxu0 0.0
      %3099 = vmatprep.subr.mxu0 0.0
      %3100 = vmatpush1.msra.mxu0 0.0
      %3101 = vmatprep.subr.mxu0 0.0
      %3102 = vmatpush1.msra.mxu0 0.0
      %3103 = vmatprep.subr.mxu0 0.0
      %3104 = vmatpush1.msra.mxu0 0.0
      %3105 = vmatprep.subr.mxu0 0.0
      %3106 = vmatpush1.msra.mxu0 0.0
      %3107 = vmatprep.subr.mxu0 0.0
      %3108 = vmatpush1.msra.mxu0 0.0
      %3109 = vmatprep.subr.mxu0 0.0
      %3110 = vmatpush1.msra.mxu0 0.0
      %3111 = vmatprep.subr.mxu0 0.0
      %3112 = vmatpush1.msra.mxu0 0.0
      %3113 = vmatprep.subr.mxu0 0.0
      %3114 = vmatpush1.msra.mxu0 0.0
      %3115 = vmatprep.subr.mxu0 0.0
      %3116 = vmatpush1.msra.mxu0 0.0
      %3117 = vmatprep.subr.mxu0 0.0
      %3118 = vmatpush1.msra.mxu0 0.0
      %3119 = vmatprep.subr.mxu0 0.0
      %3120 = vmatpush1.msra.mxu0 0.0
      %3121 = vmatprep.subr.mxu0 0.0
      %3122 = vmatpush1.msra.mxu0 0.0
      %3123 = vmatprep.subr.mxu0 0.0
      %3124 = vmatpush1.msra.mxu0 0.0
      %3125 = vmatprep.subr.mxu0 0.0
      %3126 = vmatpush1.msra.mxu0 0.0
      %3127 = vmatprep.subr.mxu0 0.0
      %3128 = vmatpush1.msra.mxu0 0.0
      %3129 = vmatprep.subr.mxu0 0.0
      %3130 = vmatpush1.msra.mxu0 0.0
      %3131 = vmatprep.subr.mxu0 0.0
      %3132 = vmatpush1.msra.mxu0 0.0
      %3133 = vmatprep.subr.mxu0 0.0
      %3134 = vmatpush1.msra.mxu0 0.0
      %3135 = vmatprep.subr.mxu0 0.0
      %3136 = vmatpush1.msra.mxu0 0.0
      %3137 = vmatprep.subr.mxu0 0.0
      %3138 = vmatpush1.msra.mxu0 0.0
      %3139 = vmatprep.subr.mxu0 0.0
      %3140 = vmatpush1.msra.mxu0 0.0
      %3141 = vmatprep.subr.mxu0 0.0
      %3142 = vmatpush1.msra.mxu0 0.0
      %3143 = vmatprep.subr.mxu0 0.0
      %3144 = vmatpush1.msra.mxu0 0.0
      %3145 = vmatprep.mubr.f32.mxu0 0.0
      %v3146 = vand.u32 %v2462, 4294901760
      %3147 = vmatmul.mubr.f32.gmra.mrb[0].mxu0 %v3146
      %v3148 = vpop.f32.mrb[0].mxu0
      %v3149 = vadd.f32 %v3044, %v3148
      %v3150 = vpop.f32.mrb[0].mxu0
      %3151 = vmatprep.mubr.f32.mxu0 0.0
      %v3152 = vand.u32 %v2465, 4294901760
      %3153 = vmatmul.mubr.f32.gmra.mrb[0].mxu0 %v3152
      %v3154 = vpop.f32.mrb[0].mxu0
      %v3155 = vadd.f32 %v3050, %v3154
      %v3156 = vpop.f32.mrb[0].mxu0
      %3157 = vmatprep.mubr.f32.mxu0 0.0
      %v3158 = vand.u32 %v2468, 4294901760
      %3159 = vmatmul.mubr.f32.gmra.mrb[0].mxu0 %v3158
      %v3160 = vpop.f32.mrb[0].mxu0
      %v3161 = vadd.f32 %v3056, %v3160
      %v3162 = vpop.f32.mrb[0].mxu0
      %3163 = vmatprep.mubr.f32.mxu0 0.0
      %v3164 = vand.u32 %v2471, 4294901760
      %3165 = vmatmul.mubr.f32.gmra.mrb[0].mxu0 %v3164
      %v3166 = vpop.f32.mrb[0].mxu0
      %v3167 = vadd.f32 %v3062, %v3166
      %v3168 = vpop.f32.mrb[0].mxu0
      %3169 = vmatprep.mubr.f32.mxu0 0.0
      %v3170 = vand.u32 %v2474, 4294901760
      %3171 = vmatmul.mubr.f32.gmra.mrb[0].mxu0 %v3170
      %v3172 = vpop.f32.mrb[0].mxu0
      %v3173 = vadd.f32 %v3068, %v3172
      %v3174 = vpop.f32.mrb[0].mxu0
      %3175 = vmatprep.mubr.f32.mxu0 0.0
      %v3176 = vand.u32 %v2477, 4294901760
      %3177 = vmatmul.mubr.f32.gmra.mrb[0].mxu0 %v3176
      %v3178 = vpop.f32.mrb[0].mxu0
      %v3179 = vadd.f32 %v3074, %v3178
      %v3180 = vpop.f32.mrb[0].mxu0
      %3181 = vdwg.mxu0
      %v3182 = vadd.f32 %v2443, %v3149
      %v3183 = vadd.f32 %v2444, %v3155
      %v3184 = vadd.f32 %v2445, %v3161
      %v3185 = vadd.f32 %v2446, %v3167
      %v3186 = vadd.f32 %v2447, %v3173
      %v3187 = vadd.f32 %v2448, %v3179
      %3188 = vst.msk [vmem:[#allocation2] sm:$0xff] %vm1134, %v3182
      %3189 = vst.msk [vmem:[#allocation2 + $0x8] sm:$0xff] %vm1134, %v3183
      %3190 = vst.msk [vmem:[#allocation2 + $0x10] sm:$0xff] %vm1134, %v3184
      %3191 = vst.msk [vmem:[#allocation2 + $0x18] sm:$0xff] %vm1134, %v3185
      %3192 = vst.msk [vmem:[#allocation2 + $0x20] sm:$0xff] %vm1134, %v3186
      %3193 = vst.msk [vmem:[#allocation2 + $0x28] sm:$0xff] %vm1134, %v3187
      %v3194 = vld [vmem:[#allocation2 + $0x30] sm:$0xff]
      %v3195 = vld [vmem:[#allocation2 + $0x38] sm:$0xff]
      %v3196 = vld [vmem:[%s293] sm:$0xff]
      %v3197 = vld [vmem:[%s293 + $0x8] sm:$0xff]
      %v3198 = vld [vmem:[%s2456] sm:$0xff]
      %v3199 = vld [vmem:[%s2456 + $0x8] sm:$0xff]
      %v3200 = vld [vmem:[%s2456 + $0x10] sm:$0xff]
      %v3201 = vld [vmem:[%s2456 + $0x18] sm:$0x7]
      %v3203 = vsel %vm319, %v3196, 0
      %v3206 = vsel %vm319, %v3197, 0
      %v3209 = vsel %vm344, %v3201, 0
      %3211 = vmatprep.subr.mxu0 0.0
      %v3212 = vand.u32 %v3198, 4294901760
      %3213 = vmatpush1.msra.mxu0 %v3212
      %3214 = vmatprep.subr.mxu0 0.0
      %v3215 = vand.u32 %v3199, 4294901760
      %3216 = vmatpush1.msra.mxu0 %v3215
      %3217 = vmatprep.subr.mxu0 0.0
      %v3218 = vand.u32 %v3200, 4294901760
      %3219 = vmatpush1.msra.mxu0 %v3218
      %3220 = vmatprep.subr.mxu0 0.0
      %v3221 = vand.u32 %v3209, 4294901760
      %3222 = vmatpush1.msra.mxu0 %v3221
      %3223 = vmatprep.subr.mxu0 0.0
      %3224 = vmatpush1.msra.mxu0 0.0
      %3225 = vmatprep.subr.mxu0 0.0
      %3226 = vmatpush1.msra.mxu0 0.0
      %3227 = vmatprep.subr.mxu0 0.0
      %3228 = vmatpush1.msra.mxu0 0.0
      %3229 = vmatprep.subr.mxu0 0.0
      %3230 = vmatpush1.msra.mxu0 0.0
      %3231 = vmatprep.subr.mxu0 0.0
      %3232 = vmatpush1.msra.mxu0 0.0
      %3233 = vmatprep.subr.mxu0 0.0
      %3234 = vmatpush1.msra.mxu0 0.0
      %3235 = vmatprep.subr.mxu0 0.0
      %3236 = vmatpush1.msra.mxu0 0.0
      %3237 = vmatprep.subr.mxu0 0.0
      %3238 = vmatpush1.msra.mxu0 0.0
      %3239 = vmatprep.subr.mxu0 0.0
      %3240 = vmatpush1.msra.mxu0 0.0
      %3241 = vmatprep.subr.mxu0 0.0
      %3242 = vmatpush1.msra.mxu0 0.0
      %3243 = vmatprep.subr.mxu0 0.0
      %3244 = vmatpush1.msra.mxu0 0.0
      %3245 = vmatprep.subr.mxu0 0.0
      %3246 = vmatpush1.msra.mxu0 0.0
      %3247 = vmatprep.subr.mxu0 0.0
      %3248 = vmatpush1.msra.mxu0 0.0
      %3249 = vmatprep.subr.mxu0 0.0
      %3250 = vmatpush1.msra.mxu0 0.0
      %3251 = vmatprep.subr.mxu0 0.0
      %3252 = vmatpush1.msra.mxu0 0.0
      %3253 = vmatprep.subr.mxu0 0.0
      %3254 = vmatpush1.msra.mxu0 0.0
      %3255 = vmatprep.subr.mxu0 0.0
      %3256 = vmatpush1.msra.mxu0 0.0
      %3257 = vmatprep.subr.mxu0 0.0
      %3258 = vmatpush1.msra.mxu0 0.0
      %3259 = vmatprep.subr.mxu0 0.0
      %3260 = vmatpush1.msra.mxu0 0.0
      %3261 = vmatprep.subr.mxu0 0.0
      %3262 = vmatpush1.msra.mxu0 0.0
      %3263 = vmatprep.subr.mxu0 0.0
      %3264 = vmatpush1.msra.mxu0 0.0
      %3265 = vmatprep.subr.mxu0 0.0
      %3266 = vmatpush1.msra.mxu0 0.0
      %3267 = vmatprep.subr.mxu0 0.0
      %3268 = vmatpush1.msra.mxu0 0.0
      %3269 = vmatprep.subr.mxu0 0.0
      %3270 = vmatpush1.msra.mxu0 0.0
      %3271 = vmatprep.subr.mxu0 0.0
      %3272 = vmatpush1.msra.mxu0 0.0
      %3273 = vmatprep.subr.mxu0 0.0
      %3274 = vmatpush1.msra.mxu0 0.0
      %3275 = vmatprep.subr.mxu0 0.0
      %3276 = vmatpush1.msra.mxu0 0.0
      %3277 = vmatprep.subr.mxu0 0.0
      %3278 = vmatpush1.msra.mxu0 0.0
      %3279 = vmatprep.mubr.f32.mxu0 0.0
      %v3280 = vand.u32 %v3203, 4294901760
      %v3281 = vsub.f32 %v3203, %v3280
      %v3282 = vand.u32 %v3281, 4294901760
      %v3283 = vsub.f32 %v3281, %v3282
      %v3284 = vand.u32 %v3283, 4294901760
      %3285 = vmatmul.mubr.f32.gmra.mrb[0].mxu0 %v3284
      %v3286 = vpop.f32.mrb[0].mxu0
      %v3287 = vadd.f32 0.0, %v3286
      %v3288 = vpop.f32.mrb[0].mxu0
      %3289 = vmatprep.mubr.f32.mxu0 0.0
      %v3290 = vand.u32 %v3206, 4294901760
      %v3291 = vsub.f32 %v3206, %v3290
      %v3292 = vand.u32 %v3291, 4294901760
      %v3293 = vsub.f32 %v3291, %v3292
      %v3294 = vand.u32 %v3293, 4294901760
      %3295 = vmatmul.mubr.f32.gmra.mrb[0].mxu0 %v3294
      %v3296 = vpop.f32.mrb[0].mxu0
      %v3297 = vadd.f32 0.0, %v3296
      %v3298 = vpop.f32.mrb[0].mxu0
      %3299 = vdwg.mxu0
      %3300 = vmatprep.subr.mxu0 0.0
      %v3301 = vand.u32 %v3198, 4294901760
      %v3302 = vsub.f32 %v3198, %v3301
      %v3303 = vand.u32 %v3302, 4294901760
      %v3304 = vsub.f32 %v3302, %v3303
      %v3305 = vand.u32 %v3304, 4294901760
      %3306 = vmatpush1.msra.mxu0 %v3305
      %3307 = vmatprep.subr.mxu0 0.0
      %v3308 = vand.u32 %v3199, 4294901760
      %v3309 = vsub.f32 %v3199, %v3308
      %v3310 = vand.u32 %v3309, 4294901760
      %v3311 = vsub.f32 %v3309, %v3310
      %v3312 = vand.u32 %v3311, 4294901760
      %3313 = vmatpush1.msra.mxu0 %v3312
      %3314 = vmatprep.subr.mxu0 0.0
      %v3315 = vand.u32 %v3200, 4294901760
      %v3316 = vsub.f32 %v3200, %v3315
      %v3317 = vand.u32 %v3316, 4294901760
      %v3318 = vsub.f32 %v3316, %v3317
      %v3319 = vand.u32 %v3318, 4294901760
      %3320 = vmatpush1.msra.mxu0 %v3319
      %3321 = vmatprep.subr.mxu0 0.0
      %v3322 = vand.u32 %v3209, 4294901760
      %v3323 = vsub.f32 %v3209, %v3322
      %v3324 = vand.u32 %v3323, 4294901760
      %v3325 = vsub.f32 %v3323, %v3324
      %v3326 = vand.u32 %v3325, 4294901760
      %3327 = vmatpush1.msra.mxu0 %v3326
      %3328 = vmatprep.subr.mxu0 0.0
      %3329 = vmatpush1.msra.mxu0 0.0
      %3330 = vmatprep.subr.mxu0 0.0
      %3331 = vmatpush1.msra.mxu0 0.0
      %3332 = vmatprep.subr.mxu0 0.0
      %3333 = vmatpush1.msra.mxu0 0.0
      %3334 = vmatprep.subr.mxu0 0.0
      %3335 = vmatpush1.msra.mxu0 0.0
      %3336 = vmatprep.subr.mxu0 0.0
      %3337 = vmatpush1.msra.mxu0 0.0
      %3338 = vmatprep.subr.mxu0 0.0
      %3339 = vmatpush1.msra.mxu0 0.0
      %3340 = vmatprep.subr.mxu0 0.0
      %3341 = vmatpush1.msra.mxu0 0.0
      %3342 = vmatprep.subr.mxu0 0.0
      %3343 = vmatpush1.msra.mxu0 0.0
      %3344 = vmatprep.subr.mxu0 0.0
      %3345 = vmatpush1.msra.mxu0 0.0
      %3346 = vmatprep.subr.mxu0 0.0
      %3347 = vmatpush1.msra.mxu0 0.0
      %3348 = vmatprep.subr.mxu0 0.0
      %3349 = vmatpush1.msra.mxu0 0.0
      %3350 = vmatprep.subr.mxu0 0.0
      %3351 = vmatpush1.msra.mxu0 0.0
      %3352 = vmatprep.subr.mxu0 0.0
      %3353 = vmatpush1.msra.mxu0 0.0
      %3354 = vmatprep.subr.mxu0 0.0
      %3355 = vmatpush1.msra.mxu0 0.0
      %3356 = vmatprep.subr.mxu0 0.0
      %3357 = vmatpush1.msra.mxu0 0.0
      %3358 = vmatprep.subr.mxu0 0.0
      %3359 = vmatpush1.msra.mxu0 0.0
      %3360 = vmatprep.subr.mxu0 0.0
      %3361 = vmatpush1.msra.mxu0 0.0
      %3362 = vmatprep.subr.mxu0 0.0
      %3363 = vmatpush1.msra.mxu0 0.0
      %3364 = vmatprep.subr.mxu0 0.0
      %3365 = vmatpush1.msra.mxu0 0.0
      %3366 = vmatprep.subr.mxu0 0.0
      %3367 = vmatpush1.msra.mxu0 0.0
      %3368 = vmatprep.subr.mxu0 0.0
      %3369 = vmatpush1.msra.mxu0 0.0
      %3370 = vmatprep.subr.mxu0 0.0
      %3371 = vmatpush1.msra.mxu0 0.0
      %3372 = vmatprep.subr.mxu0 0.0
      %3373 = vmatpush1.msra.mxu0 0.0
      %3374 = vmatprep.subr.mxu0 0.0
      %3375 = vmatpush1.msra.mxu0 0.0
      %3376 = vmatprep.subr.mxu0 0.0
      %3377 = vmatpush1.msra.mxu0 0.0
      %3378 = vmatprep.subr.mxu0 0.0
      %3379 = vmatpush1.msra.mxu0 0.0
      %3380 = vmatprep.subr.mxu0 0.0
      %3381 = vmatpush1.msra.mxu0 0.0
      %3382 = vmatprep.subr.mxu0 0.0
      %3383 = vmatpush1.msra.mxu0 0.0
      %3384 = vmatprep.mubr.f32.mxu0 0.0
      %v3385 = vand.u32 %v3203, 4294901760
      %3386 = vmatmul.mubr.f32.gmra.mrb[0].mxu0 %v3385
      %v3387 = vpop.f32.mrb[0].mxu0
      %v3388 = vadd.f32 %v3287, %v3387
      %v3389 = vpop.f32.mrb[0].mxu0
      %3390 = vmatprep.mubr.f32.mxu0 0.0
      %v3391 = vand.u32 %v3206, 4294901760
      %3392 = vmatmul.mubr.f32.gmra.mrb[0].mxu0 %v3391
      %v3393 = vpop.f32.mrb[0].mxu0
      %v3394 = vadd.f32 %v3297, %v3393
      %v3395 = vpop.f32.mrb[0].mxu0
      %3396 = vdwg.mxu0
      %3397 = vmatprep.subr.mxu0 0.0
      %v3398 = vand.u32 %v3198, 4294901760
      %v3399 = vsub.f32 %v3198, %v3398
      %3400 = vmatpush1.msra.mxu0 %v3399
      %3401 = vmatprep.subr.mxu0 0.0
      %v3402 = vand.u32 %v3199, 4294901760
      %v3403 = vsub.f32 %v3199, %v3402
      %3404 = vmatpush1.msra.mxu0 %v3403
      %3405 = vmatprep.subr.mxu0 0.0
      %v3406 = vand.u32 %v3200, 4294901760
      %v3407 = vsub.f32 %v3200, %v3406
      %3408 = vmatpush1.msra.mxu0 %v3407
      %3409 = vmatprep.subr.mxu0 0.0
      %v3410 = vand.u32 %v3209, 4294901760
      %v3411 = vsub.f32 %v3209, %v3410
      %3412 = vmatpush1.msra.mxu0 %v3411
      %3413 = vmatprep.subr.mxu0 0.0
      %3414 = vmatpush1.msra.mxu0 0.0
      %3415 = vmatprep.subr.mxu0 0.0
      %3416 = vmatpush1.msra.mxu0 0.0
      %3417 = vmatprep.subr.mxu0 0.0
      %3418 = vmatpush1.msra.mxu0 0.0
      %3419 = vmatprep.subr.mxu0 0.0
      %3420 = vmatpush1.msra.mxu0 0.0
      %3421 = vmatprep.subr.mxu0 0.0
      %3422 = vmatpush1.msra.mxu0 0.0
      %3423 = vmatprep.subr.mxu0 0.0
      %3424 = vmatpush1.msra.mxu0 0.0
      %3425 = vmatprep.subr.mxu0 0.0
      %3426 = vmatpush1.msra.mxu0 0.0
      %3427 = vmatprep.subr.mxu0 0.0
      %3428 = vmatpush1.msra.mxu0 0.0
      %3429 = vmatprep.subr.mxu0 0.0
      %3430 = vmatpush1.msra.mxu0 0.0
      %3431 = vmatprep.subr.mxu0 0.0
      %3432 = vmatpush1.msra.mxu0 0.0
      %3433 = vmatprep.subr.mxu0 0.0
      %3434 = vmatpush1.msra.mxu0 0.0
      %3435 = vmatprep.subr.mxu0 0.0
      %3436 = vmatpush1.msra.mxu0 0.0
      %3437 = vmatprep.subr.mxu0 0.0
      %3438 = vmatpush1.msra.mxu0 0.0
      %3439 = vmatprep.subr.mxu0 0.0
      %3440 = vmatpush1.msra.mxu0 0.0
      %3441 = vmatprep.subr.mxu0 0.0
      %3442 = vmatpush1.msra.mxu0 0.0
      %3443 = vmatprep.subr.mxu0 0.0
      %3444 = vmatpush1.msra.mxu0 0.0
      %3445 = vmatprep.subr.mxu0 0.0
      %3446 = vmatpush1.msra.mxu0 0.0
      %3447 = vmatprep.subr.mxu0 0.0
      %3448 = vmatpush1.msra.mxu0 0.0
      %3449 = vmatprep.subr.mxu0 0.0
      %3450 = vmatpush1.msra.mxu0 0.0
      %3451 = vmatprep.subr.mxu0 0.0
      %3452 = vmatpush1.msra.mxu0 0.0
      %3453 = vmatprep.subr.mxu0 0.0
      %3454 = vmatpush1.msra.mxu0 0.0
      %3455 = vmatprep.subr.mxu0 0.0
      %3456 = vmatpush1.msra.mxu0 0.0
      %3457 = vmatprep.subr.mxu0 0.0
      %3458 = vmatpush1.msra.mxu0 0.0
      %3459 = vmatprep.subr.mxu0 0.0
      %3460 = vmatpush1.msra.mxu0 0.0
      %3461 = vmatprep.subr.mxu0 0.0
      %3462 = vmatpush1.msra.mxu0 0.0
      %3463 = vmatprep.subr.mxu0 0.0
      %3464 = vmatpush1.msra.mxu0 0.0
      %3465 = vmatprep.subr.mxu0 0.0
      %3466 = vmatpush1.msra.mxu0 0.0
      %3467 = vmatprep.subr.mxu0 0.0
      %3468 = vmatpush1.msra.mxu0 0.0
      %3469 = vmatprep.mubr.f32.mxu0 0.0
      %v3470 = vand.u32 %v3203, 4294901760
      %v3471 = vsub.f32 %v3203, %v3470
      %3472 = vmatmul.mubr.f32.gmra.mrb[0].mxu0 %v3471
      %v3473 = vpop.f32.mrb[0].mxu0
      %v3474 = vadd.f32 %v3388, %v3473
      %v3475 = vpop.f32.mrb[0].mxu0
      %3476 = vmatprep.mubr.f32.mxu0 0.0
      %v3477 = vand.u32 %v3206, 4294901760
      %v3478 = vsub.f32 %v3206, %v3477
      %3479 = vmatmul.mubr.f32.gmra.mrb[0].mxu0 %v3478
      %v3480 = vpop.f32.mrb[0].mxu0
      %v3481 = vadd.f32 %v3394, %v3480
      %v3482 = vpop.f32.mrb[0].mxu0
      %3483 = vdwg.mxu0
      %3484 = vmatprep.subr.mxu0 0.0
      %v3485 = vand.u32 %v3198, 4294901760
      %3486 = vmatpush1.msra.mxu0 %v3485
      %3487 = vmatprep.subr.mxu0 0.0
      %v3488 = vand.u32 %v3199, 4294901760
      %3489 = vmatpush1.msra.mxu0 %v3488
      %3490 = vmatprep.subr.mxu0 0.0
      %v3491 = vand.u32 %v3200, 4294901760
      %3492 = vmatpush1.msra.mxu0 %v3491
      %3493 = vmatprep.subr.mxu0 0.0
      %v3494 = vand.u32 %v3209, 4294901760
      %3495 = vmatpush1.msra.mxu0 %v3494
      %3496 = vmatprep.subr.mxu0 0.0
      %3497 = vmatpush1.msra.mxu0 0.0
      %3498 = vmatprep.subr.mxu0 0.0
      %3499 = vmatpush1.msra.mxu0 0.0
      %3500 = vmatprep.subr.mxu0 0.0
      %3501 = vmatpush1.msra.mxu0 0.0
      %3502 = vmatprep.subr.mxu0 0.0
      %3503 = vmatpush1.msra.mxu0 0.0
      %3504 = vmatprep.subr.mxu0 0.0
      %3505 = vmatpush1.msra.mxu0 0.0
      %3506 = vmatprep.subr.mxu0 0.0
      %3507 = vmatpush1.msra.mxu0 0.0
      %3508 = vmatprep.subr.mxu0 0.0
      %3509 = vmatpush1.msra.mxu0 0.0
      %3510 = vmatprep.subr.mxu0 0.0
      %3511 = vmatpush1.msra.mxu0 0.0
      %3512 = vmatprep.subr.mxu0 0.0
      %3513 = vmatpush1.msra.mxu0 0.0
      %3514 = vmatprep.subr.mxu0 0.0
      %3515 = vmatpush1.msra.mxu0 0.0
      %3516 = vmatprep.subr.mxu0 0.0
      %3517 = vmatpush1.msra.mxu0 0.0
      %3518 = vmatprep.subr.mxu0 0.0
      %3519 = vmatpush1.msra.mxu0 0.0
      %3520 = vmatprep.subr.mxu0 0.0
      %3521 = vmatpush1.msra.mxu0 0.0
      %3522 = vmatprep.subr.mxu0 0.0
      %3523 = vmatpush1.msra.mxu0 0.0
      %3524 = vmatprep.subr.mxu0 0.0
      %3525 = vmatpush1.msra.mxu0 0.0
      %3526 = vmatprep.subr.mxu0 0.0
      %3527 = vmatpush1.msra.mxu0 0.0
      %3528 = vmatprep.subr.mxu0 0.0
      %3529 = vmatpush1.msra.mxu0 0.0
      %3530 = vmatprep.subr.mxu0 0.0
      %3531 = vmatpush1.msra.mxu0 0.0
      %3532 = vmatprep.subr.mxu0 0.0
      %3533 = vmatpush1.msra.mxu0 0.0
      %3534 = vmatprep.subr.mxu0 0.0
      %3535 = vmatpush1.msra.mxu0 0.0
      %3536 = vmatprep.subr.mxu0 0.0
      %3537 = vmatpush1.msra.mxu0 0.0
      %3538 = vmatprep.subr.mxu0 0.0
      %3539 = vmatpush1.msra.mxu0 0.0
      %3540 = vmatprep.subr.mxu0 0.0
      %3541 = vmatpush1.msra.mxu0 0.0
      %3542 = vmatprep.subr.mxu0 0.0
      %3543 = vmatpush1.msra.mxu0 0.0
      %3544 = vmatprep.subr.mxu0 0.0
      %3545 = vmatpush1.msra.mxu0 0.0
      %3546 = vmatprep.subr.mxu0 0.0
      %3547 = vmatpush1.msra.mxu0 0.0
      %3548 = vmatprep.subr.mxu0 0.0
      %3549 = vmatpush1.msra.mxu0 0.0
      %3550 = vmatprep.subr.mxu0 0.0
      %3551 = vmatpush1.msra.mxu0 0.0
      %3552 = vmatprep.mubr.f32.mxu0 0.0
      %v3553 = vand.u32 %v3203, 4294901760
      %v3554 = vsub.f32 %v3203, %v3553
      %v3555 = vand.u32 %v3554, 4294901760
      %3556 = vmatmul.mubr.f32.gmra.mrb[0].mxu0 %v3555
      %v3557 = vpop.f32.mrb[0].mxu0
      %v3558 = vadd.f32 %v3474, %v3557
      %v3559 = vpop.f32.mrb[0].mxu0
      %3560 = vmatprep.mubr.f32.mxu0 0.0
      %v3561 = vand.u32 %v3206, 4294901760
      %v3562 = vsub.f32 %v3206, %v3561
      %v3563 = vand.u32 %v3562, 4294901760
      %3564 = vmatmul.mubr.f32.gmra.mrb[0].mxu0 %v3563
      %v3565 = vpop.f32.mrb[0].mxu0
      %v3566 = vadd.f32 %v3481, %v3565
      %v3567 = vpop.f32.mrb[0].mxu0
      %3568 = vdwg.mxu0
      %3569 = vmatprep.subr.mxu0 0.0
      %v3570 = vand.u32 %v3198, 4294901760
      %v3571 = vsub.f32 %v3198, %v3570
      %v3572 = vand.u32 %v3571, 4294901760
      %3573 = vmatpush1.msra.mxu0 %v3572
      %3574 = vmatprep.subr.mxu0 0.0
      %v3575 = vand.u32 %v3199, 4294901760
      %v3576 = vsub.f32 %v3199, %v3575
      %v3577 = vand.u32 %v3576, 4294901760
      %3578 = vmatpush1.msra.mxu0 %v3577
      %3579 = vmatprep.subr.mxu0 0.0
      %v3580 = vand.u32 %v3200, 4294901760
      %v3581 = vsub.f32 %v3200, %v3580
      %v3582 = vand.u32 %v3581, 4294901760
      %3583 = vmatpush1.msra.mxu0 %v3582
      %3584 = vmatprep.subr.mxu0 0.0
      %v3585 = vand.u32 %v3209, 4294901760
      %v3586 = vsub.f32 %v3209, %v3585
      %v3587 = vand.u32 %v3586, 4294901760
      %3588 = vmatpush1.msra.mxu0 %v3587
      %3589 = vmatprep.subr.mxu0 0.0
      %3590 = vmatpush1.msra.mxu0 0.0
      %3591 = vmatprep.subr.mxu0 0.0
      %3592 = vmatpush1.msra.mxu0 0.0
      %3593 = vmatprep.subr.mxu0 0.0
      %3594 = vmatpush1.msra.mxu0 0.0
      %3595 = vmatprep.subr.mxu0 0.0
      %3596 = vmatpush1.msra.mxu0 0.0
      %3597 = vmatprep.subr.mxu0 0.0
      %3598 = vmatpush1.msra.mxu0 0.0
      %3599 = vmatprep.subr.mxu0 0.0
      %3600 = vmatpush1.msra.mxu0 0.0
      %3601 = vmatprep.subr.mxu0 0.0
      %3602 = vmatpush1.msra.mxu0 0.0
      %3603 = vmatprep.subr.mxu0 0.0
      %3604 = vmatpush1.msra.mxu0 0.0
      %3605 = vmatprep.subr.mxu0 0.0
      %3606 = vmatpush1.msra.mxu0 0.0
      %3607 = vmatprep.subr.mxu0 0.0
      %3608 = vmatpush1.msra.mxu0 0.0
      %3609 = vmatprep.subr.mxu0 0.0
      %3610 = vmatpush1.msra.mxu0 0.0
      %3611 = vmatprep.subr.mxu0 0.0
      %3612 = vmatpush1.msra.mxu0 0.0
      %3613 = vmatprep.subr.mxu0 0.0
      %3614 = vmatpush1.msra.mxu0 0.0
      %3615 = vmatprep.subr.mxu0 0.0
      %3616 = vmatpush1.msra.mxu0 0.0
      %3617 = vmatprep.subr.mxu0 0.0
      %3618 = vmatpush1.msra.mxu0 0.0
      %3619 = vmatprep.subr.mxu0 0.0
      %3620 = vmatpush1.msra.mxu0 0.0
      %3621 = vmatprep.subr.mxu0 0.0
      %3622 = vmatpush1.msra.mxu0 0.0
      %3623 = vmatprep.subr.mxu0 0.0
      %3624 = vmatpush1.msra.mxu0 0.0
      %3625 = vmatprep.subr.mxu0 0.0
      %3626 = vmatpush1.msra.mxu0 0.0
      %3627 = vmatprep.subr.mxu0 0.0
      %3628 = vmatpush1.msra.mxu0 0.0
      %3629 = vmatprep.subr.mxu0 0.0
      %3630 = vmatpush1.msra.mxu0 0.0
      %3631 = vmatprep.subr.mxu0 0.0
      %3632 = vmatpush1.msra.mxu0 0.0
      %3633 = vmatprep.subr.mxu0 0.0
      %3634 = vmatpush1.msra.mxu0 0.0
      %3635 = vmatprep.subr.mxu0 0.0
      %3636 = vmatpush1.msra.mxu0 0.0
      %3637 = vmatprep.subr.mxu0 0.0
      %3638 = vmatpush1.msra.mxu0 0.0
      %3639 = vmatprep.subr.mxu0 0.0
      %3640 = vmatpush1.msra.mxu0 0.0
      %3641 = vmatprep.subr.mxu0 0.0
      %3642 = vmatpush1.msra.mxu0 0.0
      %3643 = vmatprep.subr.mxu0 0.0
      %3644 = vmatpush1.msra.mxu0 0.0
      %3645 = vmatprep.mubr.f32.mxu0 0.0
      %v3646 = vand.u32 %v3203, 4294901760
      %3647 = vmatmul.mubr.f32.gmra.mrb[0].mxu0 %v3646
      %v3648 = vpop.f32.mrb[0].mxu0
      %v3649 = vadd.f32 %v3558, %v3648
      %v3650 = vpop.f32.mrb[0].mxu0
      %3651 = vmatprep.mubr.f32.mxu0 0.0
      %v3652 = vand.u32 %v3206, 4294901760
      %3653 = vmatmul.mubr.f32.gmra.mrb[0].mxu0 %v3652
      %v3654 = vpop.f32.mrb[0].mxu0
      %v3655 = vadd.f32 %v3566, %v3654
      %v3656 = vpop.f32.mrb[0].mxu0
      %3657 = vdwg.mxu0
      %3658 = vmatprep.subr.mxu0 0.0
      %v3659 = vand.u32 %v3198, 4294901760
      %3660 = vmatpush1.msra.mxu0 %v3659
      %3661 = vmatprep.subr.mxu0 0.0
      %v3662 = vand.u32 %v3199, 4294901760
      %3663 = vmatpush1.msra.mxu0 %v3662
      %3664 = vmatprep.subr.mxu0 0.0
      %v3665 = vand.u32 %v3200, 4294901760
      %3666 = vmatpush1.msra.mxu0 %v3665
      %3667 = vmatprep.subr.mxu0 0.0
      %v3668 = vand.u32 %v3209, 4294901760
      %3669 = vmatpush1.msra.mxu0 %v3668
      %3670 = vmatprep.subr.mxu0 0.0
      %3671 = vmatpush1.msra.mxu0 0.0
      %3672 = vmatprep.subr.mxu0 0.0
      %3673 = vmatpush1.msra.mxu0 0.0
      %3674 = vmatprep.subr.mxu0 0.0
      %3675 = vmatpush1.msra.mxu0 0.0
      %3676 = vmatprep.subr.mxu0 0.0
      %3677 = vmatpush1.msra.mxu0 0.0
      %3678 = vmatprep.subr.mxu0 0.0
      %3679 = vmatpush1.msra.mxu0 0.0
      %3680 = vmatprep.subr.mxu0 0.0
      %3681 = vmatpush1.msra.mxu0 0.0
      %3682 = vmatprep.subr.mxu0 0.0
      %3683 = vmatpush1.msra.mxu0 0.0
      %3684 = vmatprep.subr.mxu0 0.0
      %3685 = vmatpush1.msra.mxu0 0.0
      %3686 = vmatprep.subr.mxu0 0.0
      %3687 = vmatpush1.msra.mxu0 0.0
      %3688 = vmatprep.subr.mxu0 0.0
      %3689 = vmatpush1.msra.mxu0 0.0
      %3690 = vmatprep.subr.mxu0 0.0
      %3691 = vmatpush1.msra.mxu0 0.0
      %3692 = vmatprep.subr.mxu0 0.0
      %3693 = vmatpush1.msra.mxu0 0.0
      %3694 = vmatprep.subr.mxu0 0.0
      %3695 = vmatpush1.msra.mxu0 0.0
      %3696 = vmatprep.subr.mxu0 0.0
      %3697 = vmatpush1.msra.mxu0 0.0
      %3698 = vmatprep.subr.mxu0 0.0
      %3699 = vmatpush1.msra.mxu0 0.0
      %3700 = vmatprep.subr.mxu0 0.0
      %3701 = vmatpush1.msra.mxu0 0.0
      %3702 = vmatprep.subr.mxu0 0.0
      %3703 = vmatpush1.msra.mxu0 0.0
      %3704 = vmatprep.subr.mxu0 0.0
      %3705 = vmatpush1.msra.mxu0 0.0
      %3706 = vmatprep.subr.mxu0 0.0
      %3707 = vmatpush1.msra.mxu0 0.0
      %3708 = vmatprep.subr.mxu0 0.0
      %3709 = vmatpush1.msra.mxu0 0.0
      %3710 = vmatprep.subr.mxu0 0.0
      %3711 = vmatpush1.msra.mxu0 0.0
      %3712 = vmatprep.subr.mxu0 0.0
      %3713 = vmatpush1.msra.mxu0 0.0
      %3714 = vmatprep.subr.mxu0 0.0
      %3715 = vmatpush1.msra.mxu0 0.0
      %3716 = vmatprep.subr.mxu0 0.0
      %3717 = vmatpush1.msra.mxu0 0.0
      %3718 = vmatprep.subr.mxu0 0.0
      %3719 = vmatpush1.msra.mxu0 0.0
      %3720 = vmatprep.subr.mxu0 0.0
      %3721 = vmatpush1.msra.mxu0 0.0
      %3722 = vmatprep.subr.mxu0 0.0
      %3723 = vmatpush1.msra.mxu0 0.0
      %3724 = vmatprep.subr.mxu0 0.0
      %3725 = vmatpush1.msra.mxu0 0.0
      %3726 = vmatprep.mubr.f32.mxu0 0.0
      %v3727 = vand.u32 %v3203, 4294901760
      %3728 = vmatmul.mubr.f32.gmra.mrb[0].mxu0 %v3727
      %v3729 = vpop.f32.mrb[0].mxu0
      %v3730 = vadd.f32 %v3649, %v3729
      %v3731 = vpop.f32.mrb[0].mxu0
      %3732 = vmatprep.mubr.f32.mxu0 0.0
      %v3733 = vand.u32 %v3206, 4294901760
      %3734 = vmatmul.mubr.f32.gmra.mrb[0].mxu0 %v3733
      %v3735 = vpop.f32.mrb[0].mxu0
      %v3736 = vadd.f32 %v3655, %v3735
      %v3737 = vpop.f32.mrb[0].mxu0
      %3738 = vdwg.mxu0
      %v3739 = vadd.f32 %v3194, %v3730
      %v3740 = vadd.f32 %v3195, %v3736
      %3741 = vst.msk [vmem:[#allocation2 + $0x30] sm:$0xff] %vm1134, %v3739
      %3742 = vst.msk [vmem:[#allocation2 + $0x38] sm:$0xff] %vm1134, %v3740
      %v3743 = vld [vmem:[#allocation2] sm:$0xff]
      %v3744 = vld [vmem:[#allocation2 + $0x8] sm:$0xff]
      %v3745 = vld [vmem:[#allocation2 + $0x10] sm:$0xff]
      %v3746 = vld [vmem:[#allocation2 + $0x18] sm:$0xff]
      %v3747 = vld [vmem:[#allocation2 + $0x20] sm:$0xff]
      %v3748 = vld [vmem:[#allocation2 + $0x28] sm:$0xff]
      %v3749 = vld [vmem:[#allocation2 + $0x30] sm:$0xff]
      %v3750 = vld [vmem:[#allocation2 + $0x38] sm:$0xff]
      %v3751 = vld [vmem:[%s3] sm:$0x1]
      %v3753 = vlaneseq
      %v3754 = vshrl.u32 %v3753, 7
      %v3755 = vsub.s32 0, %v3754
      %v3756 = vrot.slane %v3751, %v3755
      %v3758 = vadd.f32 %v3743, %v3756
      %v3759 = vadd.f32 %v3744, %v3756
      %v3760 = vadd.f32 %v3745, %v3756
      %v3761 = vadd.f32 %v3746, %v3756
      %v3762 = vadd.f32 %v3747, %v3756
      %v3763 = vadd.f32 %v3748, %v3756
      %v3764 = vadd.f32 %v3749, %v3756
      %v3765 = vadd.f32 %v3750, %v3756
      %3766 = vst.msk [vmem:[%s305] sm:$0xff] %vm1134, %v3758
      %3767 = vst.msk [vmem:[%s305 + $0x8] sm:$0xff] %vm1134, %v3759
      %3768 = vst.msk [vmem:[%s305 + $0x10] sm:$0xff] %vm1134, %v3760
      %3769 = vst.msk [vmem:[%s305 + $0x18] sm:$0xff] %vm1134, %v3761
      %3770 = vst.msk [vmem:[%s305 + $0x20] sm:$0xff] %vm1134, %v3762
      %3771 = vst.msk [vmem:[%s305 + $0x28] sm:$0xff] %vm1134, %v3763
      %3772 = vst.msk [vmem:[%s305 + $0x30] sm:$0xff] %vm1134, %v3764
      %3773 = vst.msk [vmem:[%s305 + $0x38] sm:$0xff] %vm1134, %v3765
      %s3774 = smul.u32 8, %s20
      %p3775 = scmp.lt.s32.totalorder %s19, 1
      %s3776 = scalar_select %p3775, %s19, 1
      %p3777 = scmp.lt.s32.totalorder %s3774, 7
      %s3778 = scalar_select %p3777, %s3774, 7
      %s3779 = smul.addr %s3776, 8
      %s3780 = sadd.s32 %s3778, %s3779
      %s3781 = smul.addr %s3780, 8
      %s3782 = scalar_lea.vmem %s4, %s3781
      // Predicated region
      $region37: #{final_up_forward.1} parent=35 // pred_check
        %p3783 = pneg %p149
      $region38: #{final_up_forward.1} parent=35 // pred_check_branch
        %3785 = sbr.rel (%p3783) target = $region40
      $region39: #{final_up_forward.1} parent=35 // pred_region
        %s3786 = smul.u32 8, %s20
      $region40: #{final_up_forward.1} parent=35 // pred_fallthru
        _
    $region36: #{final_up_forward.1} parent=5 // pred_fallthru
      _
    %p3787 = scmp.le.s32.totalorder 2, %s10
    // Predicated region
    $region41: #{final_up_forward.1} parent=5 // pred_check
      %p3788 = pneg %p3787
    $region42: #{final_up_forward.1} parent=5 // pred_check_branch
      %3790 = sbr.rel (%p3788) target = $region44
    $region43: #{final_up_forward.1} parent=5 // pred_region
      %s3791 = ssub.s32 %s10, 2
      // Predicated region
      $region45: #{final_up_forward.1} parent=43 // pred_check
        %p3792 = pneg %p155
      $region46: #{final_up_forward.1} parent=43 // pred_check_branch
        %3794 = sbr.rel (%p3792) target = $region48
      $region47: #{final_up_forward.1} parent=43 // pred_region
        %s3795 = smul.u32 8, %s22
        %p3796 = scmp.lt.s32.totalorder %s21, 1
        %s3797 = scalar_select %p3796, %s21, 1
        %p3798 = scmp.lt.s32.totalorder %s3795, 7
        %s3799 = scalar_select %p3798, %s3795, 7
        %s3800 = smul.addr %s3797, 8
        %s3801 = sadd.s32 %s3799, %s3800
        %s3802 = smul.addr %s3801, 8
        %s3803 = scalar_lea.vmem %s4, %s3802
      $region48: #{final_up_forward.1} parent=43 // pred_fallthru
        _
    $region44: #{final_up_forward.1} parent=5 // pred_fallthru
      _
  $region6: #{final_up_forward.1} parent=0 // loop_footer
    %s14 = sadd.s32 1, %s10
  $region7: #{final_up_forward.1} parent=0 // loop_footer_branch
    %9 = sbr.rel target = $region3
  $region8: #{final_up_forward.1} parent=0 // loop_exit
    _

</llo_original>
